<compile_context>
chip_gen: v6e
topology: v6e:2x2x1
jax: 0.10.0
libtpu: 0.0.40
codegen_flags: <defaults>
</compile_context>

<pallas_src>
import functools

import jax
import jax.numpy as jnp
import numpy as np
from jax import lax
from jax.experimental import pallas as pl
from jax.experimental.pallas import tpu as pltpu

EPS = 1.1e-05          # matches nn.BatchNorm2d(eps=1.1e-05)
EXPANSION = 4

_LANE = 128                           # pad channel dims to a multiple of this
_SUBLANE = 8                          # f32 sublane packing
_VMEM_LIMIT = 48 * 1024 * 1024        # below v7x's 64 MiB physical VMEM
_TILE_BUDGET = 16 * 1024 * 1024       # bytes for double-buffered in+out row tiles
_MATMUL_DTYPE = jnp.bfloat16          # single-pass MXU inputs; f32 accumulation


# ----------------------------------------------------------------------------
# small static helpers
# ----------------------------------------------------------------------------
def _round_up(x, m):
    return ((x + m - 1) // m) * m


def _pad_to(a, shape):
    pads = [(0, t - s) for s, t in zip(a.shape, shape)]
    if all(p == (0, 0) for p in pads):
        return a
    return jnp.pad(a, pads)


def _pick_tile_m(m, row_bytes):
    """Largest row tile (multiple of 8) whose double-buffered tiles fit the budget."""
    t = _TILE_BUDGET // max(2 * row_bytes, 1)
    t = max(_SUBLANE, min(1024, (t // _SUBLANE) * _SUBLANE))
    return int(min(t, _round_up(m, _SUBLANE)))


def _largest_divisor_leq(n, cap):
    cap = max(1, min(n, cap))
    for d in range(cap, 0, -1):
        if n % d == 0:
            return d
    return 1


# ----------------------------------------------------------------------------
# Kernels
# ----------------------------------------------------------------------------
def _write_stats(y, stats_ref):
    # per-channel sum / sum-of-squares of this tile (f32)
    stats_ref[0, 0:1, :] = jnp.sum(y, axis=0, keepdims=True)
    stats_ref[0, 1:2, :] = jnp.sum(y * y, axis=0, keepdims=True)


def conv1x1_stats_kernel(x_ref, w_ref, y_ref, stats_ref):
    """1x1 conv (matmul) on one row tile; emits per-tile batch-norm statistics."""
    y = jnp.dot(x_ref[...].astype(_MATMUL_DTYPE), w_ref[...],
                preferred_element_type=jnp.float32)
    y_ref[...] = y
    _write_stats(y, stats_ref)


def affine_relu_conv1x1_stats_kernel(x_ref, ab_ref, w_ref, y_ref, stats_ref,
                                     *, tile_m, m_true, m_pad):
    """Fused prologue (previous stage's BN*Scale affine + ReLU) -> 1x1 conv -> stats."""
    z = jnp.maximum(x_ref[...] * ab_ref[0:1, :] + ab_ref[1:2, :], 0.0)
    if m_pad != m_true:
        # keep zero-padded rows out of the next stage's statistics
        row = (lax.broadcasted_iota(jnp.int32, z.shape, 0)
               + pl.program_id(0) * tile_m)
        z = jnp.where(row < m_true, z, 0.0)
    y = jnp.dot(z.astype(_MATMUL_DTYPE), w_ref[...],
                preferred_element_type=jnp.float32)
    y_ref[...] = y
    _write_stats(y, stats_ref)


def conv3x3_stats_kernel(ab_ref, w_ref, x_hbm_ref, y_ref, stats_ref, slab_ref,
                         *, tile_h, width, ch, tiles_h):
    """3x3 conv (stride 1, pad 1) with fused bn1/scale1/relu prologue + stats.

    x_hbm_ref : (N, H+2, W+2, C) zero-padded raw conv1 output, left in HBM (pl.ANY).
    slab_ref  : VMEM scratch (tile_h+2, W+2, C) -- manually DMA'd halo slab
                (overlapping windows are not expressible with Blocked BlockSpecs).
    """
    n = pl.program_id(0)
    j = pl.program_id(1)
    row0 = j * tile_h

    pltpu.sync_copy(x_hbm_ref.at[n, pl.ds(row0, tile_h + 2)], slab_ref)

    # Fused BN*Scale affine + ReLU of the previous stage (f32 on the VPU).
    a = ab_ref[0:1, :].reshape(1, 1, ch)
    b = ab_ref[1:2, :].reshape(1, 1, ch)
    slab_ref[...] = jnp.maximum(slab_ref[...] * a + b, 0.0)

    # Re-zero the conv2 zero-padding ring (the affine turned it into relu(b) != 0).
    zero_col = jnp.zeros((tile_h + 2, 1, ch), jnp.float32)
    slab_ref[:, 0:1, :] = zero_col
    slab_ref[:, width + 1:width + 2, :] = zero_col
    zero_row = jnp.zeros((1, width + 2, ch), jnp.float32)

    @pl.when(j == 0)
    def _():
        slab_ref[0:1, :, :] = zero_row

    @pl.when(j == tiles_h - 1)
    def _():
        slab_ref[tile_h + 1:tile_h + 2, :, :] = zero_row

    # Nine shifted MXU matmuls accumulate the 3x3 conv in f32.
    acc = jnp.zeros((tile_h * width, ch), jnp.float32)
    for kh in range(3):
        for kw in range(3):
            patch = slab_ref[kh:kh + tile_h, kw:kw + width, :]
            patch = patch.reshape(tile_h * width, ch).astype(_MATMUL_DTYPE)
            acc = acc + jnp.dot(patch, w_ref[kh, kw],
                                preferred_element_type=jnp.float32)

    y_ref[0] = acc
    _write_stats(acc, stats_ref)


def finalize_kernel(y_ref, id_ref, ab_ref, o_ref):
    """conv3's BN*Scale affine + residual add + final ReLU."""
    o_ref[...] = jnp.maximum(
        y_ref[...] * ab_ref[0:1, :] + ab_ref[1:2, :] + id_ref[...], 0.0)


# ----------------------------------------------------------------------------
# Parameter folding / statistics -> affine (tiny per-channel JAX math)
# ----------------------------------------------------------------------------
def _fold_bn_scale(p, c_pad):
    """Fold BatchNorm affine + Scale layer into one per-channel (gamma, beta)."""
    g = p[0] * p[2]
    b = p[1] * p[2] + p[3]
    return _pad_to(g, (c_pad,)), _pad_to(b, (c_pad,))


def _stats_to_affine(stats, m, gamma, beta):
    """Per-tile [sum, sum^2] -> single 'y*a + b' affine (training-mode batch stats)."""
    s = jnp.sum(stats, axis=0)                       # (2, C)
    mean = s[0] / m
    var = jnp.maximum(s[1] / m - mean * mean, 0.0)   # biased variance
    a = gamma * lax.rsqrt(var + EPS)
    b = beta - mean * a
    return jnp.stack([a, b], axis=0)                 # (2, C) f32


# ----------------------------------------------------------------------------
# Stage launchers
# ----------------------------------------------------------------------------
def _run_conv1x1(x2d, w_bf16, *, tile_m, ab=None, m_true=None):
    m_pad, c_in = x2d.shape
    c_out = w_bf16.shape[1]
    n_t = m_pad // tile_m
    cparams = pltpu.CompilerParams(dimension_semantics=("parallel",),
                                   vmem_limit_bytes=_VMEM_LIMIT)
    out_shape = (jax.ShapeDtypeStruct((m_pad, c_out), jnp.float32),
                 jax.ShapeDtypeStruct((n_t, 2, c_out), jnp.float32))
    out_specs = (pl.BlockSpec((tile_m, c_out), lambda i: (i, 0)),
                 pl.BlockSpec((1, 2, c_out), lambda i: (i, 0, 0)))
    x_spec = pl.BlockSpec((tile_m, c_in), lambda i: (i, 0))
    w_spec = pl.BlockSpec((c_in, c_out), lambda i: (0, 0))      # weights stay resident

    if ab is None:
        return pl.pallas_call(
            conv1x1_stats_kernel,
            grid=(n_t,),
            in_specs=[x_spec, w_spec],
            out_specs=out_specs,
            out_shape=out_shape,
            compiler_params=cparams,
        )(x2d, w_bf16)

    kern = functools.partial(affine_relu_conv1x1_stats_kernel,
                             tile_m=tile_m, m_true=m_true, m_pad=m_pad)
    ab_spec = pl.BlockSpec((2, c_in), lambda i: (0, 0))
    return pl.pallas_call(
        kern,
        grid=(n_t,),
        in_specs=[x_spec, ab_spec, w_spec],
        out_specs=out_specs,
        out_shape=out_shape,
        compiler_params=cparams,
    )(x2d, ab, w_bf16)


# ----------------------------------------------------------------------------
# Bottleneck forward
# ----------------------------------------------------------------------------
def bottleneck_forward_nhwc(x_nhwc, params):
    n, h, w, c_in = x_nhwc.shape
    planes = params["w1"].shape[1]
    out_c = params["w3"].shape[1]
    if c_in != out_c:
        # TODO(synk): downsample shortcut branch / stride>1 conv2 not implemented;
        # this matches Bottleneck(..., stride=1, downsample=None).
        raise NotImplementedError("identity shortcut requires inplanes == planes*4")
    m = n * h * w

    c_in_p = _round_up(c_in, _LANE)
    c_mid_p = _round_up(planes, _LANE)
    c_out_p = _round_up(out_c, _LANE)

    # weights: zero-pad channels to lane multiples, pre-cast to bf16 once
    w1 = _pad_to(params["w1"], (c_in_p, c_mid_p)).astype(_MATMUL_DTYPE)
    w2 = _pad_to(params["w2"], (3, 3, c_mid_p, c_mid_p)).astype(_MATMUL_DTYPE)
    w3 = _pad_to(params["w3"], (c_mid_p, c_out_p)).astype(_MATMUL_DTYPE)

    # BatchNorm affine + Scale folded into one per-channel affine (parameter part)
    g1, b1 = _fold_bn_scale(params["p1"], c_mid_p)
    g2, b2 = _fold_bn_scale(params["p2"], c_mid_p)
    g3, b3 = _fold_bn_scale(params["p3"], c_out_p)

    # one row-tile size for all flat (M, C) stages, sized against the VMEM budget
    row_bytes = 4 * max(c_in_p + c_mid_p, c_mid_p + c_out_p, c_in_p + 2 * c_out_p)
    tile_m = _pick_tile_m(m, row_bytes)
    m_pad = _round_up(m, tile_m)

    x2d = _pad_to(x_nhwc.reshape(m, c_in).astype(jnp.float32), (m_pad, c_in_p))

    # --- stage 1: conv1 (1x1) + batch stats ----------------------------------
    y1, st1 = _run_conv1x1(x2d, w1, tile_m=tile_m)
    ab1 = _stats_to_affine(st1, m, g1, b1)

    # --- stage 2: conv2 (3x3, stride 1, pad 1) with fused bn1/scale1/relu -----
    tile_h = _largest_divisor_leq(h, max(1, 512 // w))
    tiles_h = h // tile_h
    y1_img = jnp.pad(y1[:m].reshape(n, h, w, c_mid_p),
                     ((0, 0), (1, 1), (1, 1), (0, 0)))
    n_steps = n * tiles_h
    kern2 = functools.partial(conv3x3_stats_kernel, tile_h=tile_h, width=w,
                              ch=c_mid_p, tiles_h=tiles_h)
    y2, st2 = pl.pallas_call(
        kern2,
        grid=(n, tiles_h),
        in_specs=[pl.BlockSpec((2, c_mid_p), lambda i, j: (0, 0)),
                  pl.BlockSpec((3, 3, c_mid_p, c_mid_p),
                               lambda i, j: (0, 0, 0, 0)),
                  pl.BlockSpec(memory_space=pl.ANY)],
        out_specs=(pl.BlockSpec((1, tile_h * w, c_mid_p),
                                lambda i, j: (i * tiles_h + j, 0, 0)),
                   pl.BlockSpec((1, 2, c_mid_p),
                                lambda i, j: (i * tiles_h + j, 0, 0))),
        out_shape=(jax.ShapeDtypeStruct((n_steps, tile_h * w, c_mid_p), jnp.float32),
                   jax.ShapeDtypeStruct((n_steps, 2, c_mid_p), jnp.float32)),
        scratch_shapes=[pltpu.VMEM((tile_h + 2, w + 2, c_mid_p), jnp.float32)],
        compiler_params=pltpu.CompilerParams(
            dimension_semantics=("parallel", "parallel"),
            vmem_limit_bytes=_VMEM_LIMIT),
    )(ab1, w2, y1_img)
    ab2 = _stats_to_affine(st2, m, g2, b2)

    # --- stage 3: conv3 (1x1) with fused bn2/scale2/relu + batch stats --------
    y2_flat = _pad_to(y2.reshape(m, c_mid_p), (m_pad, c_mid_p))
    y3, st3 = _run_conv1x1(y2_flat, w3, tile_m=tile_m, ab=ab2, m_true=m)
    ab3 = _stats_to_affine(st3, m, g3, b3)

    # --- stage 4: bn3/scale3 + residual add + relu ----------------------------
    n_t = m_pad // tile_m
    out2d = pl.pallas_call(
        finalize_kernel,
        grid=(n_t,),
        in_specs=[pl.BlockSpec((tile_m, c_out_p), lambda i: (i, 0)),
                  pl.BlockSpec((tile_m, c_in_p), lambda i: (i, 0)),
                  pl.BlockSpec((2, c_out_p), lambda i: (0, 0))],
        out_specs=pl.BlockSpec((tile_m, c_out_p), lambda i: (i, 0)),
        out_shape=jax.ShapeDtypeStruct((m_pad, c_out_p), jnp.float32),
        compiler_params=pltpu.CompilerParams(
            dimension_semantics=("parallel",),
            vmem_limit_bytes=_VMEM_LIMIT),
    )(y3, x2d, ab3)

    return out2d[:m, :out_c].reshape(n, h, w, out_c)


def bottleneck_forward(x_nchw, params):
    # NCHW (PyTorch interface) <-> NHWC layout glue only at the boundary.
    x = jnp.transpose(x_nchw, (0, 2, 3, 1))
    out = bottleneck_forward_nhwc(x, params)
    return jnp.transpose(out, (0, 3, 1, 2))


# ----------------------------------------------------------------------------
# Deterministic parameter init (shapes follow Bottleneck.__init__)
# ----------------------------------------------------------------------------
def init_params(key, inplanes, planes, expansion=EXPANSION):
    out_c = planes * expansion
    k = jax.random.split(key, 6)

    # Conv weights stored in matmul-friendly layouts:
    #   conv1: (Cin, planes)     <-> torch (planes, Cin, 1, 1)
    #   conv2: (3, 3, Cin, Cout) <-> torch (Cout, Cin, 3, 3) transposed to HWIO
    #   conv3: (planes, 4*planes)
    w1 = 0.1 * jax.random.normal(k[0], (inplanes, planes), jnp.float32)
    w2 = 0.1 * jax.random.normal(k[1], (3, 3, planes, planes), jnp.float32)
    w3 = 0.1 * jax.random.normal(k[2], (planes, out_c), jnp.float32)

    def affine(kk, c):
        ks = jax.random.split(kk, 4)
        return jnp.stack(
            [
                1.0 + 0.1 * jax.random.normal(ks[0], (c,), jnp.float32),  # bn gamma
                0.1 * jax.random.normal(ks[1], (c,), jnp.float32),        # bn beta
                1.0 + 0.1 * jax.random.normal(ks[2], (c,), jnp.float32),  # Scale gamma
                0.1 * jax.random.normal(ks[3], (c,), jnp.float32),        # Scale beta
            ],
            axis=0,
        )

    return dict(
        w1=w1, w2=w2, w3=w3,
        p1=affine(k[3], planes),
        p2=affine(k[4], planes),
        p3=affine(k[5], out_c),
    )


# ----------------------------------------------------------------------------
# Pure-JAX reference (same semantics as the PyTorch module in training mode)
# ----------------------------------------------------------------------------
def reference_forward(x_nchw, params):
    x = jnp.transpose(x_nchw, (0, 2, 3, 1))
    dn = ("NHWC", "HWIO", "NHWC")

    def bn_scale(y, p):
        mean = jnp.mean(y, axis=(0, 1, 2), keepdims=True)
        var = jnp.mean(jnp.square(y - mean), axis=(0, 1, 2), keepdims=True)
        yhat = (y - mean) / jnp.sqrt(var + EPS)
        return (yhat * p[0] + p[1]) * p[2] + p[3]

    y = lax.conv_general_dilated(x, params["w1"][None, None], (1, 1), "VALID",
                                 dimension_numbers=dn, precision=lax.Precision.HIGHEST)
    y = jax.nn.relu(bn_scale(y, params["p1"]))
    y = lax.conv_general_dilated(y, params["w2"], (1, 1), "SAME",
                                 dimension_numbers=dn, precision=lax.Precision.HIGHEST)
    y = jax.nn.relu(bn_scale(y, params["p2"]))
    y = lax.conv_general_dilated(y, params["w3"][None, None], (1, 1), "VALID",
                                 dimension_numbers=dn, precision=lax.Precision.HIGHEST)
    y = bn_scale(y, params["p3"]) + x
    return jnp.transpose(jax.nn.relu(y), (0, 3, 1, 2))


# ----------------------------------------------------------------------------
if __name__ == "__main__":
    key = jax.random.PRNGKey(0)
    k_x, k_p = jax.random.split(key)

    N, H, W = 2, 8, 8
    planes = 8
    inplanes = planes * EXPANSION      # 32 -> identity shortcut (downsample=None)

    x = jax.random.normal(k_x, (N, inplanes, H, W), jnp.float32)
    params = init_params(k_p, inplanes, planes)

    out = jax.jit(bottleneck_forward)(x, params)
    out = jax.block_until_ready(out)

    ref = reference_forward(x, params)
    assert out.shape == (N, inplanes, H, W)
    # bf16 MXU inputs (vs. the f32 HIGHEST-precision reference) bound the error at
    # the ~1e-2 level after three conv + batch-norm stages; real bugs are O(0.1-1).
    np.testing.assert_allclose(np.asarray(out), np.asarray(ref),
                               rtol=3e-2, atol=3e-2)

    print("KERNEL_OK")
</pallas_src>

<mosaic_0001>
module attributes {stable_mosaic.version = 11 : i64} {
  func.func @conv1x1_stats_kernel(%arg0: i32, %arg1: memref<128x128xf32, #tpu.memory_space<vmem>>, %arg2: memref<128x128xbf16, #tpu.memory_space<vmem>>, %arg3: memref<128x128xf32, #tpu.memory_space<vmem>>, %arg4: memref<1x2x128xf32, #tpu.memory_space<vmem>>) attributes {dimension_semantics = [#tpu.dimension_semantics<parallel>], iteration_bounds = array<i64: 1>, scalar_prefetch = 0 : i64, scratch_operands = 0 : i64, tpu.core_type = #tpu.core_type<tc>, window_params = [{transform_indices = @transform_0, window_bounds = array<i64: 128, 128>}, {pipeline_mode = #tpu.pipeline_mode<synchronous>, transform_indices = @transform_1, window_bounds = array<i64: 128, 128>}, {transform_indices = @transform_2, window_bounds = array<i64: 128, 128>}, {transform_indices = @transform_3, window_bounds = array<i64: 1, 2, 128>}]} {
    %c0 = arith.constant 0 : index
    %c0_0 = arith.constant 0 : index
    %0 = vector.load %arg1[%c0, %c0_0] : memref<128x128xf32, #tpu.memory_space<vmem>>, vector<128x128xf32>
    %1 = arith.truncf %0 : vector<128x128xf32> to vector<128x128xbf16>
    %c0_1 = arith.constant 0 : index
    %c0_2 = arith.constant 0 : index
    %2 = vector.load %arg2[%c0_1, %c0_2] : memref<128x128xbf16, #tpu.memory_space<vmem>>, vector<128x128xbf16>
    %cst = arith.constant dense<0.000000e+00> : vector<128x128xf32>
    %3 = tpu.matmul %1, %2, %cst {dimension_numbers = #tpu.dot_dimension_numbers<[1], [0], [0], [1], [0, 0, 1, 1], [], []>} : vector<128x128xbf16>, vector<128x128xbf16>, vector<128x128xf32> -> vector<128x128xf32>
    %c0_3 = arith.constant 0 : index
    %c0_4 = arith.constant 0 : index
    %4 = vector.load %arg3[%c0_3, %c0_4] : memref<128x128xf32, #tpu.memory_space<vmem>>, vector<128x128xf32>
    tpu.vector_store %arg3[%c0_3, %c0_4], %3 {strides = array<i32>} : memref<128x128xf32, #tpu.memory_space<vmem>>, vector<128x128xf32>,
    %cst_5 = arith.constant dense<0.000000e+00> : vector<128xf32>
    %5 = vector.multi_reduction <add>, %3, %cst_5 [0] : vector<128x128xf32> to vector<128xf32>
    %6 = vector.shape_cast %5 : vector<128xf32> to vector<1x128xf32>
    %c0_6 = arith.constant 0 : index
    %c0_7 = arith.constant 0 : index
    %c0_8 = arith.constant 0 : index
    %7 = vector.load %arg4[%c0_6, %c0_7, %c0_8] : memref<1x2x128xf32, #tpu.memory_space<vmem>>, vector<1x1x128xf32>
    %8 = vector.shape_cast %7 : vector<1x1x128xf32> to vector<1x128xf32>
    %9 = vector.shape_cast %6 : vector<1x128xf32> to vector<1x1x128xf32>
    tpu.vector_store %arg4[%c0_6, %c0_7, %c0_8], %9 {strides = array<i32>} : memref<1x2x128xf32, #tpu.memory_space<vmem>>, vector<1x1x128xf32>,
    %10 = arith.mulf %3, %3 : vector<128x128xf32>
    %cst_9 = arith.constant dense<0.000000e+00> : vector<128xf32>
    %11 = vector.multi_reduction <add>, %10, %cst_9 [0] : vector<128x128xf32> to vector<128xf32>
    %12 = vector.shape_cast %11 : vector<128xf32> to vector<1x128xf32>
    %c0_10 = arith.constant 0 : index
    %c1 = arith.constant 1 : index
    %c0_11 = arith.constant 0 : index
    %13 = vector.load %arg4[%c0_10, %c1, %c0_11] : memref<1x2x128xf32, #tpu.memory_space<vmem>>, vector<1x1x128xf32>
    %14 = vector.shape_cast %13 : vector<1x1x128xf32> to vector<1x128xf32>
    %15 = vector.shape_cast %12 : vector<1x128xf32> to vector<1x1x128xf32>
    tpu.vector_store %arg4[%c0_10, %c1, %c0_11], %15 {strides = array<i32>} : memref<1x2x128xf32, #tpu.memory_space<vmem>>, vector<1x1x128xf32>,
    return
  }
  func.func @transform_0(%arg0: i32) -> (i32, i32) {
    %c0_i32 = arith.constant 0 : i32
    %c0_i32_0 = arith.constant 0 : i32
    return %arg0, %c0_i32 : i32, i32
  }
  func.func @transform_1(%arg0: i32) -> (i32, i32) {
    %c0_i32 = arith.constant 0 : i32
    %c0_i32_0 = arith.constant 0 : i32
    %c0_i32_1 = arith.constant 0 : i32
    return %c0_i32, %c0_i32_0 : i32, i32
  }
  func.func @transform_2(%arg0: i32) -> (i32, i32) {
    %c0_i32 = arith.constant 0 : i32
    %c0_i32_0 = arith.constant 0 : i32
    return %arg0, %c0_i32 : i32, i32
  }
  func.func @transform_3(%arg0: i32) -> (i32, i32, i32) {
    %c0_i32 = arith.constant 0 : i32
    %c0_i32_0 = arith.constant 0 : i32
    %c0_i32_1 = arith.constant 0 : i32
    return %arg0, %c0_i32, %c0_i32_0 : i32, i32, i32
  }
}

module attributes {stable_mosaic.version = 11 : i64} {
  func.func @finalize_kernel(%arg0: i32, %arg1: memref<128x128xf32, #tpu.memory_space<vmem>>, %arg2: memref<128x128xf32, #tpu.memory_space<vmem>>, %arg3: memref<2x128xf32, #tpu.memory_space<vmem>>, %arg4: memref<128x128xf32, #tpu.memory_space<vmem>>) attributes {dimension_semantics = [#tpu.dimension_semantics<parallel>], iteration_bounds = array<i64: 1>, scalar_prefetch = 0 : i64, scratch_operands = 0 : i64, tpu.core_type = #tpu.core_type<tc>, window_params = [{transform_indices = @transform_0, window_bounds = array<i64: 128, 128>}, {transform_indices = @transform_1, window_bounds = array<i64: 128, 128>}, {pipeline_mode = #tpu.pipeline_mode<synchronous>, transform_indices = @transform_2, window_bounds = array<i64: 2, 128>}, {transform_indices = @transform_3, window_bounds = array<i64: 128, 128>}]} {
    %c0 = arith.constant 0 : index
    %c0_0 = arith.constant 0 : index
    %0 = vector.load %arg1[%c0, %c0_0] : memref<128x128xf32, #tpu.memory_space<vmem>>, vector<128x128xf32>
    %c0_1 = arith.constant 0 : index
    %c0_2 = arith.constant 0 : index
    %1 = vector.load %arg3[%c0_1, %c0_2] : memref<2x128xf32, #tpu.memory_space<vmem>>, vector<1x128xf32>
    %2 = vector.broadcast %1 : vector<1x128xf32> to vector<128x128xf32>
    %3 = arith.mulf %0, %2 : vector<128x128xf32>
    %c1 = arith.constant 1 : index
    %c0_3 = arith.constant 0 : index
    %4 = vector.load %arg3[%c1, %c0_3] : memref<2x128xf32, #tpu.memory_space<vmem>>, vector<1x128xf32>
    %5 = vector.broadcast %4 : vector<1x128xf32> to vector<128x128xf32>
    %6 = arith.addf %3, %5 : vector<128x128xf32>
    %c0_4 = arith.constant 0 : index
    %c0_5 = arith.constant 0 : index
    %7 = vector.load %arg2[%c0_4, %c0_5] : memref<128x128xf32, #tpu.memory_space<vmem>>, vector<128x128xf32>
    %8 = arith.addf %6, %7 : vector<128x128xf32>
    %cst = arith.constant 0.000000e+00 : f32
    %9 = vector.broadcast %cst : f32 to vector<128x128xf32>
    %10 = arith.maximumf %8, %9 : vector<128x128xf32>
    %c0_6 = arith.constant 0 : index
    %c0_7 = arith.constant 0 : index
    %11 = vector.load %arg4[%c0_6, %c0_7] : memref<128x128xf32, #tpu.memory_space<vmem>>, vector<128x128xf32>
    tpu.vector_store %arg4[%c0_6, %c0_7], %10 {strides = array<i32>} : memref<128x128xf32, #tpu.memory_space<vmem>>, vector<128x128xf32>,
    return
  }
  func.func @transform_0(%arg0: i32) -> (i32, i32) {
    %c0_i32 = arith.constant 0 : i32
    %c0_i32_0 = arith.constant 0 : i32
    return %arg0, %c0_i32 : i32, i32
  }
  func.func @transform_1(%arg0: i32) -> (i32, i32) {
    %c0_i32 = arith.constant 0 : i32
    %c0_i32_0 = arith.constant 0 : i32
    return %arg0, %c0_i32 : i32, i32
  }
  func.func @transform_2(%arg0: i32) -> (i32, i32) {
    %c0_i32 = arith.constant 0 : i32
    %c0_i32_0 = arith.constant 0 : i32
    %c0_i32_1 = arith.constant 0 : i32
    return %c0_i32, %c0_i32_0 : i32, i32
  }
  func.func @transform_3(%arg0: i32) -> (i32, i32) {
    %c0_i32 = arith.constant 0 : i32
    %c0_i32_0 = arith.constant 0 : i32
    return %arg0, %c0_i32 : i32, i32
  }
}

module attributes {stable_mosaic.version = 11 : i64} {
  func.func @conv3x3_stats_kernel(%arg0: i32, %arg1: i32, %arg2: memref<2x128xf32, #tpu.memory_space<vmem>>, %arg3: memref<3x3x128x128xbf16, #tpu.memory_space<vmem>>, %arg4: memref<2x10x10x128xf32, #tpu.memory_space<any>>, %arg5: memref<1x64x128xf32, #tpu.memory_space<vmem>>, %arg6: memref<1x2x128xf32, #tpu.memory_space<vmem>>, %arg7: memref<10x10x128xf32, #tpu.memory_space<vmem>>) attributes {dimension_semantics = [#tpu.dimension_semantics<parallel>, #tpu.dimension_semantics<parallel>], iteration_bounds = array<i64: 2, 1>, scalar_prefetch = 0 : i64, scratch_operands = 1 : i64, tpu.core_type = #tpu.core_type<tc>, window_params = [{pipeline_mode = #tpu.pipeline_mode<synchronous>, transform_indices = @transform_0, window_bounds = array<i64: 2, 128>}, {pipeline_mode = #tpu.pipeline_mode<synchronous>, transform_indices = @transform_1, window_bounds = array<i64: 3, 3, 128, 128>}, {}, {transform_indices = @transform_3, window_bounds = array<i64: 1, 64, 128>}, {transform_indices = @transform_4, window_bounds = array<i64: 1, 2, 128>}]} {
    %c8_i32 = arith.constant 8 : i32
    %0 = arith.muli %arg1, %c8_i32 : i32
    "tpu.region"() ({
      %101 = tpu.sem_alloc : memref<!tpu.dma_semaphore, #tpu.memory_space<semaphore_mem>>
      %c0_i32_101 = arith.constant 0 : i32
      %c0_i32_102 = arith.constant 0 : i32
      %102 = tpu.memref_slice %arg4[%arg0, %0, %c0_i32_101, %c0_i32_102] : memref<2x10x10x128xf32, #tpu.memory_space<any>> -> memref<1x10x10x128xf32, #tpu.memory_space<any>>
      %103 = tpu.memref_squeeze %102 : memref<1x10x10x128xf32, #tpu.memory_space<any>> -> memref<10x10x128xf32, #tpu.memory_space<any>>
      tpu.enqueue_dma source(%103 : memref<10x10x128xf32, #tpu.memory_space<any>>) target(%arg7 : memref<10x10x128xf32, #tpu.memory_space<vmem>>) target_semaphore(%101 : memref<!tpu.dma_semaphore, #tpu.memory_space<semaphore_mem>>)
      %c0_i32_103 = arith.constant 0 : i32
      %c0_i32_104 = arith.constant 0 : i32
      %104 = tpu.memref_slice %arg4[%arg0, %0, %c0_i32_103, %c0_i32_104] : memref<2x10x10x128xf32, #tpu.memory_space<any>> -> memref<1x10x10x128xf32, #tpu.memory_space<any>>
      %105 = tpu.memref_squeeze %104 : memref<1x10x10x128xf32, #tpu.memory_space<any>> -> memref<10x10x128xf32, #tpu.memory_space<any>>
      tpu.wait_dma2 semaphore(%101 : memref<!tpu.dma_semaphore, #tpu.memory_space<semaphore_mem>>) src(%105 : memref<10x10x128xf32, #tpu.memory_space<any>>) dst(%arg7 : memref<10x10x128xf32, #tpu.memory_space<vmem>>)
      tpu.yield
    }) : () -> ()
    %c0 = arith.constant 0 : index
    %c0_0 = arith.constant 0 : index
    %1 = vector.load %arg2[%c0, %c0_0] : memref<2x128xf32, #tpu.memory_space<vmem>>, vector<1x128xf32>
    %2 = vector.shape_cast %1 : vector<1x128xf32> to vector<1x1x128xf32>
    %c1 = arith.constant 1 : index
    %c0_1 = arith.constant 0 : index
    %3 = vector.load %arg2[%c1, %c0_1] : memref<2x128xf32, #tpu.memory_space<vmem>>, vector<1x128xf32>
    %4 = vector.shape_cast %3 : vector<1x128xf32> to vector<1x1x128xf32>
    %c0_2 = arith.constant 0 : index
    %c0_3 = arith.constant 0 : index
    %c0_4 = arith.constant 0 : index
    %5 = vector.load %arg7[%c0_2, %c0_3, %c0_4] : memref<10x10x128xf32, #tpu.memory_space<vmem>>, vector<10x10x128xf32>
    %6 = vector.broadcast %2 : vector<1x1x128xf32> to vector<10x10x128xf32>
    %7 = arith.mulf %5, %6 : vector<10x10x128xf32>
    %8 = vector.broadcast %4 : vector<1x1x128xf32> to vector<10x10x128xf32>
    %9 = arith.addf %7, %8 : vector<10x10x128xf32>
    %cst = arith.constant 0.000000e+00 : f32
    %10 = vector.broadcast %cst : f32 to vector<10x10x128xf32>
    %11 = arith.maximumf %9, %10 : vector<10x10x128xf32>
    %c0_5 = arith.constant 0 : index
    %c0_6 = arith.constant 0 : index
    %c0_7 = arith.constant 0 : index
    %12 = vector.load %arg7[%c0_5, %c0_6, %c0_7] : memref<10x10x128xf32, #tpu.memory_space<vmem>>, vector<10x10x128xf32>
    tpu.vector_store %arg7[%c0_5, %c0_6, %c0_7], %11 {strides = array<i32>} : memref<10x10x128xf32, #tpu.memory_space<vmem>>, vector<10x10x128xf32>,
    %cst_8 = arith.constant 0.000000e+00 : f32
    %13 = vector.broadcast %cst_8 : f32 to vector<10x1x128xf32>
    %c0_9 = arith.constant 0 : index
    %c0_10 = arith.constant 0 : index
    %c0_11 = arith.constant 0 : index
    %14 = vector.load %arg7[%c0_9, %c0_10, %c0_11] : memref<10x10x128xf32, #tpu.memory_space<vmem>>, vector<10x1x128xf32>
    tpu.vector_store %arg7[%c0_9, %c0_10, %c0_11], %13 {strides = array<i32>} : memref<10x10x128xf32, #tpu.memory_space<vmem>>, vector<10x1x128xf32>,
    %c0_12 = arith.constant 0 : index
    %c9 = arith.constant 9 : index
    %c0_13 = arith.constant 0 : index
    %15 = vector.load %arg7[%c0_12, %c9, %c0_13] : memref<10x10x128xf32, #tpu.memory_space<vmem>>, vector<10x1x128xf32>
    tpu.vector_store %arg7[%c0_12, %c9, %c0_13], %13 {strides = array<i32>} : memref<10x10x128xf32, #tpu.memory_space<vmem>>, vector<10x1x128xf32>,
    %cst_14 = arith.constant 0.000000e+00 : f32
    %16 = vector.broadcast %cst_14 : f32 to vector<1x10x128xf32>
    %c0_i32 = arith.constant 0 : i32
    %17 = arith.cmpi eq, %arg1, %c0_i32 : i32
    %18 = arith.extui %17 : i1 to i32
    %c0_i32_15 = arith.constant 0 : i32
    %19 = arith.cmpi ne, %18, %c0_i32_15 : i32
    scf.if %19 {
      %c0_101 = arith.constant 0 : index
      %c0_102 = arith.constant 0 : index
      %c0_103 = arith.constant 0 : index
      %101 = vector.load %arg7[%c0_101, %c0_102, %c0_103] : memref<10x10x128xf32, #tpu.memory_space<vmem>>, vector<1x10x128xf32>
      tpu.vector_store %arg7[%c0_101, %c0_102, %c0_103], %16 {strides = array<i32>} : memref<10x10x128xf32, #tpu.memory_space<vmem>>, vector<1x10x128xf32>,
    } else {
    }
    %c0_i32_16 = arith.constant 0 : i32
    %20 = arith.cmpi eq, %arg1, %c0_i32_16 : i32
    %21 = arith.extui %20 : i1 to i32
    %c0_i32_17 = arith.constant 0 : i32
    %22 = arith.cmpi ne, %21, %c0_i32_17 : i32
    scf.if %22 {
      %c9_101 = arith.constant 9 : index
      %c0_102 = arith.constant 0 : index
      %c0_103 = arith.constant 0 : index
      %101 = vector.load %arg7[%c9_101, %c0_102, %c0_103] : memref<10x10x128xf32, #tpu.memory_space<vmem>>, vector<1x10x128xf32>
      tpu.vector_store %arg7[%c9_101, %c0_102, %c0_103], %16 {strides = array<i32>} : memref<10x10x128xf32, #tpu.memory_space<vmem>>, vector<1x10x128xf32>,
    } else {
    }
    %cst_18 = arith.constant 0.000000e+00 : f32
    %23 = vector.broadcast %cst_18 : f32 to vector<64x128xf32>
    %c0_19 = arith.constant 0 : index
    %c0_20 = arith.constant 0 : index
    %c0_21 = arith.constant 0 : index
    %24 = vector.load %arg7[%c0_19, %c0_20, %c0_21] : memref<10x10x128xf32, #tpu.memory_space<vmem>>, vector<8x8x128xf32>
    %25 = vector.shape_cast %24 : vector<8x8x128xf32> to vector<64x128xf32>
    %26 = arith.truncf %25 : vector<64x128xf32> to vector<64x128xbf16>
    %c0_22 = arith.constant 0 : index
    %c0_23 = arith.constant 0 : index
    %c0_24 = arith.constant 0 : index
    %c0_25 = arith.constant 0 : index
    %27 = vector.load %arg3[%c0_22, %c0_23, %c0_24, %c0_25] : memref<3x3x128x128xbf16, #tpu.memory_space<vmem>>, vector<1x1x128x128xbf16>
    %28 = vector.shape_cast %27 : vector<1x1x128x128xbf16> to vector<128x128xbf16>
    %cst_26 = arith.constant dense<0.000000e+00> : vector<64x128xf32>
    %29 = tpu.matmul %26, %28, %cst_26 {dimension_numbers = #tpu.dot_dimension_numbers<[1], [0], [0], [1], [0, 0, 1, 1], [], []>} : vector<64x128xbf16>, vector<128x128xbf16>, vector<64x128xf32> -> vector<64x128xf32>
    %30 = arith.addf %23, %29 : vector<64x128xf32>
    %c0_27 = arith.constant 0 : index
    %c1_28 = arith.constant 1 : index
    %c0_29 = arith.constant 0 : index
    %31 = vector.load %arg7[%c0_27, %c1_28, %c0_29] : memref<10x10x128xf32, #tpu.memory_space<vmem>>, vector<8x8x128xf32>
    %32 = vector.shape_cast %31 : vector<8x8x128xf32> to vector<64x128xf32>
    %33 = arith.truncf %32 : vector<64x128xf32> to vector<64x128xbf16>
    %c0_30 = arith.constant 0 : index
    %c1_31 = arith.constant 1 : index
    %c0_32 = arith.constant 0 : index
    %c0_33 = arith.constant 0 : index
    %34 = vector.load %arg3[%c0_30, %c1_31, %c0_32, %c0_33] : memref<3x3x128x128xbf16, #tpu.memory_space<vmem>>, vector<1x1x128x128xbf16>
    %35 = vector.shape_cast %34 : vector<1x1x128x128xbf16> to vector<128x128xbf16>
    %cst_34 = arith.constant dense<0.000000e+00> : vector<64x128xf32>
    %36 = tpu.matmul %33, %35, %cst_34 {dimension_numbers = #tpu.dot_dimension_numbers<[1], [0], [0], [1], [0, 0, 1, 1], [], []>} : vector<64x128xbf16>, vector<128x128xbf16>, vector<64x128xf32> -> vector<64x128xf32>
    %37 = arith.addf %30, %36 : vector<64x128xf32>
    %c0_35 = arith.constant 0 : index
    %c2 = arith.constant 2 : index
    %c0_36 = arith.constant 0 : index
    %38 = vector.load %arg7[%c0_35, %c2, %c0_36] : memref<10x10x128xf32, #tpu.memory_space<vmem>>, vector<8x8x128xf32>
    %39 = vector.shape_cast %38 : vector<8x8x128xf32> to vector<64x128xf32>
    %40 = arith.truncf %39 : vector<64x128xf32> to vector<64x128xbf16>
    %c0_37 = arith.constant 0 : index
    %c2_38 = arith.constant 2 : index
    %c0_39 = arith.constant 0 : index
    %c0_40 = arith.constant 0 : index
    %41 = vector.load %arg3[%c0_37, %c2_38, %c0_39, %c0_40] : memref<3x3x128x128xbf16, #tpu.memory_space<vmem>>, vector<1x1x128x128xbf16>
    %42 = vector.shape_cast %41 : vector<1x1x128x128xbf16> to vector<128x128xbf16>
    %cst_41 = arith.constant dense<0.000000e+00> : vector<64x128xf32>
    %43 = tpu.matmul %40, %42, %cst_41 {dimension_numbers = #tpu.dot_dimension_numbers<[1], [0], [0], [1], [0, 0, 1, 1], [], []>} : vector<64x128xbf16>, vector<128x128xbf16>, vector<64x128xf32> -> vector<64x128xf32>
    %44 = arith.addf %37, %43 : vector<64x128xf32>
    %c1_42 = arith.constant 1 : index
    %c0_43 = arith.constant 0 : index
    %c0_44 = arith.constant 0 : index
    %45 = vector.load %arg7[%c1_42, %c0_43, %c0_44] : memref<10x10x128xf32, #tpu.memory_space<vmem>>, vector<8x8x128xf32>
    %46 = vector.shape_cast %45 : vector<8x8x128xf32> to vector<64x128xf32>
    %47 = arith.truncf %46 : vector<64x128xf32> to vector<64x128xbf16>
    %c1_45 = arith.constant 1 : index
    %c0_46 = arith.constant 0 : index
    %c0_47 = arith.constant 0 : index
    %c0_48 = arith.constant 0 : index
    %48 = vector.load %arg3[%c1_45, %c0_46, %c0_47, %c0_48] : memref<3x3x128x128xbf16, #tpu.memory_space<vmem>>, vector<1x1x128x128xbf16>
    %49 = vector.shape_cast %48 : vector<1x1x128x128xbf16> to vector<128x128xbf16>
    %cst_49 = arith.constant dense<0.000000e+00> : vector<64x128xf32>
    %50 = tpu.matmul %47, %49, %cst_49 {dimension_numbers = #tpu.dot_dimension_numbers<[1], [0], [0], [1], [0, 0, 1, 1], [], []>} : vector<64x128xbf16>, vector<128x128xbf16>, vector<64x128xf32> -> vector<64x128xf32>
    %51 = arith.addf %44, %50 : vector<64x128xf32>
    %c1_50 = arith.constant 1 : index
    %c1_51 = arith.constant 1 : index
    %c0_52 = arith.constant 0 : index
    %52 = vector.load %arg7[%c1_50, %c1_51, %c0_52] : memref<10x10x128xf32, #tpu.memory_space<vmem>>, vector<8x8x128xf32>
    %53 = vector.shape_cast %52 : vector<8x8x128xf32> to vector<64x128xf32>
    %54 = arith.truncf %53 : vector<64x128xf32> to vector<64x128xbf16>
    %c1_53 = arith.constant 1 : index
    %c1_54 = arith.constant 1 : index
    %c0_55 = arith.constant 0 : index
    %c0_56 = arith.constant 0 : index
    %55 = vector.load %arg3[%c1_53, %c1_54, %c0_55, %c0_56] : memref<3x3x128x128xbf16, #tpu.memory_space<vmem>>, vector<1x1x128x128xbf16>
    %56 = vector.shape_cast %55 : vector<1x1x128x128xbf16> to vector<128x128xbf16>
    %cst_57 = arith.constant dense<0.000000e+00> : vector<64x128xf32>
    %57 = tpu.matmul %54, %56, %cst_57 {dimension_numbers = #tpu.dot_dimension_numbers<[1], [0], [0], [1], [0, 0, 1, 1], [], []>} : vector<64x128xbf16>, vector<128x128xbf16>, vector<64x128xf32> -> vector<64x128xf32>
    %58 = arith.addf %51, %57 : vector<64x128xf32>
    %c1_58 = arith.constant 1 : index
    %c2_59 = arith.constant 2 : index
    %c0_60 = arith.constant 0 : index
    %59 = vector.load %arg7[%c1_58, %c2_59, %c0_60] : memref<10x10x128xf32, #tpu.memory_space<vmem>>, vector<8x8x128xf32>
    %60 = vector.shape_cast %59 : vector<8x8x128xf32> to vector<64x128xf32>
    %61 = arith.truncf %60 : vector<64x128xf32> to vector<64x128xbf16>
    %c1_61 = arith.constant 1 : index
    %c2_62 = arith.constant 2 : index
    %c0_63 = arith.constant 0 : index
    %c0_64 = arith.constant 0 : index
    %62 = vector.load %arg3[%c1_61, %c2_62, %c0_63, %c0_64] : memref<3x3x128x128xbf16, #tpu.memory_space<vmem>>, vector<1x1x128x128xbf16>
    %63 = vector.shape_cast %62 : vector<1x1x128x128xbf16> to vector<128x128xbf16>
    %cst_65 = arith.constant dense<0.000000e+00> : vector<64x128xf32>
    %64 = tpu.matmul %61, %63, %cst_65 {dimension_numbers = #tpu.dot_dimension_numbers<[1], [0], [0], [1], [0, 0, 1, 1], [], []>} : vector<64x128xbf16>, vector<128x128xbf16>, vector<64x128xf32> -> vector<64x128xf32>
    %65 = arith.addf %58, %64 : vector<64x128xf32>
    %c2_66 = arith.constant 2 : index
    %c0_67 = arith.constant 0 : index
    %c0_68 = arith.constant 0 : index
    %66 = vector.load %arg7[%c2_66, %c0_67, %c0_68] : memref<10x10x128xf32, #tpu.memory_space<vmem>>, vector<8x8x128xf32>
    %67 = vector.shape_cast %66 : vector<8x8x128xf32> to vector<64x128xf32>
    %68 = arith.truncf %67 : vector<64x128xf32> to vector<64x128xbf16>
    %c2_69 = arith.constant 2 : index
    %c0_70 = arith.constant 0 : index
    %c0_71 = arith.constant 0 : index
    %c0_72 = arith.constant 0 : index
    %69 = vector.load %arg3[%c2_69, %c0_70, %c0_71, %c0_72] : memref<3x3x128x128xbf16, #tpu.memory_space<vmem>>, vector<1x1x128x128xbf16>
    %70 = vector.shape_cast %69 : vector<1x1x128x128xbf16> to vector<128x128xbf16>
    %cst_73 = arith.constant dense<0.000000e+00> : vector<64x128xf32>
    %71 = tpu.matmul %68, %70, %cst_73 {dimension_numbers = #tpu.dot_dimension_numbers<[1], [0], [0], [1], [0, 0, 1, 1], [], []>} : vector<64x128xbf16>, vector<128x128xbf16>, vector<64x128xf32> -> vector<64x128xf32>
    %72 = arith.addf %65, %71 : vector<64x128xf32>
    %c2_74 = arith.constant 2 : index
    %c1_75 = arith.constant 1 : index
    %c0_76 = arith.constant 0 : index
    %73 = vector.load %arg7[%c2_74, %c1_75, %c0_76] : memref<10x10x128xf32, #tpu.memory_space<vmem>>, vector<8x8x128xf32>
    %74 = vector.shape_cast %73 : vector<8x8x128xf32> to vector<64x128xf32>
    %75 = arith.truncf %74 : vector<64x128xf32> to vector<64x128xbf16>
    %c2_77 = arith.constant 2 : index
    %c1_78 = arith.constant 1 : index
    %c0_79 = arith.constant 0 : index
    %c0_80 = arith.constant 0 : index
    %76 = vector.load %arg3[%c2_77, %c1_78, %c0_79, %c0_80] : memref<3x3x128x128xbf16, #tpu.memory_space<vmem>>, vector<1x1x128x128xbf16>
    %77 = vector.shape_cast %76 : vector<1x1x128x128xbf16> to vector<128x128xbf16>
    %cst_81 = arith.constant dense<0.000000e+00> : vector<64x128xf32>
    %78 = tpu.matmul %75, %77, %cst_81 {dimension_numbers = #tpu.dot_dimension_numbers<[1], [0], [0], [1], [0, 0, 1, 1], [], []>} : vector<64x128xbf16>, vector<128x128xbf16>, vector<64x128xf32> -> vector<64x128xf32>
    %79 = arith.addf %72, %78 : vector<64x128xf32>
    %c2_82 = arith.constant 2 : index
    %c2_83 = arith.constant 2 : index
    %c0_84 = arith.constant 0 : index
    %80 = vector.load %arg7[%c2_82, %c2_83, %c0_84] : memref<10x10x128xf32, #tpu.memory_space<vmem>>, vector<8x8x128xf32>
    %81 = vector.shape_cast %80 : vector<8x8x128xf32> to vector<64x128xf32>
    %82 = arith.truncf %81 : vector<64x128xf32> to vector<64x128xbf16>
    %c2_85 = arith.constant 2 : index
    %c2_86 = arith.constant 2 : index
    %c0_87 = arith.constant 0 : index
    %c0_88 = arith.constant 0 : index
    %83 = vector.load %arg3[%c2_85, %c2_86, %c0_87, %c0_88] : memref<3x3x128x128xbf16, #tpu.memory_space<vmem>>, vector<1x1x128x128xbf16>
    %84 = vector.shape_cast %83 : vector<1x1x128x128xbf16> to vector<128x128xbf16>
    %cst_89 = arith.constant dense<0.000000e+00> : vector<64x128xf32>
    %85 = tpu.matmul %82, %84, %cst_89 {dimension_numbers = #tpu.dot_dimension_numbers<[1], [0], [0], [1], [0, 0, 1, 1], [], []>} : vector<64x128xbf16>, vector<128x128xbf16>, vector<64x128xf32> -> vector<64x128xf32>
    %86 = arith.addf %79, %85 : vector<64x128xf32>
    %c0_90 = arith.constant 0 : index
    %c0_91 = arith.constant 0 : index
    %c0_92 = arith.constant 0 : index
    %87 = vector.load %arg5[%c0_90, %c0_91, %c0_92] : memref<1x64x128xf32, #tpu.memory_space<vmem>>, vector<1x64x128xf32>
    %88 = vector.shape_cast %87 : vector<1x64x128xf32> to vector<64x128xf32>
    %89 = vector.shape_cast %86 : vector<64x128xf32> to vector<1x64x128xf32>
    tpu.vector_store %arg5[%c0_90, %c0_91, %c0_92], %89 {strides = array<i32>} : memref<1x64x128xf32, #tpu.memory_space<vmem>>, vector<1x64x128xf32>,
    %cst_93 = arith.constant dense<0.000000e+00> : vector<128xf32>
    %90 = vector.multi_reduction <add>, %86, %cst_93 [0] : vector<64x128xf32> to vector<128xf32>
    %91 = vector.shape_cast %90 : vector<128xf32> to vector<1x128xf32>
    %c0_94 = arith.constant 0 : index
    %c0_95 = arith.constant 0 : index
    %c0_96 = arith.constant 0 : index
    %92 = vector.load %arg6[%c0_94, %c0_95, %c0_96] : memref<1x2x128xf32, #tpu.memory_space<vmem>>, vector<1x1x128xf32>
    %93 = vector.shape_cast %92 : vector<1x1x128xf32> to vector<1x128xf32>
    %94 = vector.shape_cast %91 : vector<1x128xf32> to vector<1x1x128xf32>
    tpu.vector_store %arg6[%c0_94, %c0_95, %c0_96], %94 {strides = array<i32>} : memref<1x2x128xf32, #tpu.memory_space<vmem>>, vector<1x1x128xf32>,
    %95 = arith.mulf %86, %86 : vector<64x128xf32>
    %cst_97 = arith.constant dense<0.000000e+00> : vector<128xf32>
    %96 = vector.multi_reduction <add>, %95, %cst_97 [0] : vector<64x128xf32> to vector<128xf32>
    %97 = vector.shape_cast %96 : vector<128xf32> to vector<1x128xf32>
    %c0_98 = arith.constant 0 : index
    %c1_99 = arith.constant 1 : index
    %c0_100 = arith.constant 0 : index
    %98 = vector.load %arg6[%c0_98, %c1_99, %c0_100] : memref<1x2x128xf32, #tpu.memory_space<vmem>>, vector<1x1x128xf32>
    %99 = vector.shape_cast %98 : vector<1x1x128xf32> to vector<1x128xf32>
    %100 = vector.shape_cast %97 : vector<1x128xf32> to vector<1x1x128xf32>
    tpu.vector_store %arg6[%c0_98, %c1_99, %c0_100], %100 {strides = array<i32>} : memref<1x2x128xf32, #tpu.memory_space<vmem>>, vector<1x1x128xf32>,
    return
  }
  func.func @transform_0(%arg0: i32, %arg1: i32) -> (i32, i32) {
    %c0_i32 = arith.constant 0 : i32
    %c0_i32_0 = arith.constant 0 : i32
    %c0_i32_1 = arith.constant 0 : i32
    return %c0_i32, %c0_i32_0 : i32, i32
  }
  func.func @transform_1(%arg0: i32, %arg1: i32) -> (i32, i32, i32, i32) {
    %c0_i32 = arith.constant 0 : i32
    %c0_i32_0 = arith.constant 0 : i32
    %c0_i32_1 = arith.constant 0 : i32
    %c0_i32_2 = arith.constant 0 : i32
    %c0_i32_3 = arith.constant 0 : i32
    return %c0_i32, %c0_i32_0, %c0_i32_1, %c0_i32_2 : i32, i32, i32, i32
  }
  func.func @transform_3(%arg0: i32, %arg1: i32) -> (i32, i32, i32) {
    %c1_i32 = arith.constant 1 : i32
    %0 = arith.muli %arg0, %c1_i32 : i32
    %1 = arith.addi %0, %arg1 : i32
    %c0_i32 = arith.constant 0 : i32
    %c0_i32_0 = arith.constant 0 : i32
    %c0_i32_1 = arith.constant 0 : i32
    return %1, %c0_i32, %c0_i32_0 : i32, i32, i32
  }
  func.func @transform_4(%arg0: i32, %arg1: i32) -> (i32, i32, i32) {
    %c1_i32 = arith.constant 1 : i32
    %0 = arith.muli %arg0, %c1_i32 : i32
    %1 = arith.addi %0, %arg1 : i32
    %c0_i32 = arith.constant 0 : i32
    %c0_i32_0 = arith.constant 0 : i32
    %c0_i32_1 = arith.constant 0 : i32
    return %1, %c0_i32, %c0_i32_0 : i32, i32, i32
  }
}

module attributes {stable_mosaic.version = 11 : i64} {
  func.func @affine_relu_conv1x1_stats_kernel(%arg0: i32, %arg1: memref<128x128xf32, #tpu.memory_space<vmem>>, %arg2: memref<2x128xf32, #tpu.memory_space<vmem>>, %arg3: memref<128x128xbf16, #tpu.memory_space<vmem>>, %arg4: memref<128x128xf32, #tpu.memory_space<vmem>>, %arg5: memref<1x2x128xf32, #tpu.memory_space<vmem>>) attributes {dimension_semantics = [#tpu.dimension_semantics<parallel>], iteration_bounds = array<i64: 1>, scalar_prefetch = 0 : i64, scratch_operands = 0 : i64, tpu.core_type = #tpu.core_type<tc>, window_params = [{transform_indices = @transform_0, window_bounds = array<i64: 128, 128>}, {pipeline_mode = #tpu.pipeline_mode<synchronous>, transform_indices = @transform_1, window_bounds = array<i64: 2, 128>}, {pipeline_mode = #tpu.pipeline_mode<synchronous>, transform_indices = @transform_2, window_bounds = array<i64: 128, 128>}, {transform_indices = @transform_3, window_bounds = array<i64: 128, 128>}, {transform_indices = @transform_4, window_bounds = array<i64: 1, 2, 128>}]} {
    %c0 = arith.constant 0 : index
    %c0_0 = arith.constant 0 : index
    %0 = vector.load %arg1[%c0, %c0_0] : memref<128x128xf32, #tpu.memory_space<vmem>>, vector<128x128xf32>
    %c0_1 = arith.constant 0 : index
    %c0_2 = arith.constant 0 : index
    %1 = vector.load %arg2[%c0_1, %c0_2] : memref<2x128xf32, #tpu.memory_space<vmem>>, vector<1x128xf32>
    %2 = vector.broadcast %1 : vector<1x128xf32> to vector<128x128xf32>
    %3 = arith.mulf %0, %2 : vector<128x128xf32>
    %c1 = arith.constant 1 : index
    %c0_3 = arith.constant 0 : index
    %4 = vector.load %arg2[%c1, %c0_3] : memref<2x128xf32, #tpu.memory_space<vmem>>, vector<1x128xf32>
    %5 = vector.broadcast %4 : vector<1x128xf32> to vector<128x128xf32>
    %6 = arith.addf %3, %5 : vector<128x128xf32>
    %cst = arith.constant 0.000000e+00 : f32
    %7 = vector.broadcast %cst : f32 to vector<128x128xf32>
    %8 = arith.maximumf %6, %7 : vector<128x128xf32>
    %9 = arith.truncf %8 : vector<128x128xf32> to vector<128x128xbf16>
    %c0_4 = arith.constant 0 : index
    %c0_5 = arith.constant 0 : index
    %10 = vector.load %arg3[%c0_4, %c0_5] : memref<128x128xbf16, #tpu.memory_space<vmem>>, vector<128x128xbf16>
    %cst_6 = arith.constant dense<0.000000e+00> : vector<128x128xf32>
    %11 = tpu.matmul %9, %10, %cst_6 {dimension_numbers = #tpu.dot_dimension_numbers<[1], [0], [0], [1], [0, 0, 1, 1], [], []>} : vector<128x128xbf16>, vector<128x128xbf16>, vector<128x128xf32> -> vector<128x128xf32>
    %c0_7 = arith.constant 0 : index
    %c0_8 = arith.constant 0 : index
    %12 = vector.load %arg4[%c0_7, %c0_8] : memref<128x128xf32, #tpu.memory_space<vmem>>, vector<128x128xf32>
    tpu.vector_store %arg4[%c0_7, %c0_8], %11 {strides = array<i32>} : memref<128x128xf32, #tpu.memory_space<vmem>>, vector<128x128xf32>,
    %cst_9 = arith.constant dense<0.000000e+00> : vector<128xf32>
    %13 = vector.multi_reduction <add>, %11, %cst_9 [0] : vector<128x128xf32> to vector<128xf32>
    %14 = vector.shape_cast %13 : vector<128xf32> to vector<1x128xf32>
    %c0_10 = arith.constant 0 : index
    %c0_11 = arith.constant 0 : index
    %c0_12 = arith.constant 0 : index
    %15 = vector.load %arg5[%c0_10, %c0_11, %c0_12] : memref<1x2x128xf32, #tpu.memory_space<vmem>>, vector<1x1x128xf32>
    %16 = vector.shape_cast %15 : vector<1x1x128xf32> to vector<1x128xf32>
    %17 = vector.shape_cast %14 : vector<1x128xf32> to vector<1x1x128xf32>
    tpu.vector_store %arg5[%c0_10, %c0_11, %c0_12], %17 {strides = array<i32>} : memref<1x2x128xf32, #tpu.memory_space<vmem>>, vector<1x1x128xf32>,
    %18 = arith.mulf %11, %11 : vector<128x128xf32>
    %cst_13 = arith.constant dense<0.000000e+00> : vector<128xf32>
    %19 = vector.multi_reduction <add>, %18, %cst_13 [0] : vector<128x128xf32> to vector<128xf32>
    %20 = vector.shape_cast %19 : vector<128xf32> to vector<1x128xf32>
    %c0_14 = arith.constant 0 : index
    %c1_15 = arith.constant 1 : index
    %c0_16 = arith.constant 0 : index
    %21 = vector.load %arg5[%c0_14, %c1_15, %c0_16] : memref<1x2x128xf32, #tpu.memory_space<vmem>>, vector<1x1x128xf32>
    %22 = vector.shape_cast %21 : vector<1x1x128xf32> to vector<1x128xf32>
    %23 = vector.shape_cast %20 : vector<1x128xf32> to vector<1x1x128xf32>
    tpu.vector_store %arg5[%c0_14, %c1_15, %c0_16], %23 {strides = array<i32>} : memref<1x2x128xf32, #tpu.memory_space<vmem>>, vector<1x1x128xf32>,
    return
  }
  func.func @transform_0(%arg0: i32) -> (i32, i32) {
    %c0_i32 = arith.constant 0 : i32
    %c0_i32_0 = arith.constant 0 : i32
    return %arg0, %c0_i32 : i32, i32
  }
  func.func @transform_1(%arg0: i32) -> (i32, i32) {
    %c0_i32 = arith.constant 0 : i32
    %c0_i32_0 = arith.constant 0 : i32
    %c0_i32_1 = arith.constant 0 : i32
    return %c0_i32, %c0_i32_0 : i32, i32
  }
  func.func @transform_2(%arg0: i32) -> (i32, i32) {
    %c0_i32 = arith.constant 0 : i32
    %c0_i32_0 = arith.constant 0 : i32
    %c0_i32_1 = arith.constant 0 : i32
    return %c0_i32, %c0_i32_0 : i32, i32
  }
  func.func @transform_3(%arg0: i32) -> (i32, i32) {
    %c0_i32 = arith.constant 0 : i32
    %c0_i32_0 = arith.constant 0 : i32
    return %arg0, %c0_i32 : i32, i32
  }
  func.func @transform_4(%arg0: i32) -> (i32, i32, i32) {
    %c0_i32 = arith.constant 0 : i32
    %c0_i32_0 = arith.constant 0 : i32
    %c0_i32_1 = arith.constant 0 : i32
    return %arg0, %c0_i32, %c0_i32_0 : i32, i32, i32
  }
}

</mosaic_0001>

<llo_original>
// kernel: bottleneck_forward.4
$region0: #{bottleneck_forward.4}
  #allocation0 [shape = 'u32[]', space=smem, size = 0x4, offset = 0x4, fixed_abs, tag = 'smem constant byte address 0x4 - core index']
  #allocation1 [shape = 'u32[144,128]{1,0:T(1,128)}', space=vmem, size = 0x12000, scoped, tag = 'internal scratch']
  %s0 = inlined_call_operand.vmem [shape: f32[128,128], index: 0, kind: input, shape index: {}]
  %s1 = inlined_call_operand.vmem [shape: bf16[128,128], index: 1, kind: input, shape index: {}]
  %s2 = inlined_call_operand.vmem [shape: f32[128,128], index: 2, kind: output, shape index: {0}]
  %s3 = inlined_call_operand.vmem [shape: f32[1,2,128], index: 3, kind: output, shape index: {1}]
  %4 = xla_tuple %s2, %s3
  %s5 = sld [smem:[#allocation0]]
  $region26: #{bottleneck_forward.4} parent=0
    _
  %s7 = ssub.s32 1, %s5
  %s8 = scalar_select 0, %s7, %s5
  // Predicated region
  $region2: #{bottleneck_forward.4} parent=0 // pred_check
    _
  $region3: #{bottleneck_forward.4} parent=0 // pred_check_branch
    %10 = sbr.rel (0) target = $region5
  $region4: #{bottleneck_forward.4} parent=0 // pred_region
    _
  $region5: #{bottleneck_forward.4} parent=0 // pred_fallthru
    _
  // Predicated region
  $region6: #{bottleneck_forward.4} parent=0 // pred_check
    _
  $region7: #{bottleneck_forward.4} parent=0 // pred_check_branch
    %12 = sbr.rel (0) target = $region9
  $region8: #{bottleneck_forward.4} parent=0 // pred_region
    _
  $region9: #{bottleneck_forward.4} parent=0 // pred_fallthru
    _
  %v14 = vld [vmem:[%s0] sm:$0xff]
  %v15 = vld [vmem:[%s0 + $0x8] sm:$0xff]
  %v16 = vld [vmem:[%s0 + $0x10] sm:$0xff]
  %v17 = vld [vmem:[%s0 + $0x18] sm:$0xff]
  %v18 = vld [vmem:[%s0 + $0x20] sm:$0xff]
  %v19 = vld [vmem:[%s0 + $0x28] sm:$0xff]
  %v20 = vld [vmem:[%s0 + $0x30] sm:$0xff]
  %v21 = vld [vmem:[%s0 + $0x38] sm:$0xff]
  %v22 = vld [vmem:[%s0 + $0x40] sm:$0xff]
  %v23 = vld [vmem:[%s0 + $0x48] sm:$0xff]
  %v24 = vld [vmem:[%s0 + $0x50] sm:$0xff]
  %v25 = vld [vmem:[%s0 + $0x58] sm:$0xff]
  %v26 = vld [vmem:[%s0 + $0x60] sm:$0xff]
  %v27 = vld [vmem:[%s0 + $0x68] sm:$0xff]
  %v28 = vld [vmem:[%s0 + $0x70] sm:$0xff]
  %v29 = vld [vmem:[%s0 + $0x78] sm:$0xff]
  %v30 = vpack.c.bf16 %v15, %v14
  %v31 = vpack.c.bf16 %v17, %v16
  %v32 = vpack.c.bf16 %v19, %v18
  %v33 = vpack.c.bf16 %v21, %v20
  %v34 = vpack.c.bf16 %v23, %v22
  %v35 = vpack.c.bf16 %v25, %v24
  %v36 = vpack.c.bf16 %v27, %v26
  %v37 = vpack.c.bf16 %v29, %v28
  %v38 = vld [vmem:[%s1] sm:$0xf]
  %v39 = vld [vmem:[%s1 + $0x4] sm:$0xf]
  %v40 = vld [vmem:[%s1 + $0x8] sm:$0xf]
  %v41 = vld [vmem:[%s1 + $0xc] sm:$0xf]
  %v42 = vld [vmem:[%s1 + $0x10] sm:$0xf]
  %v43 = vld [vmem:[%s1 + $0x14] sm:$0xf]
  %v44 = vld [vmem:[%s1 + $0x18] sm:$0xf]
  %v45 = vld [vmem:[%s1 + $0x1c] sm:$0xf]
  %v46 = vld [vmem:[%s1 + $0x20] sm:$0xf]
  %v47 = vld [vmem:[%s1 + $0x24] sm:$0xf]
  %v48 = vld [vmem:[%s1 + $0x28] sm:$0xf]
  %v49 = vld [vmem:[%s1 + $0x2c] sm:$0xf]
  %v50 = vld [vmem:[%s1 + $0x30] sm:$0xf]
  %v51 = vld [vmem:[%s1 + $0x34] sm:$0xf]
  %v52 = vld [vmem:[%s1 + $0x38] sm:$0xf]
  %v53 = vld [vmem:[%s1 + $0x3c] sm:$0xf]
  %v70 = vunpack.c.l.b16 %v38
  %v71 = vunpack.c.l.b16 %v39
  %v72 = vunpack.c.l.b16 %v40
  %v73 = vunpack.c.l.b16 %v41
  %v74 = vunpack.c.l.b16 %v42
  %v75 = vunpack.c.l.b16 %v43
  %v76 = vunpack.c.l.b16 %v44
  %v77 = vunpack.c.l.b16 %v45
  %v78 = vunpack.c.l.b16 %v46
  %v79 = vunpack.c.l.b16 %v47
  %v80 = vunpack.c.l.b16 %v48
  %v81 = vunpack.c.l.b16 %v49
  %v82 = vunpack.c.l.b16 %v50
  %v83 = vunpack.c.l.b16 %v51
  %v84 = vunpack.c.l.b16 %v52
  %v85 = vunpack.c.l.b16 %v53
  %v86 = vpack.c.b16 %v71, %v70
  %v87 = vpack.c.b16 %v73, %v72
  %v88 = vpack.c.b16 %v75, %v74
  %v89 = vpack.c.b16 %v77, %v76
  %v90 = vpack.c.b16 %v79, %v78
  %v91 = vpack.c.b16 %v81, %v80
  %v92 = vpack.c.b16 %v83, %v82
  %v93 = vpack.c.b16 %v85, %v84
  %102 = vmatprep.subr.bf16.mxu0 0
  %103 = vmatpush1.bf16.msra.mxu0 %v93
  %104 = vmatprep.subr.bf16.mxu0 0
  %105 = vmatpush1.bf16.msra.mxu0 %v92
  %106 = vmatprep.subr.bf16.mxu0 0
  %107 = vmatpush1.bf16.msra.mxu0 %v91
  %108 = vmatprep.subr.bf16.mxu0 0
  %109 = vmatpush1.bf16.msra.mxu0 %v90
  %110 = vmatprep.subr.bf16.mxu0 0
  %111 = vmatpush1.bf16.msra.mxu0 %v89
  %112 = vmatprep.subr.bf16.mxu0 0
  %113 = vmatpush1.bf16.msra.mxu0 %v88
  %114 = vmatprep.subr.bf16.mxu0 0
  %115 = vmatpush1.bf16.msra.mxu0 %v87
  %116 = vmatprep.subr.bf16.mxu0 0
  %117 = vmatpush1.bf16.msra.mxu0 %v86
  %118 = vmatprep.subr.bf16.mxu0 0
  %119 = vmatpush2.bf16.msra.mxu0 0
  %120 = vmatprep.subr.bf16.mxu0 0
  %121 = vmatpush2.bf16.msra.mxu0 0
  %122 = vmatprep.subr.bf16.mxu0 0
  %123 = vmatpush2.bf16.msra.mxu0 0
  %124 = vmatprep.subr.bf16.mxu0 0
  %125 = vmatpush2.bf16.msra.mxu0 0
  %126 = vmatprep.subr.bf16.mxu0 0
  %127 = vmatpush2.bf16.msra.mxu0 0
  %128 = vmatprep.subr.bf16.mxu0 0
  %129 = vmatpush2.bf16.msra.mxu0 0
  %130 = vmatprep.subr.bf16.mxu0 0
  %131 = vmatpush2.bf16.msra.mxu0 0
  %132 = vmatprep.subr.bf16.mxu0 0
  %133 = vmatpush2.bf16.msra.mxu0 0
  %134 = vmatprep.mubr.bf16.mxu0 0
  %135 = vmatmul.mubr.bf16.gmra.mxu0 %v30
  %v136 = vpop.f32.mrf.mxu0
  %v137 = vadd.f32 0.0, %v136
  %v138 = vpop.f32.mrf.mxu0
  %v139 = vpop.f32.mrf.mxu0
  %v140 = vadd.f32 0.0, %v139
  %v141 = vpop.f32.mrf.mxu0
  %142 = vmatprep.mubr.bf16.mxu0 0
  %143 = vmatmul.mubr.bf16.gmra.mxu0 %v31
  %v144 = vpop.f32.mrf.mxu0
  %v145 = vadd.f32 0.0, %v144
  %v146 = vpop.f32.mrf.mxu0
  %v147 = vpop.f32.mrf.mxu0
  %v148 = vadd.f32 0.0, %v147
  %v149 = vpop.f32.mrf.mxu0
  %150 = vmatprep.mubr.bf16.mxu0 0
  %151 = vmatmul.mubr.bf16.gmra.mxu0 %v32
  %v152 = vpop.f32.mrf.mxu0
  %v153 = vadd.f32 0.0, %v152
  %v154 = vpop.f32.mrf.mxu0
  %v155 = vpop.f32.mrf.mxu0
  %v156 = vadd.f32 0.0, %v155
  %v157 = vpop.f32.mrf.mxu0
  %158 = vmatprep.mubr.bf16.mxu0 0
  %159 = vmatmul.mubr.bf16.gmra.mxu0 %v33
  %v160 = vpop.f32.mrf.mxu0
  %v161 = vadd.f32 0.0, %v160
  %v162 = vpop.f32.mrf.mxu0
  %v163 = vpop.f32.mrf.mxu0
  %v164 = vadd.f32 0.0, %v163
  %v165 = vpop.f32.mrf.mxu0
  %166 = vmatprep.mubr.bf16.mxu0 0
  %167 = vmatmul.mubr.bf16.gmra.mxu0 %v34
  %v168 = vpop.f32.mrf.mxu0
  %v169 = vadd.f32 0.0, %v168
  %v170 = vpop.f32.mrf.mxu0
  %v171 = vpop.f32.mrf.mxu0
  %v172 = vadd.f32 0.0, %v171
  %v173 = vpop.f32.mrf.mxu0
  %174 = vmatprep.mubr.bf16.mxu0 0
  %175 = vmatmul.mubr.bf16.gmra.mxu0 %v35
  %v176 = vpop.f32.mrf.mxu0
  %v177 = vadd.f32 0.0, %v176
  %v178 = vpop.f32.mrf.mxu0
  %v179 = vpop.f32.mrf.mxu0
  %v180 = vadd.f32 0.0, %v179
  %v181 = vpop.f32.mrf.mxu0
  %182 = vmatprep.mubr.bf16.mxu0 0
  %183 = vmatmul.mubr.bf16.gmra.mxu0 %v36
  %v184 = vpop.f32.mrf.mxu0
  %v185 = vadd.f32 0.0, %v184
  %v186 = vpop.f32.mrf.mxu0
  %v187 = vpop.f32.mrf.mxu0
  %v188 = vadd.f32 0.0, %v187
  %v189 = vpop.f32.mrf.mxu0
  %190 = vmatprep.mubr.bf16.mxu0 0
  %191 = vmatmul.mubr.bf16.gmra.mxu0 %v37
  %v192 = vpop.f32.mrf.mxu0
  %v193 = vadd.f32 0.0, %v192
  %v194 = vpop.f32.mrf.mxu0
  %v195 = vpop.f32.mrf.mxu0
  %v196 = vadd.f32 0.0, %v195
  %v197 = vpop.f32.mrf.mxu0
  %198 = vdwg.mxu0
  %199 = vst [vmem:[%s2] sm:$0xff] %v137
  %200 = vst [vmem:[%s2 + $0x8] sm:$0xff] %v140
  %201 = vst [vmem:[%s2 + $0x10] sm:$0xff] %v145
  %202 = vst [vmem:[%s2 + $0x18] sm:$0xff] %v148
  %203 = vst [vmem:[%s2 + $0x20] sm:$0xff] %v153
  %204 = vst [vmem:[%s2 + $0x28] sm:$0xff] %v156
  %205 = vst [vmem:[%s2 + $0x30] sm:$0xff] %v161
  %206 = vst [vmem:[%s2 + $0x38] sm:$0xff] %v164
  %207 = vst [vmem:[%s2 + $0x40] sm:$0xff] %v169
  %208 = vst [vmem:[%s2 + $0x48] sm:$0xff] %v172
  %209 = vst [vmem:[%s2 + $0x50] sm:$0xff] %v177
  %210 = vst [vmem:[%s2 + $0x58] sm:$0xff] %v180
  %211 = vst [vmem:[%s2 + $0x60] sm:$0xff] %v185
  %212 = vst [vmem:[%s2 + $0x68] sm:$0xff] %v188
  %213 = vst [vmem:[%s2 + $0x70] sm:$0xff] %v193
  %214 = vst [vmem:[%s2 + $0x78] sm:$0xff] %v196
  %v215 = vadd.f32 %v137, %v140
  %v216 = vadd.f32 %v215, %v145
  %v217 = vadd.f32 %v216, %v148
  %v218 = vadd.f32 %v217, %v153
  %v219 = vadd.f32 %v218, %v156
  %v220 = vadd.f32 %v219, %v161
  %v221 = vadd.f32 %v220, %v164
  %v222 = vadd.f32 %v221, %v169
  %v223 = vadd.f32 %v222, %v172
  %v224 = vadd.f32 %v223, %v177
  %v225 = vadd.f32 %v224, %v180
  %v226 = vadd.f32 %v225, %v185
  %v227 = vadd.f32 %v226, %v188
  %v228 = vadd.f32 %v227, %v193
  %v229 = vadd.f32 %v228, %v196
  %v230 = vrot.slane %v229, 4
  %v231 = vadd.f32 %v229, %v230
  %v232 = vrot.slane %v231, 2
  %v233 = vadd.f32 %v231, %v232
  %v234 = vrot.slane %v233, 1
  %v235 = vadd.f32 %v233, %v234
  %236 = vst [vmem:[%s3] sm:$0x1] %v235
  %v237 = vmul.f32 %v137, %v137
  %v238 = vmul.f32 %v140, %v140
  %v239 = vmul.f32 %v145, %v145
  %v240 = vmul.f32 %v148, %v148
  %v241 = vmul.f32 %v153, %v153
  %v242 = vmul.f32 %v156, %v156
  %v243 = vmul.f32 %v161, %v161
  %v244 = vmul.f32 %v164, %v164
  %v245 = vmul.f32 %v169, %v169
  %v246 = vmul.f32 %v172, %v172
  %v247 = vmul.f32 %v177, %v177
  %v248 = vmul.f32 %v180, %v180
  %v249 = vmul.f32 %v185, %v185
  %v250 = vmul.f32 %v188, %v188
  %v251 = vmul.f32 %v193, %v193
  %v252 = vmul.f32 %v196, %v196
  %v253 = vadd.f32 %v237, %v238
  %v254 = vadd.f32 %v253, %v239
  %v255 = vadd.f32 %v254, %v240
  %v256 = vadd.f32 %v255, %v241
  %v257 = vadd.f32 %v256, %v242
  %v258 = vadd.f32 %v257, %v243
  %v259 = vadd.f32 %v258, %v244
  %v260 = vadd.f32 %v259, %v245
  %v261 = vadd.f32 %v260, %v246
  %v262 = vadd.f32 %v261, %v247
  %v263 = vadd.f32 %v262, %v248
  %v264 = vadd.f32 %v263, %v249
  %v265 = vadd.f32 %v264, %v250
  %v266 = vadd.f32 %v265, %v251
  %v267 = vadd.f32 %v266, %v252
  %v268 = vrot.slane %v267, 4
  %v269 = vadd.f32 %v267, %v268
  %v270 = vrot.slane %v269, 2
  %v271 = vadd.f32 %v269, %v270
  %v272 = vrot.slane %v271, 1
  %v273 = vadd.f32 %v271, %v272
  %274 = vst [vmem:[%s3 + $0x1] sm:$0x1] %v273
  // Predicated region
  $region10: #{bottleneck_forward.4} parent=0 // pred_check
    _
  $region11: #{bottleneck_forward.4} parent=0 // pred_check_branch
    %276 = sbr.rel (0) target = $region13
  $region12: #{bottleneck_forward.4} parent=0 // pred_region
    _
  $region13: #{bottleneck_forward.4} parent=0 // pred_fallthru
    _
  // Predicated region
  $region14: #{bottleneck_forward.4} parent=0 // pred_check
    _
  $region15: #{bottleneck_forward.4} parent=0 // pred_check_branch
    %278 = sbr.rel (0) target = $region17
  $region16: #{bottleneck_forward.4} parent=0 // pred_region
    _
  $region17: #{bottleneck_forward.4} parent=0 // pred_fallthru
    _
  // Predicated region
  $region18: #{bottleneck_forward.4} parent=0 // pred_check
    _
  $region19: #{bottleneck_forward.4} parent=0 // pred_check_branch
    %280 = sbr.rel (0) target = $region21
  $region20: #{bottleneck_forward.4} parent=0 // pred_region
    _
  $region21: #{bottleneck_forward.4} parent=0 // pred_fallthru
    _
  // Predicated region
  $region22: #{bottleneck_forward.4} parent=0 // pred_check
    _
  $region23: #{bottleneck_forward.4} parent=0 // pred_check_branch
    %282 = sbr.rel (0) target = $region25
  $region24: #{bottleneck_forward.4} parent=0 // pred_region
    _
  $region25: #{bottleneck_forward.4} parent=0 // pred_fallthru
    _

// kernel: bottleneck_forward.7
$region0: #{bottleneck_forward.7}
  #allocation0 [shape = 'u32[]', space=smem, size = 0x4, offset = 0x4, fixed_abs, tag = 'smem constant byte address 0x4 - core index']
  #allocation1 [shape = 'u32[144,128]{1,0:T(1,128)}', space=vmem, size = 0x12000, scoped, tag = 'internal scratch']
  %s0 = inlined_call_operand.vmem [shape: f32[128,128], index: 0, kind: input, shape index: {}]
  %s1 = inlined_call_operand.vmem [shape: f32[128,128], index: 1, kind: input, shape index: {}]
  %s2 = inlined_call_operand.vmem [shape: f32[2,128], index: 2, kind: input, shape index: {}]
  %s3 = inlined_call_operand.hbm [shape: f32[128,128], index: 3, kind: output, shape index: {}]
  %s4 = sld [smem:[#allocation0]]
  $region22: #{bottleneck_forward.7} parent=0
    _
  %s6 = ssub.s32 1, %s4
  %s7 = scalar_select 0, %s6, %s4
  $region1: #{bottleneck_forward.7} parent=0
    #allocation2 [shape = 'u8[65536]{0}', space=vmem, size = 0x10000, scoped, tag = 'output window, operand 0, single buffered']
    #allocation3 [shape = 's32[1]{0}', space=sflag, size = 0x4, scoped, tag = 'scoped memory for bottleneck_forward.7']
    %8 = vsyncpa [#allocation3], 0
    // Predicated region
    $region2: #{bottleneck_forward.7} parent=1 // pred_check
      _
    $region3: #{bottleneck_forward.7} parent=1 // pred_check_branch
      %10 = sbr.rel (0) target = $region5
    $region4: #{bottleneck_forward.7} parent=1 // pred_region
      _
    $region5: #{bottleneck_forward.7} parent=1 // pred_fallthru
      _
    // Predicated region
    $region6: #{bottleneck_forward.7} parent=1 // pred_check
      _
    $region7: #{bottleneck_forward.7} parent=1 // pred_check_branch
      %12 = sbr.rel (0) target = $region9
    $region8: #{bottleneck_forward.7} parent=1 // pred_region
      _
    $region9: #{bottleneck_forward.7} parent=1 // pred_fallthru
      _
    // Predicated region
    $region10: #{bottleneck_forward.7} parent=1 // pred_check
      _
    $region11: #{bottleneck_forward.7} parent=1 // pred_check_branch
      %14 = sbr.rel (0) target = $region13
    $region12: #{bottleneck_forward.7} parent=1 // pred_region
      _
    $region13: #{bottleneck_forward.7} parent=1 // pred_fallthru
      _
    %v15 = vld [vmem:[%s0] sm:$0xff]
    %v16 = vld [vmem:[%s0 + $0x8] sm:$0xff]
    %v17 = vld [vmem:[%s0 + $0x10] sm:$0xff]
    %v18 = vld [vmem:[%s0 + $0x18] sm:$0xff]
    %v19 = vld [vmem:[%s0 + $0x20] sm:$0xff]
    %v20 = vld [vmem:[%s0 + $0x28] sm:$0xff]
    %v21 = vld [vmem:[%s0 + $0x30] sm:$0xff]
    %v22 = vld [vmem:[%s0 + $0x38] sm:$0xff]
    %v23 = vld [vmem:[%s0 + $0x40] sm:$0xff]
    %v24 = vld [vmem:[%s0 + $0x48] sm:$0xff]
    %v25 = vld [vmem:[%s0 + $0x50] sm:$0xff]
    %v26 = vld [vmem:[%s0 + $0x58] sm:$0xff]
    %v27 = vld [vmem:[%s0 + $0x60] sm:$0xff]
    %v28 = vld [vmem:[%s0 + $0x68] sm:$0xff]
    %v29 = vld [vmem:[%s0 + $0x70] sm:$0xff]
    %v30 = vld [vmem:[%s0 + $0x78] sm:$0xff]
    %v31 = vld [vmem:[%s2] sm:$0x1]
    %v32 = vlaneseq
    %v33 = vshrl.u32 %v32, 7
    %v34 = vsub.s32 0, %v33
    %v35 = vrot.slane %v31, %v34
    %v36 = vmul.f32 %v15, %v35
    %v37 = vmul.f32 %v16, %v35
    %v38 = vmul.f32 %v17, %v35
    %v39 = vmul.f32 %v18, %v35
    %v40 = vmul.f32 %v19, %v35
    %v41 = vmul.f32 %v20, %v35
    %v42 = vmul.f32 %v21, %v35
    %v43 = vmul.f32 %v22, %v35
    %v44 = vmul.f32 %v23, %v35
    %v45 = vmul.f32 %v24, %v35
    %v46 = vmul.f32 %v25, %v35
    %v47 = vmul.f32 %v26, %v35
    %v48 = vmul.f32 %v27, %v35
    %v49 = vmul.f32 %v28, %v35
    %v50 = vmul.f32 %v29, %v35
    %v51 = vmul.f32 %v30, %v35
    %v52 = vld [vmem:[%s2 + $0x1] sm:$0x1]
    %v53 = vlaneseq
    %v54 = vshrl.u32 %v53, 7
    %v55 = vsub.s32 0, %v54
    %v56 = vrot.slane %v52, %v55
    %v57 = vadd.f32 %v36, %v56
    %v58 = vadd.f32 %v37, %v56
    %v59 = vadd.f32 %v38, %v56
    %v60 = vadd.f32 %v39, %v56
    %v61 = vadd.f32 %v40, %v56
    %v62 = vadd.f32 %v41, %v56
    %v63 = vadd.f32 %v42, %v56
    %v64 = vadd.f32 %v43, %v56
    %v65 = vadd.f32 %v44, %v56
    %v66 = vadd.f32 %v45, %v56
    %v67 = vadd.f32 %v46, %v56
    %v68 = vadd.f32 %v47, %v56
    %v69 = vadd.f32 %v48, %v56
    %v70 = vadd.f32 %v49, %v56
    %v71 = vadd.f32 %v50, %v56
    %v72 = vadd.f32 %v51, %v56
    %v73 = vld [vmem:[%s1] sm:$0xff]
    %v74 = vld [vmem:[%s1 + $0x8] sm:$0xff]
    %v75 = vld [vmem:[%s1 + $0x10] sm:$0xff]
    %v76 = vld [vmem:[%s1 + $0x18] sm:$0xff]
    %v77 = vld [vmem:[%s1 + $0x20] sm:$0xff]
    %v78 = vld [vmem:[%s1 + $0x28] sm:$0xff]
    %v79 = vld [vmem:[%s1 + $0x30] sm:$0xff]
    %v80 = vld [vmem:[%s1 + $0x38] sm:$0xff]
    %v81 = vld [vmem:[%s1 + $0x40] sm:$0xff]
    %v82 = vld [vmem:[%s1 + $0x48] sm:$0xff]
    %v83 = vld [vmem:[%s1 + $0x50] sm:$0xff]
    %v84 = vld [vmem:[%s1 + $0x58] sm:$0xff]
    %v85 = vld [vmem:[%s1 + $0x60] sm:$0xff]
    %v86 = vld [vmem:[%s1 + $0x68] sm:$0xff]
    %v87 = vld [vmem:[%s1 + $0x70] sm:$0xff]
    %v88 = vld [vmem:[%s1 + $0x78] sm:$0xff]
    %v89 = vadd.f32 %v57, %v73
    %v90 = vadd.f32 %v58, %v74
    %v91 = vadd.f32 %v59, %v75
    %v92 = vadd.f32 %v60, %v76
    %v93 = vadd.f32 %v61, %v77
    %v94 = vadd.f32 %v62, %v78
    %v95 = vadd.f32 %v63, %v79
    %v96 = vadd.f32 %v64, %v80
    %v97 = vadd.f32 %v65, %v81
    %v98 = vadd.f32 %v66, %v82
    %v99 = vadd.f32 %v67, %v83
    %v100 = vadd.f32 %v68, %v84
    %v101 = vadd.f32 %v69, %v85
    %v102 = vadd.f32 %v70, %v86
    %v103 = vadd.f32 %v71, %v87
    %v104 = vadd.f32 %v72, %v88
    %v105 = vmax.f32 %v89, 0.0
    %v106 = vmax.f32 %v90, 0.0
    %v107 = vmax.f32 %v91, 0.0
    %v108 = vmax.f32 %v92, 0.0
    %v109 = vmax.f32 %v93, 0.0
    %v110 = vmax.f32 %v94, 0.0
    %v111 = vmax.f32 %v95, 0.0
    %v112 = vmax.f32 %v96, 0.0
    %v113 = vmax.f32 %v97, 0.0
    %v114 = vmax.f32 %v98, 0.0
    %v115 = vmax.f32 %v99, 0.0
    %v116 = vmax.f32 %v100, 0.0
    %v117 = vmax.f32 %v101, 0.0
    %v118 = vmax.f32 %v102, 0.0
    %v119 = vmax.f32 %v103, 0.0
    %v120 = vmax.f32 %v104, 0.0
    %121 = vst [vmem:[#allocation2] sm:$0xff] %v105
    %122 = vst [vmem:[#allocation2 + $0x8] sm:$0xff] %v106
    %123 = vst [vmem:[#allocation2 + $0x10] sm:$0xff] %v107
    %124 = vst [vmem:[#allocation2 + $0x18] sm:$0xff] %v108
    %125 = vst [vmem:[#allocation2 + $0x20] sm:$0xff] %v109
    %126 = vst [vmem:[#allocation2 + $0x28] sm:$0xff] %v110
    %127 = vst [vmem:[#allocation2 + $0x30] sm:$0xff] %v111
    %128 = vst [vmem:[#allocation2 + $0x38] sm:$0xff] %v112
    %129 = vst [vmem:[#allocation2 + $0x40] sm:$0xff] %v113
    %130 = vst [vmem:[#allocation2 + $0x48] sm:$0xff] %v114
    %131 = vst [vmem:[#allocation2 + $0x50] sm:$0xff] %v115
    %132 = vst [vmem:[#allocation2 + $0x58] sm:$0xff] %v116
    %133 = vst [vmem:[#allocation2 + $0x60] sm:$0xff] %v117
    %134 = vst [vmem:[#allocation2 + $0x68] sm:$0xff] %v118
    %135 = vst [vmem:[#allocation2 + $0x70] sm:$0xff] %v119
    %136 = vst [vmem:[#allocation2 + $0x78] sm:$0xff] %v120
    // Predicated region
    $region14: #{bottleneck_forward.7} parent=1 // pred_check
      _
    $region15: #{bottleneck_forward.7} parent=1 // pred_check_branch
      %138 = sbr.rel (0) target = $region17
    $region16: #{bottleneck_forward.7} parent=1 // pred_region
      %s140 = ssub.s32 2048, 2048
      %141 = vsyncadd [#allocation3], %s140
      %s142 = sshll.u32 [#allocation2], 4
      %s143 = int_to_ptr.vmem [resolvable:$true] %s142
      %148 = dma.vmem_to_hbm [thread:$0]  %s143, 2048, %s3, [#allocation3], 128, 128, 8
    $region17: #{bottleneck_forward.7} parent=1 // pred_fallthru
      _
    // Predicated region
    $region18: #{bottleneck_forward.7} parent=1 // pred_check
      _
    $region19: #{bottleneck_forward.7} parent=1 // pred_check_branch
      %150 = sbr.rel (0) target = $region21
    $region20: #{bottleneck_forward.7} parent=1 // pred_region
      %151 = dma.done [#allocation3], 2048
    $region21: #{bottleneck_forward.7} parent=1 // pred_fallthru
      _
    %152 = vsyncpa [#allocation3], 1

// kernel: bottleneck_forward.6
$region0: #{bottleneck_forward.6}
  #allocation0 [shape = 'u32[]', space=smem, size = 0x4, offset = 0x4, fixed_abs, tag = 'smem constant byte address 0x4 - core index']
  #allocation1 [shape = 'u32[144,128]{1,0:T(1,128)}', space=vmem, size = 0x12000, scoped, tag = 'internal scratch']
  %s0 = inlined_call_operand.vmem [shape: f32[128,128], index: 0, kind: input, shape index: {}]
  %s1 = inlined_call_operand.vmem [shape: f32[2,128], index: 1, kind: input, shape index: {}]
  %s2 = inlined_call_operand.vmem [shape: bf16[128,128], index: 2, kind: input, shape index: {}]
  %s3 = inlined_call_operand.vmem [shape: f32[128,128], index: 3, kind: output, shape index: {0}]
  %s4 = inlined_call_operand.vmem [shape: f32[1,2,128], index: 4, kind: output, shape index: {1}]
  %5 = xla_tuple %s3, %s4
  %s6 = sld [smem:[#allocation0]]
  $region30: #{bottleneck_forward.6} parent=0
    _
  %s8 = ssub.s32 1, %s6
  %s9 = scalar_select 0, %s8, %s6
  // Predicated region
  $region2: #{bottleneck_forward.6} parent=0 // pred_check
    _
  $region3: #{bottleneck_forward.6} parent=0 // pred_check_branch
    %11 = sbr.rel (0) target = $region5
  $region4: #{bottleneck_forward.6} parent=0 // pred_region
    _
  $region5: #{bottleneck_forward.6} parent=0 // pred_fallthru
    _
  // Predicated region
  $region6: #{bottleneck_forward.6} parent=0 // pred_check
    _
  $region7: #{bottleneck_forward.6} parent=0 // pred_check_branch
    %13 = sbr.rel (0) target = $region9
  $region8: #{bottleneck_forward.6} parent=0 // pred_region
    _
  $region9: #{bottleneck_forward.6} parent=0 // pred_fallthru
    _
  // Predicated region
  $region10: #{bottleneck_forward.6} parent=0 // pred_check
    _
  $region11: #{bottleneck_forward.6} parent=0 // pred_check_branch
    %15 = sbr.rel (0) target = $region13
  $region12: #{bottleneck_forward.6} parent=0 // pred_region
    _
  $region13: #{bottleneck_forward.6} parent=0 // pred_fallthru
    _
  %v17 = vld [vmem:[%s0] sm:$0xff]
  %v18 = vld [vmem:[%s0 + $0x8] sm:$0xff]
  %v19 = vld [vmem:[%s0 + $0x10] sm:$0xff]
  %v20 = vld [vmem:[%s0 + $0x18] sm:$0xff]
  %v21 = vld [vmem:[%s0 + $0x20] sm:$0xff]
  %v22 = vld [vmem:[%s0 + $0x28] sm:$0xff]
  %v23 = vld [vmem:[%s0 + $0x30] sm:$0xff]
  %v24 = vld [vmem:[%s0 + $0x38] sm:$0xff]
  %v25 = vld [vmem:[%s0 + $0x40] sm:$0xff]
  %v26 = vld [vmem:[%s0 + $0x48] sm:$0xff]
  %v27 = vld [vmem:[%s0 + $0x50] sm:$0xff]
  %v28 = vld [vmem:[%s0 + $0x58] sm:$0xff]
  %v29 = vld [vmem:[%s0 + $0x60] sm:$0xff]
  %v30 = vld [vmem:[%s0 + $0x68] sm:$0xff]
  %v31 = vld [vmem:[%s0 + $0x70] sm:$0xff]
  %v32 = vld [vmem:[%s0 + $0x78] sm:$0xff]
  %v33 = vld [vmem:[%s1] sm:$0x1]
  %v34 = vlaneseq
  %v35 = vshrl.u32 %v34, 7
  %v36 = vsub.s32 0, %v35
  %v37 = vrot.slane %v33, %v36
  %v38 = vmul.f32 %v17, %v37
  %v39 = vmul.f32 %v18, %v37
  %v40 = vmul.f32 %v19, %v37
  %v41 = vmul.f32 %v20, %v37
  %v42 = vmul.f32 %v21, %v37
  %v43 = vmul.f32 %v22, %v37
  %v44 = vmul.f32 %v23, %v37
  %v45 = vmul.f32 %v24, %v37
  %v46 = vmul.f32 %v25, %v37
  %v47 = vmul.f32 %v26, %v37
  %v48 = vmul.f32 %v27, %v37
  %v49 = vmul.f32 %v28, %v37
  %v50 = vmul.f32 %v29, %v37
  %v51 = vmul.f32 %v30, %v37
  %v52 = vmul.f32 %v31, %v37
  %v53 = vmul.f32 %v32, %v37
  %v54 = vld [vmem:[%s1 + $0x1] sm:$0x1]
  %v55 = vlaneseq
  %v56 = vshrl.u32 %v55, 7
  %v57 = vsub.s32 0, %v56
  %v58 = vrot.slane %v54, %v57
  %v59 = vadd.f32 %v38, %v58
  %v60 = vadd.f32 %v39, %v58
  %v61 = vadd.f32 %v40, %v58
  %v62 = vadd.f32 %v41, %v58
  %v63 = vadd.f32 %v42, %v58
  %v64 = vadd.f32 %v43, %v58
  %v65 = vadd.f32 %v44, %v58
  %v66 = vadd.f32 %v45, %v58
  %v67 = vadd.f32 %v46, %v58
  %v68 = vadd.f32 %v47, %v58
  %v69 = vadd.f32 %v48, %v58
  %v70 = vadd.f32 %v49, %v58
  %v71 = vadd.f32 %v50, %v58
  %v72 = vadd.f32 %v51, %v58
  %v73 = vadd.f32 %v52, %v58
  %v74 = vadd.f32 %v53, %v58
  %v75 = vmax.f32 %v59, 0.0
  %v76 = vmax.f32 %v60, 0.0
  %v77 = vmax.f32 %v61, 0.0
  %v78 = vmax.f32 %v62, 0.0
  %v79 = vmax.f32 %v63, 0.0
  %v80 = vmax.f32 %v64, 0.0
  %v81 = vmax.f32 %v65, 0.0
  %v82 = vmax.f32 %v66, 0.0
  %v83 = vmax.f32 %v67, 0.0
  %v84 = vmax.f32 %v68, 0.0
  %v85 = vmax.f32 %v69, 0.0
  %v86 = vmax.f32 %v70, 0.0
  %v87 = vmax.f32 %v71, 0.0
  %v88 = vmax.f32 %v72, 0.0
  %v89 = vmax.f32 %v73, 0.0
  %v90 = vmax.f32 %v74, 0.0
  %v91 = vpack.c.bf16 %v76, %v75
  %v92 = vpack.c.bf16 %v78, %v77
  %v93 = vpack.c.bf16 %v80, %v79
  %v94 = vpack.c.bf16 %v82, %v81
  %v95 = vpack.c.bf16 %v84, %v83
  %v96 = vpack.c.bf16 %v86, %v85
  %v97 = vpack.c.bf16 %v88, %v87
  %v98 = vpack.c.bf16 %v90, %v89
  %v99 = vld [vmem:[%s2] sm:$0xf]
  %v100 = vld [vmem:[%s2 + $0x4] sm:$0xf]
  %v101 = vld [vmem:[%s2 + $0x8] sm:$0xf]
  %v102 = vld [vmem:[%s2 + $0xc] sm:$0xf]
  %v103 = vld [vmem:[%s2 + $0x10] sm:$0xf]
  %v104 = vld [vmem:[%s2 + $0x14] sm:$0xf]
  %v105 = vld [vmem:[%s2 + $0x18] sm:$0xf]
  %v106 = vld [vmem:[%s2 + $0x1c] sm:$0xf]
  %v107 = vld [vmem:[%s2 + $0x20] sm:$0xf]
  %v108 = vld [vmem:[%s2 + $0x24] sm:$0xf]
  %v109 = vld [vmem:[%s2 + $0x28] sm:$0xf]
  %v110 = vld [vmem:[%s2 + $0x2c] sm:$0xf]
  %v111 = vld [vmem:[%s2 + $0x30] sm:$0xf]
  %v112 = vld [vmem:[%s2 + $0x34] sm:$0xf]
  %v113 = vld [vmem:[%s2 + $0x38] sm:$0xf]
  %v114 = vld [vmem:[%s2 + $0x3c] sm:$0xf]
  %v131 = vunpack.c.l.b16 %v99
  %v132 = vunpack.c.l.b16 %v100
  %v133 = vunpack.c.l.b16 %v101
  %v134 = vunpack.c.l.b16 %v102
  %v135 = vunpack.c.l.b16 %v103
  %v136 = vunpack.c.l.b16 %v104
  %v137 = vunpack.c.l.b16 %v105
  %v138 = vunpack.c.l.b16 %v106
  %v139 = vunpack.c.l.b16 %v107
  %v140 = vunpack.c.l.b16 %v108
  %v141 = vunpack.c.l.b16 %v109
  %v142 = vunpack.c.l.b16 %v110
  %v143 = vunpack.c.l.b16 %v111
  %v144 = vunpack.c.l.b16 %v112
  %v145 = vunpack.c.l.b16 %v113
  %v146 = vunpack.c.l.b16 %v114
  %v147 = vpack.c.b16 %v132, %v131
  %v148 = vpack.c.b16 %v134, %v133
  %v149 = vpack.c.b16 %v136, %v135
  %v150 = vpack.c.b16 %v138, %v137
  %v151 = vpack.c.b16 %v140, %v139
  %v152 = vpack.c.b16 %v142, %v141
  %v153 = vpack.c.b16 %v144, %v143
  %v154 = vpack.c.b16 %v146, %v145
  %163 = vmatprep.subr.bf16.mxu0 0
  %164 = vmatpush1.bf16.msra.mxu0 %v154
  %165 = vmatprep.subr.bf16.mxu0 0
  %166 = vmatpush1.bf16.msra.mxu0 %v153
  %167 = vmatprep.subr.bf16.mxu0 0
  %168 = vmatpush1.bf16.msra.mxu0 %v152
  %169 = vmatprep.subr.bf16.mxu0 0
  %170 = vmatpush1.bf16.msra.mxu0 %v151
  %171 = vmatprep.subr.bf16.mxu0 0
  %172 = vmatpush1.bf16.msra.mxu0 %v150
  %173 = vmatprep.subr.bf16.mxu0 0
  %174 = vmatpush1.bf16.msra.mxu0 %v149
  %175 = vmatprep.subr.bf16.mxu0 0
  %176 = vmatpush1.bf16.msra.mxu0 %v148
  %177 = vmatprep.subr.bf16.mxu0 0
  %178 = vmatpush1.bf16.msra.mxu0 %v147
  %179 = vmatprep.subr.bf16.mxu0 0
  %180 = vmatpush2.bf16.msra.mxu0 0
  %181 = vmatprep.subr.bf16.mxu0 0
  %182 = vmatpush2.bf16.msra.mxu0 0
  %183 = vmatprep.subr.bf16.mxu0 0
  %184 = vmatpush2.bf16.msra.mxu0 0
  %185 = vmatprep.subr.bf16.mxu0 0
  %186 = vmatpush2.bf16.msra.mxu0 0
  %187 = vmatprep.subr.bf16.mxu0 0
  %188 = vmatpush2.bf16.msra.mxu0 0
  %189 = vmatprep.subr.bf16.mxu0 0
  %190 = vmatpush2.bf16.msra.mxu0 0
  %191 = vmatprep.subr.bf16.mxu0 0
  %192 = vmatpush2.bf16.msra.mxu0 0
  %193 = vmatprep.subr.bf16.mxu0 0
  %194 = vmatpush2.bf16.msra.mxu0 0
  %195 = vmatprep.mubr.bf16.mxu0 0
  %196 = vmatmul.mubr.bf16.gmra.mxu0 %v91
  %v197 = vpop.f32.mrf.mxu0
  %v198 = vadd.f32 0.0, %v197
  %v199 = vpop.f32.mrf.mxu0
  %v200 = vpop.f32.mrf.mxu0
  %v201 = vadd.f32 0.0, %v200
  %v202 = vpop.f32.mrf.mxu0
  %203 = vmatprep.mubr.bf16.mxu0 0
  %204 = vmatmul.mubr.bf16.gmra.mxu0 %v92
  %v205 = vpop.f32.mrf.mxu0
  %v206 = vadd.f32 0.0, %v205
  %v207 = vpop.f32.mrf.mxu0
  %v208 = vpop.f32.mrf.mxu0
  %v209 = vadd.f32 0.0, %v208
  %v210 = vpop.f32.mrf.mxu0
  %211 = vmatprep.mubr.bf16.mxu0 0
  %212 = vmatmul.mubr.bf16.gmra.mxu0 %v93
  %v213 = vpop.f32.mrf.mxu0
  %v214 = vadd.f32 0.0, %v213
  %v215 = vpop.f32.mrf.mxu0
  %v216 = vpop.f32.mrf.mxu0
  %v217 = vadd.f32 0.0, %v216
  %v218 = vpop.f32.mrf.mxu0
  %219 = vmatprep.mubr.bf16.mxu0 0
  %220 = vmatmul.mubr.bf16.gmra.mxu0 %v94
  %v221 = vpop.f32.mrf.mxu0
  %v222 = vadd.f32 0.0, %v221
  %v223 = vpop.f32.mrf.mxu0
  %v224 = vpop.f32.mrf.mxu0
  %v225 = vadd.f32 0.0, %v224
  %v226 = vpop.f32.mrf.mxu0
  %227 = vmatprep.mubr.bf16.mxu0 0
  %228 = vmatmul.mubr.bf16.gmra.mxu0 %v95
  %v229 = vpop.f32.mrf.mxu0
  %v230 = vadd.f32 0.0, %v229
  %v231 = vpop.f32.mrf.mxu0
  %v232 = vpop.f32.mrf.mxu0
  %v233 = vadd.f32 0.0, %v232
  %v234 = vpop.f32.mrf.mxu0
  %235 = vmatprep.mubr.bf16.mxu0 0
  %236 = vmatmul.mubr.bf16.gmra.mxu0 %v96
  %v237 = vpop.f32.mrf.mxu0
  %v238 = vadd.f32 0.0, %v237
  %v239 = vpop.f32.mrf.mxu0
  %v240 = vpop.f32.mrf.mxu0
  %v241 = vadd.f32 0.0, %v240
  %v242 = vpop.f32.mrf.mxu0
  %243 = vmatprep.mubr.bf16.mxu0 0
  %244 = vmatmul.mubr.bf16.gmra.mxu0 %v97
  %v245 = vpop.f32.mrf.mxu0
  %v246 = vadd.f32 0.0, %v245
  %v247 = vpop.f32.mrf.mxu0
  %v248 = vpop.f32.mrf.mxu0
  %v249 = vadd.f32 0.0, %v248
  %v250 = vpop.f32.mrf.mxu0
  %251 = vmatprep.mubr.bf16.mxu0 0
  %252 = vmatmul.mubr.bf16.gmra.mxu0 %v98
  %v253 = vpop.f32.mrf.mxu0
  %v254 = vadd.f32 0.0, %v253
  %v255 = vpop.f32.mrf.mxu0
  %v256 = vpop.f32.mrf.mxu0
  %v257 = vadd.f32 0.0, %v256
  %v258 = vpop.f32.mrf.mxu0
  %259 = vdwg.mxu0
  %260 = vst [vmem:[%s3] sm:$0xff] %v198
  %261 = vst [vmem:[%s3 + $0x8] sm:$0xff] %v201
  %262 = vst [vmem:[%s3 + $0x10] sm:$0xff] %v206
  %263 = vst [vmem:[%s3 + $0x18] sm:$0xff] %v209
  %264 = vst [vmem:[%s3 + $0x20] sm:$0xff] %v214
  %265 = vst [vmem:[%s3 + $0x28] sm:$0xff] %v217
  %266 = vst [vmem:[%s3 + $0x30] sm:$0xff] %v222
  %267 = vst [vmem:[%s3 + $0x38] sm:$0xff] %v225
  %268 = vst [vmem:[%s3 + $0x40] sm:$0xff] %v230
  %269 = vst [vmem:[%s3 + $0x48] sm:$0xff] %v233
  %270 = vst [vmem:[%s3 + $0x50] sm:$0xff] %v238
  %271 = vst [vmem:[%s3 + $0x58] sm:$0xff] %v241
  %272 = vst [vmem:[%s3 + $0x60] sm:$0xff] %v246
  %273 = vst [vmem:[%s3 + $0x68] sm:$0xff] %v249
  %274 = vst [vmem:[%s3 + $0x70] sm:$0xff] %v254
  %275 = vst [vmem:[%s3 + $0x78] sm:$0xff] %v257
  %v276 = vadd.f32 %v198, %v201
  %v277 = vadd.f32 %v276, %v206
  %v278 = vadd.f32 %v277, %v209
  %v279 = vadd.f32 %v278, %v214
  %v280 = vadd.f32 %v279, %v217
  %v281 = vadd.f32 %v280, %v222
  %v282 = vadd.f32 %v281, %v225
  %v283 = vadd.f32 %v282, %v230
  %v284 = vadd.f32 %v283, %v233
  %v285 = vadd.f32 %v284, %v238
  %v286 = vadd.f32 %v285, %v241
  %v287 = vadd.f32 %v286, %v246
  %v288 = vadd.f32 %v287, %v249
  %v289 = vadd.f32 %v288, %v254
  %v290 = vadd.f32 %v289, %v257
  %v291 = vrot.slane %v290, 4
  %v292 = vadd.f32 %v290, %v291
  %v293 = vrot.slane %v292, 2
  %v294 = vadd.f32 %v292, %v293
  %v295 = vrot.slane %v294, 1
  %v296 = vadd.f32 %v294, %v295
  %297 = vst [vmem:[%s4] sm:$0x1] %v296
  %v298 = vmul.f32 %v198, %v198
  %v299 = vmul.f32 %v201, %v201
  %v300 = vmul.f32 %v206, %v206
  %v301 = vmul.f32 %v209, %v209
  %v302 = vmul.f32 %v214, %v214
  %v303 = vmul.f32 %v217, %v217
  %v304 = vmul.f32 %v222, %v222
  %v305 = vmul.f32 %v225, %v225
  %v306 = vmul.f32 %v230, %v230
  %v307 = vmul.f32 %v233, %v233
  %v308 = vmul.f32 %v238, %v238
  %v309 = vmul.f32 %v241, %v241
  %v310 = vmul.f32 %v246, %v246
  %v311 = vmul.f32 %v249, %v249
  %v312 = vmul.f32 %v254, %v254
  %v313 = vmul.f32 %v257, %v257
  %v314 = vadd.f32 %v298, %v299
  %v315 = vadd.f32 %v314, %v300
  %v316 = vadd.f32 %v315, %v301
  %v317 = vadd.f32 %v316, %v302
  %v318 = vadd.f32 %v317, %v303
  %v319 = vadd.f32 %v318, %v304
  %v320 = vadd.f32 %v319, %v305
  %v321 = vadd.f32 %v320, %v306
  %v322 = vadd.f32 %v321, %v307
  %v323 = vadd.f32 %v322, %v308
  %v324 = vadd.f32 %v323, %v309
  %v325 = vadd.f32 %v324, %v310
  %v326 = vadd.f32 %v325, %v311
  %v327 = vadd.f32 %v326, %v312
  %v328 = vadd.f32 %v327, %v313
  %v329 = vrot.slane %v328, 4
  %v330 = vadd.f32 %v328, %v329
  %v331 = vrot.slane %v330, 2
  %v332 = vadd.f32 %v330, %v331
  %v333 = vrot.slane %v332, 1
  %v334 = vadd.f32 %v332, %v333
  %335 = vst [vmem:[%s4 + $0x1] sm:$0x1] %v334
  // Predicated region
  $region14: #{bottleneck_forward.6} parent=0 // pred_check
    _
  $region15: #{bottleneck_forward.6} parent=0 // pred_check_branch
    %337 = sbr.rel (0) target = $region17
  $region16: #{bottleneck_forward.6} parent=0 // pred_region
    _
  $region17: #{bottleneck_forward.6} parent=0 // pred_fallthru
    _
  // Predicated region
  $region18: #{bottleneck_forward.6} parent=0 // pred_check
    _
  $region19: #{bottleneck_forward.6} parent=0 // pred_check_branch
    %339 = sbr.rel (0) target = $region21
  $region20: #{bottleneck_forward.6} parent=0 // pred_region
    _
  $region21: #{bottleneck_forward.6} parent=0 // pred_fallthru
    _
  // Predicated region
  $region22: #{bottleneck_forward.6} parent=0 // pred_check
    _
  $region23: #{bottleneck_forward.6} parent=0 // pred_check_branch
    %341 = sbr.rel (0) target = $region25
  $region24: #{bottleneck_forward.6} parent=0 // pred_region
    _
  $region25: #{bottleneck_forward.6} parent=0 // pred_fallthru
    _
  // Predicated region
  $region26: #{bottleneck_forward.6} parent=0 // pred_check
    _
  $region27: #{bottleneck_forward.6} parent=0 // pred_check_branch
    %343 = sbr.rel (0) target = $region29
  $region28: #{bottleneck_forward.6} parent=0 // pred_region
    _
  $region29: #{bottleneck_forward.6} parent=0 // pred_fallthru
    _

// kernel: bottleneck_forward.5
$region0: #{bottleneck_forward.5}
  #allocation0 [shape = 'u32[]', space=smem, size = 0x4, offset = 0x4, fixed_abs, tag = 'smem constant byte address 0x4 - core index']
  #allocation1 [shape = 'u32[144,128]{1,0:T(1,128)}', space=vmem, size = 0x12000, scoped, tag = 'internal scratch']
  #allocation2 [shape = 'f32[10,10,128]{2,1,0:T(8,128)}', space=vmem, size = 0x14000, scoped, tag = 'scratch operand']
  #allocation4 [shape = 's32[]', space=sflag, size = 0x4, offset = 0, fixed_abs, tag = 'sflag constant byte address 0x0 - dummy sync flag']
  %s0 = inlined_call_operand.vmem [shape: f32[2,128], index: 0, kind: input, shape index: {}]
  %s1 = inlined_call_operand.vmem [shape: bf16[3,3,128,128], index: 1, kind: input, shape index: {}]
  %s2 = inlined_call_operand.vmem [shape: f32[2,10,10,128], index: 2, kind: input, shape index: {}]
  %s3 = inlined_call_operand.vmem [shape: f32[2,64,128], index: 3, kind: output, shape index: {0}]
  %s4 = inlined_call_operand.vmem [shape: f32[2,2,128], index: 4, kind: output, shape index: {1}]
  %5 = xla_tuple %s3, %s4
  %s6 = sld [smem:[#allocation0]]
  $region91: #{bottleneck_forward.5} parent=0
    _
  %s8 = ssub.s32 1, %s6
  %s9 = scalar_select 0, %s8, %s6
  loop: start=0, step=1, limit=4
  $region2: #{bottleneck_forward.5} parent=0 // loop_pre_header
    _
  $region3: #{bottleneck_forward.5} parent=0 // loop_header
    %s11 = sphi 0, %s15
    %p12 = scmp.ge.s32.totalorder %s11, 4
    %s18 = sphi 0, %s30
    %s19 = sphi 0, %s26
    %s20 = sphi 0, %s18
    %s21 = sphi 0, %s19
    %s22 = sphi 0, %s20
    %s23 = sphi 0, %s21
    %s31 = sphi 0, %s31
    %s33 = sphi 0, %s31
    %s34 = sphi 0, %s33
    %s48 = sphi 0, %s34
    %s52 = sphi 0, %s52
    %s54 = sphi 0, %s52
    %s55 = sphi 0, %s54
    %s69 = sphi 0, %s55
    %s77 = sphi 0, %s79
    %s80 = sphi 0, %s77
    %s81 = sphi 0, %s80
    %s97 = sphi 0, %s81
    %s105 = sphi 0, %s107
    %s108 = sphi 0, %s105
    %s109 = sphi 0, %s108
    %s125 = sphi 0, %s109
  $region4: #{bottleneck_forward.5} parent=0 // loop_header_branch
    %14 = sbr.rel (%p12) target = $region8
  $region5: #{bottleneck_forward.5} parent=0 // loop_body
    %s16 = ssub.s32 %s11, 1
    %s17 = ssub.s32 %s11, 2
    %s24 = sadd.s32 1, %s19
    %p25 = scmp.ge.s32.totalorder %s24, 1
    %s26 = scalar_select %p25, 0, %s24
    %s27 = sadd.s32 1, %s18
    %s28 = scalar_select %p25, %s27, %s18
    %p29 = scmp.ge.s32.totalorder %s28, 2
    %s30 = scalar_select %p29, 0, %s28
    %s32 = sadd.s32 %s31, 1
    %p35 = scmp.eq.s32.totalorder %s11, 1
    %p36 = scmp.ne.s32.totalorder %s31, %s33
    %p37 = scmp.eq.s32.totalorder %s11, 0
    %p38 = por %p36, %p37
    %p39 = scmp.ne.s32.totalorder %s31, %s33
    %p40 = scmp.eq.s32.totalorder %s16, 1
    %p41 = por %p39, %p40
    %p42 = scmp.ne.s32.totalorder %s33, %s34
    %p43 = scmp.eq.s32.totalorder %s16, 0
    %p44 = por %p42, %p43
    %p45 = scmp.ne.s32.totalorder %s33, %s34
    %p46 = scmp.eq.s32.totalorder %s17, 1
    %p47 = por %p45, %p46
    %p49 = scmp.ne.s32.totalorder %s34, %s48
    %p50 = scmp.eq.s32.totalorder %s17, 0
    %p51 = por %p49, %p50
    %s53 = sadd.s32 %s52, 1
    %p56 = scmp.eq.s32.totalorder %s11, 1
    %p57 = scmp.ne.s32.totalorder %s52, %s54
    %p58 = scmp.eq.s32.totalorder %s11, 0
    %p59 = por %p57, %p58
    %p60 = scmp.ne.s32.totalorder %s52, %s54
    %p61 = scmp.eq.s32.totalorder %s16, 1
    %p62 = por %p60, %p61
    %p63 = scmp.ne.s32.totalorder %s54, %s55
    %p64 = scmp.eq.s32.totalorder %s16, 0
    %p65 = por %p63, %p64
    %p66 = scmp.ne.s32.totalorder %s54, %s55
    %p67 = scmp.eq.s32.totalorder %s17, 1
    %p68 = por %p66, %p67
    %p70 = scmp.ne.s32.totalorder %s55, %s69
    %p71 = scmp.eq.s32.totalorder %s17, 0
    %p72 = por %p70, %p71
    %s73 = sadd.s32 %s18, %s19
    %s74 = sadd.s32 %s30, %s26
    %s75 = ssub.s32 %s73, %s74
    %p76 = scmp.eq.s32.totalorder %s75, 0
    %s78 = sadd.s32 %s77, 1
    %s79 = scalar_select %p76, %s77, %s78
    %p82 = pneg %p76
    %p83 = scmp.eq.s32.totalorder %s11, 1
    %p84 = por %p82, %p83
    %p85 = scmp.ne.s32.totalorder %s77, %s80
    %p86 = scmp.eq.s32.totalorder %s11, 0
    %p87 = por %p85, %p86
    %p88 = scmp.ne.s32.totalorder %s77, %s80
    %p89 = scmp.eq.s32.totalorder %s16, 1
    %p90 = por %p88, %p89
    %p91 = scmp.ne.s32.totalorder %s80, %s81
    %p92 = scmp.eq.s32.totalorder %s16, 0
    %p93 = por %p91, %p92
    %p94 = scmp.ne.s32.totalorder %s80, %s81
    %p95 = scmp.eq.s32.totalorder %s17, 1
    %p96 = por %p94, %p95
    %p98 = scmp.ne.s32.totalorder %s81, %s97
    %p99 = scmp.eq.s32.totalorder %s17, 0
    %p100 = por %p98, %p99
    %s101 = sadd.s32 %s18, %s19
    %s102 = sadd.s32 %s30, %s26
    %s103 = ssub.s32 %s101, %s102
    %p104 = scmp.eq.s32.totalorder %s103, 0
    %s106 = sadd.s32 %s105, 1
    %s107 = scalar_select %p104, %s105, %s106
    %p110 = pneg %p104
    %p111 = scmp.eq.s32.totalorder %s11, 1
    %p112 = por %p110, %p111
    %p113 = scmp.ne.s32.totalorder %s105, %s108
    %p114 = scmp.eq.s32.totalorder %s11, 0
    %p115 = por %p113, %p114
    %p116 = scmp.ne.s32.totalorder %s105, %s108
    %p117 = scmp.eq.s32.totalorder %s16, 1
    %p118 = por %p116, %p117
    %p119 = scmp.ne.s32.totalorder %s108, %s109
    %p120 = scmp.eq.s32.totalorder %s16, 0
    %p121 = por %p119, %p120
    %p122 = scmp.ne.s32.totalorder %s108, %s109
    %p123 = scmp.eq.s32.totalorder %s17, 1
    %p124 = por %p122, %p123
    %p126 = scmp.ne.s32.totalorder %s109, %s125
    %p127 = scmp.eq.s32.totalorder %s17, 0
    %p128 = por %p126, %p127
    %p129 = scmp.le.s32.totalorder 1, %s11
    %p130 = scmp.lt.s32.totalorder %s11, 3
    %p131 = pnand %p129, %p130
    %p132 = pneg %p131
    // Predicated region
    $region9: #{bottleneck_forward.5} parent=5 // pred_check
      _
    $region10: #{bottleneck_forward.5} parent=5 // pred_check_branch
      %134 = sbr.rel (%p131) target = $region12
    $region11: #{bottleneck_forward.5} parent=5 // pred_region
      %s135 = ssub.s32 %s11, 1
      // Predicated region
      $region13: #{bottleneck_forward.5} parent=11 // pred_check
        %p136 = pneg %p44
      $region14: #{bottleneck_forward.5} parent=11 // pred_check_branch
        %138 = sbr.rel (%p136) target = $region16
      $region15: #{bottleneck_forward.5} parent=11 // pred_region
        _
      $region16: #{bottleneck_forward.5} parent=11 // pred_fallthru
        _
      // Predicated region
      $region17: #{bottleneck_forward.5} parent=11 // pred_check
        %p139 = pneg %p65
      $region18: #{bottleneck_forward.5} parent=11 // pred_check_branch
        %141 = sbr.rel (%p139) target = $region20
      $region19: #{bottleneck_forward.5} parent=11 // pred_region
        _
      $region20: #{bottleneck_forward.5} parent=11 // pred_fallthru
        _
    $region12: #{bottleneck_forward.5} parent=5 // pred_fallthru
      _
    %p142 = scmp.lt.s32.totalorder %s11, 2
    // Predicated region
    $region21: #{bottleneck_forward.5} parent=5 // pred_check
      %p143 = pneg %p142
    $region22: #{bottleneck_forward.5} parent=5 // pred_check_branch
      %145 = sbr.rel (%p143) target = $region24
    $region23: #{bottleneck_forward.5} parent=5 // pred_region
      _
    $region24: #{bottleneck_forward.5} parent=5 // pred_fallthru
      _
    %p146 = scmp.le.s32.totalorder 1, %s11
    %p147 = scmp.lt.s32.totalorder %s11, 3
    %p148 = pnand %p146, %p147
    %p149 = pneg %p148
    // Predicated region
    $region25: #{bottleneck_forward.5} parent=5 // pred_check
      _
    $region26: #{bottleneck_forward.5} parent=5 // pred_check_branch
      %151 = sbr.rel (%p148) target = $region28
    $region27: #{bottleneck_forward.5} parent=5 // pred_region
      %s152 = ssub.s32 %s11, 1
      %p153 = pneg %p44
      %p154 = pneg %p41
      %p155 = pneg %p65
      %p156 = pneg %p62
      %p157 = pneg %p93
      %p158 = pneg %p90
      %s159 = sadd.s32 %s20, %s21
      %p160 = scmp.lt.s32.totalorder %s159, 1
      %s161 = scalar_select %p160, %s159, 1
      %s162 = smul.addr %s161, 8
      %s163 = smul.addr %s162, 8
      %s164 = scalar_lea.vmem %s3, %s163
      %p165 = pneg %p121
      %p166 = pneg %p118
      %s167 = sadd.s32 %s20, %s21
      %p168 = scmp.lt.s32.totalorder %s167, 1
      %s169 = scalar_select %p168, %s167, 1
      %s170 = smul.addr %s169, 2
      %s171 = scalar_lea.vmem %s4, %s170
      %s172 = sadd.s32 %s20, %s21
      %p173 = scmp.lt.s32.totalorder %s172, 1
      %s174 = scalar_select %p173, %s172, 1
      %s175 = smul.addr %s174, 8
      %s176 = smul.addr %s175, 8
      %s177 = scalar_lea.vmem %s3, %s176
      %s178 = sadd.s32 %s20, %s21
      %s179 = sadd.s32 %s20, %s21
      %p180 = scmp.lt.s32.totalorder %s179, 1
      %s181 = scalar_select %p180, %s179, 1
      %s182 = smul.addr %s181, 2
      %s183 = scalar_lea.vmem %s4, %s182
      %s184 = sadd.s32 %s20, %s21
      %s186 = smul.u32 %s21, 8
      $region29: #{bottleneck_forward.5} parent=27
        #allocation3 [shape = 's32[1]{0}', space=sflag, size = 0x4, scoped, tag = 'scoped memory for bottleneck_forward.5']
        %s187 = smul.u32 %s186, 16
        %s188 = smul.u32 %s20, 160
        %s189 = sadd.s32 %s187, %s188
        %s190 = scalar_lea.vmem %s2, %s189
        %p192 = scmp.lt.u32.totalorder 10, 8
        %p193 = pneg %p192
        // Predicated region
        $region30: #{bottleneck_forward.5} parent=29 // pred_check
          _
        $region31: #{bottleneck_forward.5} parent=29 // pred_check_branch
          %195 = sbr.rel (%p192) target = $region33
        $region32: #{bottleneck_forward.5} parent=29 // pred_region
          %s229 = sand.u32 10, 7
          %p230 = scmp.eq.s32.totalorder %s229, 0
          %p231 = pneg %p230
          // Predicated region
          $region45: #{bottleneck_forward.5} parent=32 // pred_check
            _
          $region46: #{bottleneck_forward.5} parent=32 // pred_check_branch
            %233 = sbr.rel (%p230) target = $region48
          $region47: #{bottleneck_forward.5} parent=32 // pred_region
            %s234 = sand.u32 10, 7
            %s235 = ssub.s32 10, %s234
            %s236 = scalar_lea.vmem %s190, %s235
            %s237 = ssub.s32 10, %s234
            %s238 = scalar_lea.vmem [#allocation2], %s237
            loop: start=0, step=1, limit=1
            $region49: #{bottleneck_forward.5} parent=47 // loop_pre_header
              _
            $region50: #{bottleneck_forward.5} parent=47 // loop_header
              %s240 = sphi 0, %s244
              %p241 = scmp.ge.s32.totalorder %s240, 1
              %s245 = sphi %s190, %s190
              %s246 = sphi [#allocation2], [#allocation2]
            $region51: #{bottleneck_forward.5} parent=47 // loop_header_branch
              %243 = sbr.rel (%p241) target = $region55
            $region52: #{bottleneck_forward.5} parent=47 // loop_body
              %v247 = vld [vmem:[%s245] sm:$0xff]
              %248 = vst [vmem:[%s246] sm:$0xff] %v247
              %v249 = vld [vmem:[%s245 + $0x10] sm:$0xff]
              %250 = vst [vmem:[%s246 + $0x10] sm:$0xff] %v249
              %v251 = vld [vmem:[%s245 + $0x20] sm:$0xff]
              %252 = vst [vmem:[%s246 + $0x20] sm:$0xff] %v251
              %v253 = vld [vmem:[%s245 + $0x30] sm:$0xff]
              %254 = vst [vmem:[%s246 + $0x30] sm:$0xff] %v253
              %v255 = vld [vmem:[%s245 + $0x40] sm:$0xff]
              %256 = vst [vmem:[%s246 + $0x40] sm:$0xff] %v255
              %v257 = vld [vmem:[%s245 + $0x50] sm:$0xff]
              %258 = vst [vmem:[%s246 + $0x50] sm:$0xff] %v257
              %v259 = vld [vmem:[%s245 + $0x60] sm:$0xff]
              %260 = vst [vmem:[%s246 + $0x60] sm:$0xff] %v259
              %v261 = vld [vmem:[%s245 + $0x70] sm:$0xff]
              %262 = vst [vmem:[%s246 + $0x70] sm:$0xff] %v261
              %v263 = vld [vmem:[%s245 + $0x80] sm:$0xff]
              %264 = vst [vmem:[%s246 + $0x80] sm:$0xff] %v263
              %v265 = vld [vmem:[%s245 + $0x90] sm:$0xff]
              %266 = vst [vmem:[%s246 + $0x90] sm:$0xff] %v265
            $region53: #{bottleneck_forward.5} parent=47 // loop_footer
              %s244 = sadd.s32 1, %s240
            $region54: #{bottleneck_forward.5} parent=47 // loop_footer_branch
              %239 = sbr.rel target = $region50
            $region55: #{bottleneck_forward.5} parent=47 // loop_exit
              _
            %s267 = sshll.u32 1, %s234
            %s268 = ssub.s32 %s267, 1
            loop: start=0, step=1, limit=1
            $region56: #{bottleneck_forward.5} parent=47 // loop_pre_header
              _
            $region57: #{bottleneck_forward.5} parent=47 // loop_header
              %s270 = sphi 0, %s274
              %p271 = scmp.ge.s32.totalorder %s270, 1
              %s275 = sphi %s236, %s236
              %s276 = sphi %s238, %s238
            $region58: #{bottleneck_forward.5} parent=47 // loop_header_branch
              %273 = sbr.rel (%p271) target = $region62
            $region59: #{bottleneck_forward.5} parent=47 // loop_body
              %v277 = vld [vmem:[%s275] sm:%s268]
              %278 = vst [vmem:[%s276] sm:%s268] %v277
              %v279 = vld [vmem:[%s275 + $0x10] sm:%s268]
              %280 = vst [vmem:[%s276 + $0x10] sm:%s268] %v279
              %v281 = vld [vmem:[%s275 + $0x20] sm:%s268]
              %282 = vst [vmem:[%s276 + $0x20] sm:%s268] %v281
              %v283 = vld [vmem:[%s275 + $0x30] sm:%s268]
              %284 = vst [vmem:[%s276 + $0x30] sm:%s268] %v283
              %v285 = vld [vmem:[%s275 + $0x40] sm:%s268]
              %286 = vst [vmem:[%s276 + $0x40] sm:%s268] %v285
              %v287 = vld [vmem:[%s275 + $0x50] sm:%s268]
              %288 = vst [vmem:[%s276 + $0x50] sm:%s268] %v287
              %v289 = vld [vmem:[%s275 + $0x60] sm:%s268]
              %290 = vst [vmem:[%s276 + $0x60] sm:%s268] %v289
              %v291 = vld [vmem:[%s275 + $0x70] sm:%s268]
              %292 = vst [vmem:[%s276 + $0x70] sm:%s268] %v291
              %v293 = vld [vmem:[%s275 + $0x80] sm:%s268]
              %294 = vst [vmem:[%s276 + $0x80] sm:%s268] %v293
              %v295 = vld [vmem:[%s275 + $0x90] sm:%s268]
              %296 = vst [vmem:[%s276 + $0x90] sm:%s268] %v295
            $region60: #{bottleneck_forward.5} parent=47 // loop_footer
              %s274 = sadd.s32 1, %s270
            $region61: #{bottleneck_forward.5} parent=47 // loop_footer_branch
              %269 = sbr.rel target = $region57
            $region62: #{bottleneck_forward.5} parent=47 // loop_exit
              _
          $region48: #{bottleneck_forward.5} parent=32 // pred_fallthru
            _
        $region33: #{bottleneck_forward.5} parent=29 // pred_fallthru
          _
        // Predicated region
        $region34: #{bottleneck_forward.5} parent=29 // pred_check
          %p196 = pneg %p192
        $region35: #{bottleneck_forward.5} parent=29 // pred_check_branch
          %198 = sbr.rel (%p196) target = $region37
        $region36: #{bottleneck_forward.5} parent=29 // pred_region
          %s199 = sshll.u32 1, 10
          %s200 = ssub.s32 %s199, 1
          loop: start=0, step=1, limit=1
          $region38: #{bottleneck_forward.5} parent=36 // loop_pre_header
            _
          $region39: #{bottleneck_forward.5} parent=36 // loop_header
            %s202 = sphi 0, %s206
            %p203 = scmp.ge.s32.totalorder %s202, 1
            %s207 = sphi %s190, %s190
            %s208 = sphi [#allocation2], [#allocation2]
          $region40: #{bottleneck_forward.5} parent=36 // loop_header_branch
            %205 = sbr.rel (%p203) target = $region44
          $region41: #{bottleneck_forward.5} parent=36 // loop_body
            %v209 = vld [vmem:[%s207] sm:%s200]
            %210 = vst [vmem:[%s208] sm:%s200] %v209
            %v211 = vld [vmem:[%s207 + $0x10] sm:%s200]
            %212 = vst [vmem:[%s208 + $0x10] sm:%s200] %v211
            %v213 = vld [vmem:[%s207 + $0x20] sm:%s200]
            %214 = vst [vmem:[%s208 + $0x20] sm:%s200] %v213
            %v215 = vld [vmem:[%s207 + $0x30] sm:%s200]
            %216 = vst [vmem:[%s208 + $0x30] sm:%s200] %v215
            %v217 = vld [vmem:[%s207 + $0x40] sm:%s200]
            %218 = vst [vmem:[%s208 + $0x40] sm:%s200] %v217
            %v219 = vld [vmem:[%s207 + $0x50] sm:%s200]
            %220 = vst [vmem:[%s208 + $0x50] sm:%s200] %v219
            %v221 = vld [vmem:[%s207 + $0x60] sm:%s200]
            %222 = vst [vmem:[%s208 + $0x60] sm:%s200] %v221
            %v223 = vld [vmem:[%s207 + $0x70] sm:%s200]
            %224 = vst [vmem:[%s208 + $0x70] sm:%s200] %v223
            %v225 = vld [vmem:[%s207 + $0x80] sm:%s200]
            %226 = vst [vmem:[%s208 + $0x80] sm:%s200] %v225
            %v227 = vld [vmem:[%s207 + $0x90] sm:%s200]
            %228 = vst [vmem:[%s208 + $0x90] sm:%s200] %v227
          $region42: #{bottleneck_forward.5} parent=36 // loop_footer
            %s206 = sadd.s32 1, %s202
          $region43: #{bottleneck_forward.5} parent=36 // loop_footer_branch
            %201 = sbr.rel target = $region39
          $region44: #{bottleneck_forward.5} parent=36 // loop_exit
            _
        $region37: #{bottleneck_forward.5} parent=29 // pred_fallthru
          _
        // Predicated region
        $region63: #{bottleneck_forward.5} parent=29 // pred_check
          _
        $region64: #{bottleneck_forward.5} parent=29 // pred_check_branch
          %299 = sbr.rel (0) target = $region66
        $region65: #{bottleneck_forward.5} parent=29 // pred_region
          %300 = vsyncadd [#allocation3], 1600
        $region66: #{bottleneck_forward.5} parent=29 // pred_fallthru
          _
        %s301 = smul.u32 10, 10
        %s302 = smul.u32 %s301, 1
        %s303 = sshll.u32 %s302, 4
        %304 = dma.done [#allocation3], %s303
      %v305 = vld [vmem:[%s0] sm:$0x1]
      %v306 = vld [vmem:[%s0 + $0x1] sm:$0x1]
      %v307 = vld [vmem:[#allocation2] sm:$0xff]
      %v308 = vld [vmem:[#allocation2 + $0x8] sm:$0x3]
      %v309 = vld [vmem:[#allocation2 + $0x10] sm:$0xff]
      %v310 = vld [vmem:[#allocation2 + $0x18] sm:$0x3]
      %v311 = vld [vmem:[#allocation2 + $0x20] sm:$0xff]
      %v312 = vld [vmem:[#allocation2 + $0x28] sm:$0x3]
      %v313 = vld [vmem:[#allocation2 + $0x30] sm:$0xff]
      %v314 = vld [vmem:[#allocation2 + $0x38] sm:$0x3]
      %v315 = vld [vmem:[#allocation2 + $0x40] sm:$0xff]
      %v316 = vld [vmem:[#allocation2 + $0x48] sm:$0x3]
      %v317 = vld [vmem:[#allocation2 + $0x50] sm:$0xff]
      %v318 = vld [vmem:[#allocation2 + $0x58] sm:$0x3]
      %v319 = vld [vmem:[#allocation2 + $0x60] sm:$0xff]
      %v320 = vld [vmem:[#allocation2 + $0x68] sm:$0x3]
      %v321 = vld [vmem:[#allocation2 + $0x70] sm:$0xff]
      %v322 = vld [vmem:[#allocation2 + $0x78] sm:$0x3]
      %v323 = vld [vmem:[#allocation2 + $0x80] sm:$0xff]
      %v324 = vld [vmem:[#allocation2 + $0x88] sm:$0x3]
      %v325 = vld [vmem:[#allocation2 + $0x90] sm:$0xff]
      %v326 = vld [vmem:[#allocation2 + $0x98] sm:$0x3]
      %v327 = vlaneseq
      %v328 = vshrl.u32 %v327, 7
      %v329 = vsub.s32 0, %v328
      %v330 = vrot.slane %v305, %v329
      %v331 = vmul.f32 %v307, %v330
      %v332 = vmul.f32 %v308, %v330
      %v333 = vmul.f32 %v309, %v330
      %v334 = vmul.f32 %v310, %v330
      %v335 = vmul.f32 %v311, %v330
      %v336 = vmul.f32 %v312, %v330
      %v337 = vmul.f32 %v313, %v330
      %v338 = vmul.f32 %v314, %v330
      %v339 = vmul.f32 %v315, %v330
      %v340 = vmul.f32 %v316, %v330
      %v341 = vmul.f32 %v317, %v330
      %v342 = vmul.f32 %v318, %v330
      %v343 = vmul.f32 %v319, %v330
      %v344 = vmul.f32 %v320, %v330
      %v345 = vmul.f32 %v321, %v330
      %v346 = vmul.f32 %v322, %v330
      %v347 = vmul.f32 %v323, %v330
      %v348 = vmul.f32 %v324, %v330
      %v349 = vmul.f32 %v325, %v330
      %v350 = vmul.f32 %v326, %v330
      %v351 = vlaneseq
      %v352 = vshrl.u32 %v351, 7
      %v353 = vsub.s32 0, %v352
      %v354 = vrot.slane %v306, %v353
      %v355 = vadd.f32 %v331, %v354
      %v356 = vadd.f32 %v332, %v354
      %v357 = vadd.f32 %v333, %v354
      %v358 = vadd.f32 %v334, %v354
      %v359 = vadd.f32 %v335, %v354
      %v360 = vadd.f32 %v336, %v354
      %v361 = vadd.f32 %v337, %v354
      %v362 = vadd.f32 %v338, %v354
      %v363 = vadd.f32 %v339, %v354
      %v364 = vadd.f32 %v340, %v354
      %v365 = vadd.f32 %v341, %v354
      %v366 = vadd.f32 %v342, %v354
      %v367 = vadd.f32 %v343, %v354
      %v368 = vadd.f32 %v344, %v354
      %v369 = vadd.f32 %v345, %v354
      %v370 = vadd.f32 %v346, %v354
      %v371 = vadd.f32 %v347, %v354
      %v372 = vadd.f32 %v348, %v354
      %v373 = vadd.f32 %v349, %v354
      %v374 = vadd.f32 %v350, %v354
      %v375 = vmax.f32 %v355, 0.0
      %v376 = vmax.f32 %v356, 0.0
      %v377 = vmax.f32 %v357, 0.0
      %v378 = vmax.f32 %v358, 0.0
      %v379 = vmax.f32 %v359, 0.0
      %v380 = vmax.f32 %v360, 0.0
      %v381 = vmax.f32 %v361, 0.0
      %v382 = vmax.f32 %v362, 0.0
      %v383 = vmax.f32 %v363, 0.0
      %v384 = vmax.f32 %v364, 0.0
      %v385 = vmax.f32 %v365, 0.0
      %v386 = vmax.f32 %v366, 0.0
      %v387 = vmax.f32 %v367, 0.0
      %v388 = vmax.f32 %v368, 0.0
      %v389 = vmax.f32 %v369, 0.0
      %v390 = vmax.f32 %v370, 0.0
      %v391 = vmax.f32 %v371, 0.0
      %v392 = vmax.f32 %v372, 0.0
      %v393 = vmax.f32 %v373, 0.0
      %v394 = vmax.f32 %v374, 0.0
      %395 = vst [vmem:[#allocation2] sm:$0xff] %v375
      %396 = vst [vmem:[#allocation2 + $0x8] sm:$0x3] %v376
      %397 = vst [vmem:[#allocation2 + $0x10] sm:$0xff] %v377
      %398 = vst [vmem:[#allocation2 + $0x18] sm:$0x3] %v378
      %399 = vst [vmem:[#allocation2 + $0x20] sm:$0xff] %v379
      %400 = vst [vmem:[#allocation2 + $0x28] sm:$0x3] %v380
      %401 = vst [vmem:[#allocation2 + $0x30] sm:$0xff] %v381
      %402 = vst [vmem:[#allocation2 + $0x38] sm:$0x3] %v382
      %403 = vst [vmem:[#allocation2 + $0x40] sm:$0xff] %v383
      %404 = vst [vmem:[#allocation2 + $0x48] sm:$0x3] %v384
      %405 = vst [vmem:[#allocation2 + $0x50] sm:$0xff] %v385
      %406 = vst [vmem:[#allocation2 + $0x58] sm:$0x3] %v386
      %407 = vst [vmem:[#allocation2 + $0x60] sm:$0xff] %v387
      %408 = vst [vmem:[#allocation2 + $0x68] sm:$0x3] %v388
      %409 = vst [vmem:[#allocation2 + $0x70] sm:$0xff] %v389
      %410 = vst [vmem:[#allocation2 + $0x78] sm:$0x3] %v390
      %411 = vst [vmem:[#allocation2 + $0x80] sm:$0xff] %v391
      %412 = vst [vmem:[#allocation2 + $0x88] sm:$0x3] %v392
      %413 = vst [vmem:[#allocation2 + $0x90] sm:$0xff] %v393
      %414 = vst [vmem:[#allocation2 + $0x98] sm:$0x3] %v394
      %415 = vst [vmem:[#allocation2] sm:$0x1] 0.0
      %416 = vst [vmem:[#allocation2 + $0x10] sm:$0x1] 0.0
      %417 = vst [vmem:[#allocation2 + $0x20] sm:$0x1] 0.0
      %418 = vst [vmem:[#allocation2 + $0x30] sm:$0x1] 0.0
      %419 = vst [vmem:[#allocation2 + $0x40] sm:$0x1] 0.0
      %420 = vst [vmem:[#allocation2 + $0x50] sm:$0x1] 0.0
      %421 = vst [vmem:[#allocation2 + $0x60] sm:$0x1] 0.0
      %422 = vst [vmem:[#allocation2 + $0x70] sm:$0x1] 0.0
      %423 = vst [vmem:[#allocation2 + $0x80] sm:$0x1] 0.0
      %424 = vst [vmem:[#allocation2 + $0x90] sm:$0x1] 0.0
      %425 = vst [vmem:[#allocation2 + $0x9] sm:$0x1] 0.0
      %426 = vst [vmem:[#allocation2 + $0x19] sm:$0x1] 0.0
      %427 = vst [vmem:[#allocation2 + $0x29] sm:$0x1] 0.0
      %428 = vst [vmem:[#allocation2 + $0x39] sm:$0x1] 0.0
      %429 = vst [vmem:[#allocation2 + $0x49] sm:$0x1] 0.0
      %430 = vst [vmem:[#allocation2 + $0x59] sm:$0x1] 0.0
      %431 = vst [vmem:[#allocation2 + $0x69] sm:$0x1] 0.0
      %432 = vst [vmem:[#allocation2 + $0x79] sm:$0x1] 0.0
      %433 = vst [vmem:[#allocation2 + $0x89] sm:$0x1] 0.0
      %434 = vst [vmem:[#allocation2 + $0x99] sm:$0x1] 0.0
      %p435 = scmp.eq.s32.totalorder %s21, 0
      // Predicated region
      $region67: #{bottleneck_forward.5} parent=27 // pred_check
        %p436 = pneg %p435
      $region68: #{bottleneck_forward.5} parent=27 // pred_check_branch
        %438 = sbr.rel (%p436) target = $region70
      $region69: #{bottleneck_forward.5} parent=27 // pred_region
        %439 = vst [vmem:[#allocation2] sm:$0xff] 0.0
        %440 = vst [vmem:[#allocation2 + $0x8] sm:$0x3] 0.0
        %s441 = scalar_lea.vmem [#allocation2], 144
        %442 = vst [vmem:[%s441] sm:$0xff] 0.0
        %443 = vst [vmem:[%s441 + $0x8] sm:$0x3] 0.0
      $region70: #{bottleneck_forward.5} parent=27 // pred_fallthru
        _
      %v444 = vld [vmem:[#allocation2] sm:$0xff]
      %v445 = vld [vmem:[#allocation2 + $0x10] sm:$0xff]
      %v446 = vld [vmem:[#allocation2 + $0x20] sm:$0xff]
      %v447 = vld [vmem:[#allocation2 + $0x30] sm:$0xff]
      %v448 = vld [vmem:[#allocation2 + $0x40] sm:$0xff]
      %v449 = vld [vmem:[#allocation2 + $0x50] sm:$0xff]
      %v450 = vld [vmem:[#allocation2 + $0x60] sm:$0xff]
      %v451 = vld [vmem:[#allocation2 + $0x70] sm:$0xff]
      %v452 = vpack.c.bf16 %v445, %v444
      %v453 = vpack.c.bf16 %v447, %v446
      %v454 = vpack.c.bf16 %v449, %v448
      %v455 = vpack.c.bf16 %v451, %v450
      %v456 = vld [vmem:[%s1] sm:$0xf]
      %v457 = vld [vmem:[%s1 + $0x4] sm:$0xf]
      %v458 = vld [vmem:[%s1 + $0x8] sm:$0xf]
      %v459 = vld [vmem:[%s1 + $0xc] sm:$0xf]
      %v460 = vld [vmem:[%s1 + $0x10] sm:$0xf]
      %v461 = vld [vmem:[%s1 + $0x14] sm:$0xf]
      %v462 = vld [vmem:[%s1 + $0x18] sm:$0xf]
      %v463 = vld [vmem:[%s1 + $0x1c] sm:$0xf]
      %v464 = vld [vmem:[%s1 + $0x20] sm:$0xf]
      %v465 = vld [vmem:[%s1 + $0x24] sm:$0xf]
      %v466 = vld [vmem:[%s1 + $0x28] sm:$0xf]
      %v467 = vld [vmem:[%s1 + $0x2c] sm:$0xf]
      %v468 = vld [vmem:[%s1 + $0x30] sm:$0xf]
      %v469 = vld [vmem:[%s1 + $0x34] sm:$0xf]
      %v470 = vld [vmem:[%s1 + $0x38] sm:$0xf]
      %v471 = vld [vmem:[%s1 + $0x3c] sm:$0xf]
      %v472 = vld [vmem:[#allocation2 + $0x1] sm:$0xff]
      %v473 = vld [vmem:[#allocation2 + $0x11] sm:$0xff]
      %v474 = vld [vmem:[#allocation2 + $0x21] sm:$0xff]
      %v475 = vld [vmem:[#allocation2 + $0x31] sm:$0xff]
      %v476 = vld [vmem:[#allocation2 + $0x41] sm:$0xff]
      %v477 = vld [vmem:[#allocation2 + $0x51] sm:$0xff]
      %v478 = vld [vmem:[#allocation2 + $0x61] sm:$0xff]
      %v479 = vld [vmem:[#allocation2 + $0x71] sm:$0xff]
      %v480 = vpack.c.bf16 %v473, %v472
      %v481 = vpack.c.bf16 %v475, %v474
      %v482 = vpack.c.bf16 %v477, %v476
      %v483 = vpack.c.bf16 %v479, %v478
      %s484 = scalar_lea.vmem %s1, 64
      %v485 = vld [vmem:[%s484] sm:$0xf]
      %v486 = vld [vmem:[%s484 + $0x4] sm:$0xf]
      %v487 = vld [vmem:[%s484 + $0x8] sm:$0xf]
      %v488 = vld [vmem:[%s484 + $0xc] sm:$0xf]
      %v489 = vld [vmem:[%s484 + $0x10] sm:$0xf]
      %v490 = vld [vmem:[%s484 + $0x14] sm:$0xf]
      %v491 = vld [vmem:[%s484 + $0x18] sm:$0xf]
      %v492 = vld [vmem:[%s484 + $0x1c] sm:$0xf]
      %v493 = vld [vmem:[%s484 + $0x20] sm:$0xf]
      %v494 = vld [vmem:[%s484 + $0x24] sm:$0xf]
      %v495 = vld [vmem:[%s484 + $0x28] sm:$0xf]
      %v496 = vld [vmem:[%s484 + $0x2c] sm:$0xf]
      %v497 = vld [vmem:[%s484 + $0x30] sm:$0xf]
      %v498 = vld [vmem:[%s484 + $0x34] sm:$0xf]
      %v499 = vld [vmem:[%s484 + $0x38] sm:$0xf]
      %v500 = vld [vmem:[%s484 + $0x3c] sm:$0xf]
      %v517 = vunpack.c.l.b16 %v485
      %v518 = vunpack.c.l.b16 %v486
      %v519 = vunpack.c.l.b16 %v487
      %v520 = vunpack.c.l.b16 %v488
      %v521 = vunpack.c.l.b16 %v489
      %v522 = vunpack.c.l.b16 %v490
      %v523 = vunpack.c.l.b16 %v491
      %v524 = vunpack.c.l.b16 %v492
      %v525 = vunpack.c.l.b16 %v493
      %v526 = vunpack.c.l.b16 %v494
      %v527 = vunpack.c.l.b16 %v495
      %v528 = vunpack.c.l.b16 %v496
      %v529 = vunpack.c.l.b16 %v497
      %v530 = vunpack.c.l.b16 %v498
      %v531 = vunpack.c.l.b16 %v499
      %v532 = vunpack.c.l.b16 %v500
      %v533 = vpack.c.b16 %v518, %v517
      %v534 = vpack.c.b16 %v520, %v519
      %v535 = vpack.c.b16 %v522, %v521
      %v536 = vpack.c.b16 %v524, %v523
      %v537 = vpack.c.b16 %v526, %v525
      %v538 = vpack.c.b16 %v528, %v527
      %v539 = vpack.c.b16 %v530, %v529
      %v540 = vpack.c.b16 %v532, %v531
      %549 = vmatprep.subr.bf16.mxu0 0
      %550 = vmatpush1.bf16.msra.mxu0 %v540
      %551 = vmatprep.subr.bf16.mxu0 0
      %552 = vmatpush1.bf16.msra.mxu0 %v539
      %553 = vmatprep.subr.bf16.mxu0 0
      %554 = vmatpush1.bf16.msra.mxu0 %v538
      %555 = vmatprep.subr.bf16.mxu0 0
      %556 = vmatpush1.bf16.msra.mxu0 %v537
      %557 = vmatprep.subr.bf16.mxu0 0
      %558 = vmatpush1.bf16.msra.mxu0 %v536
      %559 = vmatprep.subr.bf16.mxu0 0
      %560 = vmatpush1.bf16.msra.mxu0 %v535
      %561 = vmatprep.subr.bf16.mxu0 0
      %562 = vmatpush1.bf16.msra.mxu0 %v534
      %563 = vmatprep.subr.bf16.mxu0 0
      %564 = vmatpush1.bf16.msra.mxu0 %v533
      %565 = vmatprep.subr.bf16.mxu0 0
      %566 = vmatpush2.bf16.msra.mxu0 0
      %567 = vmatprep.subr.bf16.mxu0 0
      %568 = vmatpush2.bf16.msra.mxu0 0
      %569 = vmatprep.subr.bf16.mxu0 0
      %570 = vmatpush2.bf16.msra.mxu0 0
      %571 = vmatprep.subr.bf16.mxu0 0
      %572 = vmatpush2.bf16.msra.mxu0 0
      %573 = vmatprep.subr.bf16.mxu0 0
      %574 = vmatpush2.bf16.msra.mxu0 0
      %575 = vmatprep.subr.bf16.mxu0 0
      %576 = vmatpush2.bf16.msra.mxu0 0
      %577 = vmatprep.subr.bf16.mxu0 0
      %578 = vmatpush2.bf16.msra.mxu0 0
      %579 = vmatprep.subr.bf16.mxu0 0
      %580 = vmatpush2.bf16.msra.mxu0 0
      %581 = vmatprep.mubr.bf16.mxu0 0
      %582 = vmatmul.mubr.bf16.gmra.mxu0 %v480
      %v583 = vpop.f32.mrf.mxu0
      %v584 = vadd.f32 0.0, %v583
      %v585 = vpop.f32.mrf.mxu0
      %v586 = vpop.f32.mrf.mxu0
      %v587 = vadd.f32 0.0, %v586
      %v588 = vpop.f32.mrf.mxu0
      %589 = vmatprep.mubr.bf16.mxu0 0
      %590 = vmatmul.mubr.bf16.gmra.mxu0 %v481
      %v591 = vpop.f32.mrf.mxu0
      %v592 = vadd.f32 0.0, %v591
      %v593 = vpop.f32.mrf.mxu0
      %v594 = vpop.f32.mrf.mxu0
      %v595 = vadd.f32 0.0, %v594
      %v596 = vpop.f32.mrf.mxu0
      %597 = vmatprep.mubr.bf16.mxu0 0
      %598 = vmatmul.mubr.bf16.gmra.mxu0 %v482
      %v599 = vpop.f32.mrf.mxu0
      %v600 = vadd.f32 0.0, %v599
      %v601 = vpop.f32.mrf.mxu0
      %v602 = vpop.f32.mrf.mxu0
      %v603 = vadd.f32 0.0, %v602
      %v604 = vpop.f32.mrf.mxu0
      %605 = vmatprep.mubr.bf16.mxu0 0
      %606 = vmatmul.mubr.bf16.gmra.mxu0 %v483
      %v607 = vpop.f32.mrf.mxu0
      %v608 = vadd.f32 0.0, %v607
      %v609 = vpop.f32.mrf.mxu0
      %v610 = vpop.f32.mrf.mxu0
      %v611 = vadd.f32 0.0, %v610
      %v612 = vpop.f32.mrf.mxu0
      %613 = vdwg.mxu0
      %v630 = vunpack.c.l.b16 %v456
      %v631 = vunpack.c.l.b16 %v457
      %v632 = vunpack.c.l.b16 %v458
      %v633 = vunpack.c.l.b16 %v459
      %v634 = vunpack.c.l.b16 %v460
      %v635 = vunpack.c.l.b16 %v461
      %v636 = vunpack.c.l.b16 %v462
      %v637 = vunpack.c.l.b16 %v463
      %v638 = vunpack.c.l.b16 %v464
      %v639 = vunpack.c.l.b16 %v465
      %v640 = vunpack.c.l.b16 %v466
      %v641 = vunpack.c.l.b16 %v467
      %v642 = vunpack.c.l.b16 %v468
      %v643 = vunpack.c.l.b16 %v469
      %v644 = vunpack.c.l.b16 %v470
      %v645 = vunpack.c.l.b16 %v471
      %v646 = vpack.c.b16 %v631, %v630
      %v647 = vpack.c.b16 %v633, %v632
      %v648 = vpack.c.b16 %v635, %v634
      %v649 = vpack.c.b16 %v637, %v636
      %v650 = vpack.c.b16 %v639, %v638
      %v651 = vpack.c.b16 %v641, %v640
      %v652 = vpack.c.b16 %v643, %v642
      %v653 = vpack.c.b16 %v645, %v644
      %662 = vmatprep.subr.bf16.mxu0 0
      %663 = vmatpush1.bf16.msra.mxu0 %v653
      %664 = vmatprep.subr.bf16.mxu0 0
      %665 = vmatpush1.bf16.msra.mxu0 %v652
      %666 = vmatprep.subr.bf16.mxu0 0
      %667 = vmatpush1.bf16.msra.mxu0 %v651
      %668 = vmatprep.subr.bf16.mxu0 0
      %669 = vmatpush1.bf16.msra.mxu0 %v650
      %670 = vmatprep.subr.bf16.mxu0 0
      %671 = vmatpush1.bf16.msra.mxu0 %v649
      %672 = vmatprep.subr.bf16.mxu0 0
      %673 = vmatpush1.bf16.msra.mxu0 %v648
      %674 = vmatprep.subr.bf16.mxu0 0
      %675 = vmatpush1.bf16.msra.mxu0 %v647
      %676 = vmatprep.subr.bf16.mxu0 0
      %677 = vmatpush1.bf16.msra.mxu0 %v646
      %678 = vmatprep.subr.bf16.mxu0 0
      %679 = vmatpush2.bf16.msra.mxu0 0
      %680 = vmatprep.subr.bf16.mxu0 0
      %681 = vmatpush2.bf16.msra.mxu0 0
      %682 = vmatprep.subr.bf16.mxu0 0
      %683 = vmatpush2.bf16.msra.mxu0 0
      %684 = vmatprep.subr.bf16.mxu0 0
      %685 = vmatpush2.bf16.msra.mxu0 0
      %686 = vmatprep.subr.bf16.mxu0 0
      %687 = vmatpush2.bf16.msra.mxu0 0
      %688 = vmatprep.subr.bf16.mxu0 0
      %689 = vmatpush2.bf16.msra.mxu0 0
      %690 = vmatprep.subr.bf16.mxu0 0
      %691 = vmatpush2.bf16.msra.mxu0 0
      %692 = vmatprep.subr.bf16.mxu0 0
      %693 = vmatpush2.bf16.msra.mxu0 0
      %694 = vmatprep.mubr.bf16.mxu0 0
      %695 = vmatmul.mubr.bf16.gmra.mxu0 %v452
      %v696 = vpop.f32.mrf.mxu0
      %v697 = vadd.f32 %v584, %v696
      %v698 = vpop.f32.mrf.mxu0
      %v699 = vpop.f32.mrf.mxu0
      %v700 = vadd.f32 %v587, %v699
      %v701 = vpop.f32.mrf.mxu0
      %702 = vmatprep.mubr.bf16.mxu0 0
      %703 = vmatmul.mubr.bf16.gmra.mxu0 %v453
      %v704 = vpop.f32.mrf.mxu0
      %v705 = vadd.f32 %v592, %v704
      %v706 = vpop.f32.mrf.mxu0
      %v707 = vpop.f32.mrf.mxu0
      %v708 = vadd.f32 %v595, %v707
      %v709 = vpop.f32.mrf.mxu0
      %710 = vmatprep.mubr.bf16.mxu0 0
      %711 = vmatmul.mubr.bf16.gmra.mxu0 %v454
      %v712 = vpop.f32.mrf.mxu0
      %v713 = vadd.f32 %v600, %v712
      %v714 = vpop.f32.mrf.mxu0
      %v715 = vpop.f32.mrf.mxu0
      %v716 = vadd.f32 %v603, %v715
      %v717 = vpop.f32.mrf.mxu0
      %718 = vmatprep.mubr.bf16.mxu0 0
      %719 = vmatmul.mubr.bf16.gmra.mxu0 %v455
      %v720 = vpop.f32.mrf.mxu0
      %v721 = vadd.f32 %v608, %v720
      %v722 = vpop.f32.mrf.mxu0
      %v723 = vpop.f32.mrf.mxu0
      %v724 = vadd.f32 %v611, %v723
      %v725 = vpop.f32.mrf.mxu0
      %726 = vdwg.mxu0
      %v727 = vld [vmem:[#allocation2 + $0x2] sm:$0xff]
      %v728 = vld [vmem:[#allocation2 + $0x12] sm:$0xff]
      %v729 = vld [vmem:[#allocation2 + $0x22] sm:$0xff]
      %v730 = vld [vmem:[#allocation2 + $0x32] sm:$0xff]
      %v731 = vld [vmem:[#allocation2 + $0x42] sm:$0xff]
      %v732 = vld [vmem:[#allocation2 + $0x52] sm:$0xff]
      %v733 = vld [vmem:[#allocation2 + $0x62] sm:$0xff]
      %v734 = vld [vmem:[#allocation2 + $0x72] sm:$0xff]
      %v735 = vpack.c.bf16 %v728, %v727
      %v736 = vpack.c.bf16 %v730, %v729
      %v737 = vpack.c.bf16 %v732, %v731
      %v738 = vpack.c.bf16 %v734, %v733
      %s739 = scalar_lea.vmem %s1, 128
      %v740 = vld [vmem:[%s739] sm:$0xf]
      %v741 = vld [vmem:[%s739 + $0x4] sm:$0xf]
      %v742 = vld [vmem:[%s739 + $0x8] sm:$0xf]
      %v743 = vld [vmem:[%s739 + $0xc] sm:$0xf]
      %v744 = vld [vmem:[%s739 + $0x10] sm:$0xf]
      %v745 = vld [vmem:[%s739 + $0x14] sm:$0xf]
      %v746 = vld [vmem:[%s739 + $0x18] sm:$0xf]
      %v747 = vld [vmem:[%s739 + $0x1c] sm:$0xf]
      %v748 = vld [vmem:[%s739 + $0x20] sm:$0xf]
      %v749 = vld [vmem:[%s739 + $0x24] sm:$0xf]
      %v750 = vld [vmem:[%s739 + $0x28] sm:$0xf]
      %v751 = vld [vmem:[%s739 + $0x2c] sm:$0xf]
      %v752 = vld [vmem:[%s739 + $0x30] sm:$0xf]
      %v753 = vld [vmem:[%s739 + $0x34] sm:$0xf]
      %v754 = vld [vmem:[%s739 + $0x38] sm:$0xf]
      %v755 = vld [vmem:[%s739 + $0x3c] sm:$0xf]
      %v772 = vunpack.c.l.b16 %v740
      %v773 = vunpack.c.l.b16 %v741
      %v774 = vunpack.c.l.b16 %v742
      %v775 = vunpack.c.l.b16 %v743
      %v776 = vunpack.c.l.b16 %v744
      %v777 = vunpack.c.l.b16 %v745
      %v778 = vunpack.c.l.b16 %v746
      %v779 = vunpack.c.l.b16 %v747
      %v780 = vunpack.c.l.b16 %v748
      %v781 = vunpack.c.l.b16 %v749
      %v782 = vunpack.c.l.b16 %v750
      %v783 = vunpack.c.l.b16 %v751
      %v784 = vunpack.c.l.b16 %v752
      %v785 = vunpack.c.l.b16 %v753
      %v786 = vunpack.c.l.b16 %v754
      %v787 = vunpack.c.l.b16 %v755
      %v788 = vpack.c.b16 %v773, %v772
      %v789 = vpack.c.b16 %v775, %v774
      %v790 = vpack.c.b16 %v777, %v776
      %v791 = vpack.c.b16 %v779, %v778
      %v792 = vpack.c.b16 %v781, %v780
      %v793 = vpack.c.b16 %v783, %v782
      %v794 = vpack.c.b16 %v785, %v784
      %v795 = vpack.c.b16 %v787, %v786
      %804 = vmatprep.subr.bf16.mxu0 0
      %805 = vmatpush1.bf16.msra.mxu0 %v795
      %806 = vmatprep.subr.bf16.mxu0 0
      %807 = vmatpush1.bf16.msra.mxu0 %v794
      %808 = vmatprep.subr.bf16.mxu0 0
      %809 = vmatpush1.bf16.msra.mxu0 %v793
      %810 = vmatprep.subr.bf16.mxu0 0
      %811 = vmatpush1.bf16.msra.mxu0 %v792
      %812 = vmatprep.subr.bf16.mxu0 0
      %813 = vmatpush1.bf16.msra.mxu0 %v791
      %814 = vmatprep.subr.bf16.mxu0 0
      %815 = vmatpush1.bf16.msra.mxu0 %v790
      %816 = vmatprep.subr.bf16.mxu0 0
      %817 = vmatpush1.bf16.msra.mxu0 %v789
      %818 = vmatprep.subr.bf16.mxu0 0
      %819 = vmatpush1.bf16.msra.mxu0 %v788
      %820 = vmatprep.subr.bf16.mxu0 0
      %821 = vmatpush2.bf16.msra.mxu0 0
      %822 = vmatprep.subr.bf16.mxu0 0
      %823 = vmatpush2.bf16.msra.mxu0 0
      %824 = vmatprep.subr.bf16.mxu0 0
      %825 = vmatpush2.bf16.msra.mxu0 0
      %826 = vmatprep.subr.bf16.mxu0 0
      %827 = vmatpush2.bf16.msra.mxu0 0
      %828 = vmatprep.subr.bf16.mxu0 0
      %829 = vmatpush2.bf16.msra.mxu0 0
      %830 = vmatprep.subr.bf16.mxu0 0
      %831 = vmatpush2.bf16.msra.mxu0 0
      %832 = vmatprep.subr.bf16.mxu0 0
      %833 = vmatpush2.bf16.msra.mxu0 0
      %834 = vmatprep.subr.bf16.mxu0 0
      %835 = vmatpush2.bf16.msra.mxu0 0
      %836 = vmatprep.mubr.bf16.mxu0 0
      %837 = vmatmul.mubr.bf16.gmra.mxu0 %v735
      %v838 = vpop.f32.mrf.mxu0
      %v839 = vadd.f32 0.0, %v838
      %v840 = vpop.f32.mrf.mxu0
      %v841 = vpop.f32.mrf.mxu0
      %v842 = vadd.f32 0.0, %v841
      %v843 = vpop.f32.mrf.mxu0
      %844 = vmatprep.mubr.bf16.mxu0 0
      %845 = vmatmul.mubr.bf16.gmra.mxu0 %v736
      %v846 = vpop.f32.mrf.mxu0
      %v847 = vadd.f32 0.0, %v846
      %v848 = vpop.f32.mrf.mxu0
      %v849 = vpop.f32.mrf.mxu0
      %v850 = vadd.f32 0.0, %v849
      %v851 = vpop.f32.mrf.mxu0
      %852 = vmatprep.mubr.bf16.mxu0 0
      %853 = vmatmul.mubr.bf16.gmra.mxu0 %v737
      %v854 = vpop.f32.mrf.mxu0
      %v855 = vadd.f32 0.0, %v854
      %v856 = vpop.f32.mrf.mxu0
      %v857 = vpop.f32.mrf.mxu0
      %v858 = vadd.f32 0.0, %v857
      %v859 = vpop.f32.mrf.mxu0
      %860 = vmatprep.mubr.bf16.mxu0 0
      %861 = vmatmul.mubr.bf16.gmra.mxu0 %v738
      %v862 = vpop.f32.mrf.mxu0
      %v863 = vadd.f32 0.0, %v862
      %v864 = vpop.f32.mrf.mxu0
      %v865 = vpop.f32.mrf.mxu0
      %v866 = vadd.f32 0.0, %v865
      %v867 = vpop.f32.mrf.mxu0
      %868 = vdwg.mxu0
      %v869 = vadd.f32 %v697, %v839
      %v870 = vadd.f32 %v700, %v842
      %v871 = vadd.f32 %v705, %v847
      %v872 = vadd.f32 %v708, %v850
      %v873 = vadd.f32 %v713, %v855
      %v874 = vadd.f32 %v716, %v858
      %v875 = vadd.f32 %v721, %v863
      %v876 = vadd.f32 %v724, %v866
      %s877 = scalar_lea.vmem [#allocation2], 16
      %v878 = vld [vmem:[%s877] sm:$0xff]
      %v879 = vld [vmem:[%s877 + $0x10] sm:$0xff]
      %v880 = vld [vmem:[%s877 + $0x20] sm:$0xff]
      %v881 = vld [vmem:[%s877 + $0x30] sm:$0xff]
      %v882 = vld [vmem:[%s877 + $0x40] sm:$0xff]
      %v883 = vld [vmem:[%s877 + $0x50] sm:$0xff]
      %v884 = vld [vmem:[%s877 + $0x60] sm:$0xff]
      %v885 = vld [vmem:[%s877 + $0x70] sm:$0xff]
      %v886 = vpack.c.bf16 %v879, %v878
      %v887 = vpack.c.bf16 %v881, %v880
      %v888 = vpack.c.bf16 %v883, %v882
      %v889 = vpack.c.bf16 %v885, %v884
      %s890 = scalar_lea.vmem %s1, 192
      %v891 = vld [vmem:[%s890] sm:$0xf]
      %v892 = vld [vmem:[%s890 + $0x4] sm:$0xf]
      %v893 = vld [vmem:[%s890 + $0x8] sm:$0xf]
      %v894 = vld [vmem:[%s890 + $0xc] sm:$0xf]
      %v895 = vld [vmem:[%s890 + $0x10] sm:$0xf]
      %v896 = vld [vmem:[%s890 + $0x14] sm:$0xf]
      %v897 = vld [vmem:[%s890 + $0x18] sm:$0xf]
      %v898 = vld [vmem:[%s890 + $0x1c] sm:$0xf]
      %v899 = vld [vmem:[%s890 + $0x20] sm:$0xf]
      %v900 = vld [vmem:[%s890 + $0x24] sm:$0xf]
      %v901 = vld [vmem:[%s890 + $0x28] sm:$0xf]
      %v902 = vld [vmem:[%s890 + $0x2c] sm:$0xf]
      %v903 = vld [vmem:[%s890 + $0x30] sm:$0xf]
      %v904 = vld [vmem:[%s890 + $0x34] sm:$0xf]
      %v905 = vld [vmem:[%s890 + $0x38] sm:$0xf]
      %v906 = vld [vmem:[%s890 + $0x3c] sm:$0xf]
      %v923 = vunpack.c.l.b16 %v891
      %v924 = vunpack.c.l.b16 %v892
      %v925 = vunpack.c.l.b16 %v893
      %v926 = vunpack.c.l.b16 %v894
      %v927 = vunpack.c.l.b16 %v895
      %v928 = vunpack.c.l.b16 %v896
      %v929 = vunpack.c.l.b16 %v897
      %v930 = vunpack.c.l.b16 %v898
      %v931 = vunpack.c.l.b16 %v899
      %v932 = vunpack.c.l.b16 %v900
      %v933 = vunpack.c.l.b16 %v901
      %v934 = vunpack.c.l.b16 %v902
      %v935 = vunpack.c.l.b16 %v903
      %v936 = vunpack.c.l.b16 %v904
      %v937 = vunpack.c.l.b16 %v905
      %v938 = vunpack.c.l.b16 %v906
      %v939 = vpack.c.b16 %v924, %v923
      %v940 = vpack.c.b16 %v926, %v925
      %v941 = vpack.c.b16 %v928, %v927
      %v942 = vpack.c.b16 %v930, %v929
      %v943 = vpack.c.b16 %v932, %v931
      %v944 = vpack.c.b16 %v934, %v933
      %v945 = vpack.c.b16 %v936, %v935
      %v946 = vpack.c.b16 %v938, %v937
      %955 = vmatprep.subr.bf16.mxu0 0
      %956 = vmatpush1.bf16.msra.mxu0 %v946
      %957 = vmatprep.subr.bf16.mxu0 0
      %958 = vmatpush1.bf16.msra.mxu0 %v945
      %959 = vmatprep.subr.bf16.mxu0 0
      %960 = vmatpush1.bf16.msra.mxu0 %v944
      %961 = vmatprep.subr.bf16.mxu0 0
      %962 = vmatpush1.bf16.msra.mxu0 %v943
      %963 = vmatprep.subr.bf16.mxu0 0
      %964 = vmatpush1.bf16.msra.mxu0 %v942
      %965 = vmatprep.subr.bf16.mxu0 0
      %966 = vmatpush1.bf16.msra.mxu0 %v941
      %967 = vmatprep.subr.bf16.mxu0 0
      %968 = vmatpush1.bf16.msra.mxu0 %v940
      %969 = vmatprep.subr.bf16.mxu0 0
      %970 = vmatpush1.bf16.msra.mxu0 %v939
      %971 = vmatprep.subr.bf16.mxu0 0
      %972 = vmatpush2.bf16.msra.mxu0 0
      %973 = vmatprep.subr.bf16.mxu0 0
      %974 = vmatpush2.bf16.msra.mxu0 0
      %975 = vmatprep.subr.bf16.mxu0 0
      %976 = vmatpush2.bf16.msra.mxu0 0
      %977 = vmatprep.subr.bf16.mxu0 0
      %978 = vmatpush2.bf16.msra.mxu0 0
      %979 = vmatprep.subr.bf16.mxu0 0
      %980 = vmatpush2.bf16.msra.mxu0 0
      %981 = vmatprep.subr.bf16.mxu0 0
      %982 = vmatpush2.bf16.msra.mxu0 0
      %983 = vmatprep.subr.bf16.mxu0 0
      %984 = vmatpush2.bf16.msra.mxu0 0
      %985 = vmatprep.subr.bf16.mxu0 0
      %986 = vmatpush2.bf16.msra.mxu0 0
      %987 = vmatprep.mubr.bf16.mxu0 0
      %988 = vmatmul.mubr.bf16.gmra.mxu0 %v886
      %v989 = vpop.f32.mrf.mxu0
      %v990 = vadd.f32 0.0, %v989
      %v991 = vpop.f32.mrf.mxu0
      %v992 = vpop.f32.mrf.mxu0
      %v993 = vadd.f32 0.0, %v992
      %v994 = vpop.f32.mrf.mxu0
      %995 = vmatprep.mubr.bf16.mxu0 0
      %996 = vmatmul.mubr.bf16.gmra.mxu0 %v887
      %v997 = vpop.f32.mrf.mxu0
      %v998 = vadd.f32 0.0, %v997
      %v999 = vpop.f32.mrf.mxu0
      %v1000 = vpop.f32.mrf.mxu0
      %v1001 = vadd.f32 0.0, %v1000
      %v1002 = vpop.f32.mrf.mxu0
      %1003 = vmatprep.mubr.bf16.mxu0 0
      %1004 = vmatmul.mubr.bf16.gmra.mxu0 %v888
      %v1005 = vpop.f32.mrf.mxu0
      %v1006 = vadd.f32 0.0, %v1005
      %v1007 = vpop.f32.mrf.mxu0
      %v1008 = vpop.f32.mrf.mxu0
      %v1009 = vadd.f32 0.0, %v1008
      %v1010 = vpop.f32.mrf.mxu0
      %1011 = vmatprep.mubr.bf16.mxu0 0
      %1012 = vmatmul.mubr.bf16.gmra.mxu0 %v889
      %v1013 = vpop.f32.mrf.mxu0
      %v1014 = vadd.f32 0.0, %v1013
      %v1015 = vpop.f32.mrf.mxu0
      %v1016 = vpop.f32.mrf.mxu0
      %v1017 = vadd.f32 0.0, %v1016
      %v1018 = vpop.f32.mrf.mxu0
      %1019 = vdwg.mxu0
      %v1020 = vadd.f32 %v869, %v990
      %v1021 = vadd.f32 %v870, %v993
      %v1022 = vadd.f32 %v871, %v998
      %v1023 = vadd.f32 %v872, %v1001
      %v1024 = vadd.f32 %v873, %v1006
      %v1025 = vadd.f32 %v874, %v1009
      %v1026 = vadd.f32 %v875, %v1014
      %v1027 = vadd.f32 %v876, %v1017
      %v1028 = vld [vmem:[%s877 + $0x1] sm:$0xff]
      %v1029 = vld [vmem:[%s877 + $0x11] sm:$0xff]
      %v1030 = vld [vmem:[%s877 + $0x21] sm:$0xff]
      %v1031 = vld [vmem:[%s877 + $0x31] sm:$0xff]
      %v1032 = vld [vmem:[%s877 + $0x41] sm:$0xff]
      %v1033 = vld [vmem:[%s877 + $0x51] sm:$0xff]
      %v1034 = vld [vmem:[%s877 + $0x61] sm:$0xff]
      %v1035 = vld [vmem:[%s877 + $0x71] sm:$0xff]
      %v1036 = vpack.c.bf16 %v1029, %v1028
      %v1037 = vpack.c.bf16 %v1031, %v1030
      %v1038 = vpack.c.bf16 %v1033, %v1032
      %v1039 = vpack.c.bf16 %v1035, %v1034
      %s1040 = scalar_lea.vmem %s1, 256
      %v1041 = vld [vmem:[%s1040] sm:$0xf]
      %v1042 = vld [vmem:[%s1040 + $0x4] sm:$0xf]
      %v1043 = vld [vmem:[%s1040 + $0x8] sm:$0xf]
      %v1044 = vld [vmem:[%s1040 + $0xc] sm:$0xf]
      %v1045 = vld [vmem:[%s1040 + $0x10] sm:$0xf]
      %v1046 = vld [vmem:[%s1040 + $0x14] sm:$0xf]
      %v1047 = vld [vmem:[%s1040 + $0x18] sm:$0xf]
      %v1048 = vld [vmem:[%s1040 + $0x1c] sm:$0xf]
      %v1049 = vld [vmem:[%s1040 + $0x20] sm:$0xf]
      %v1050 = vld [vmem:[%s1040 + $0x24] sm:$0xf]
      %v1051 = vld [vmem:[%s1040 + $0x28] sm:$0xf]
      %v1052 = vld [vmem:[%s1040 + $0x2c] sm:$0xf]
      %v1053 = vld [vmem:[%s1040 + $0x30] sm:$0xf]
      %v1054 = vld [vmem:[%s1040 + $0x34] sm:$0xf]
      %v1055 = vld [vmem:[%s1040 + $0x38] sm:$0xf]
      %v1056 = vld [vmem:[%s1040 + $0x3c] sm:$0xf]
      %v1073 = vunpack.c.l.b16 %v1041
      %v1074 = vunpack.c.l.b16 %v1042
      %v1075 = vunpack.c.l.b16 %v1043
      %v1076 = vunpack.c.l.b16 %v1044
      %v1077 = vunpack.c.l.b16 %v1045
      %v1078 = vunpack.c.l.b16 %v1046
      %v1079 = vunpack.c.l.b16 %v1047
      %v1080 = vunpack.c.l.b16 %v1048
      %v1081 = vunpack.c.l.b16 %v1049
      %v1082 = vunpack.c.l.b16 %v1050
      %v1083 = vunpack.c.l.b16 %v1051
      %v1084 = vunpack.c.l.b16 %v1052
      %v1085 = vunpack.c.l.b16 %v1053
      %v1086 = vunpack.c.l.b16 %v1054
      %v1087 = vunpack.c.l.b16 %v1055
      %v1088 = vunpack.c.l.b16 %v1056
      %v1089 = vpack.c.b16 %v1074, %v1073
      %v1090 = vpack.c.b16 %v1076, %v1075
      %v1091 = vpack.c.b16 %v1078, %v1077
      %v1092 = vpack.c.b16 %v1080, %v1079
      %v1093 = vpack.c.b16 %v1082, %v1081
      %v1094 = vpack.c.b16 %v1084, %v1083
      %v1095 = vpack.c.b16 %v1086, %v1085
      %v1096 = vpack.c.b16 %v1088, %v1087
      %1105 = vmatprep.subr.bf16.mxu0 0
      %1106 = vmatpush1.bf16.msra.mxu0 %v1096
      %1107 = vmatprep.subr.bf16.mxu0 0
      %1108 = vmatpush1.bf16.msra.mxu0 %v1095
      %1109 = vmatprep.subr.bf16.mxu0 0
      %1110 = vmatpush1.bf16.msra.mxu0 %v1094
      %1111 = vmatprep.subr.bf16.mxu0 0
      %1112 = vmatpush1.bf16.msra.mxu0 %v1093
      %1113 = vmatprep.subr.bf16.mxu0 0
      %1114 = vmatpush1.bf16.msra.mxu0 %v1092
      %1115 = vmatprep.subr.bf16.mxu0 0
      %1116 = vmatpush1.bf16.msra.mxu0 %v1091
      %1117 = vmatprep.subr.bf16.mxu0 0
      %1118 = vmatpush1.bf16.msra.mxu0 %v1090
      %1119 = vmatprep.subr.bf16.mxu0 0
      %1120 = vmatpush1.bf16.msra.mxu0 %v1089
      %1121 = vmatprep.subr.bf16.mxu0 0
      %1122 = vmatpush2.bf16.msra.mxu0 0
      %1123 = vmatprep.subr.bf16.mxu0 0
      %1124 = vmatpush2.bf16.msra.mxu0 0
      %1125 = vmatprep.subr.bf16.mxu0 0
      %1126 = vmatpush2.bf16.msra.mxu0 0
      %1127 = vmatprep.subr.bf16.mxu0 0
      %1128 = vmatpush2.bf16.msra.mxu0 0
      %1129 = vmatprep.subr.bf16.mxu0 0
      %1130 = vmatpush2.bf16.msra.mxu0 0
      %1131 = vmatprep.subr.bf16.mxu0 0
      %1132 = vmatpush2.bf16.msra.mxu0 0
      %1133 = vmatprep.subr.bf16.mxu0 0
      %1134 = vmatpush2.bf16.msra.mxu0 0
      %1135 = vmatprep.subr.bf16.mxu0 0
      %1136 = vmatpush2.bf16.msra.mxu0 0
      %1137 = vmatprep.mubr.bf16.mxu0 0
      %1138 = vmatmul.mubr.bf16.gmra.mxu0 %v1036
      %v1139 = vpop.f32.mrf.mxu0
      %v1140 = vadd.f32 0.0, %v1139
      %v1141 = vpop.f32.mrf.mxu0
      %v1142 = vpop.f32.mrf.mxu0
      %v1143 = vadd.f32 0.0, %v1142
      %v1144 = vpop.f32.mrf.mxu0
      %1145 = vmatprep.mubr.bf16.mxu0 0
      %1146 = vmatmul.mubr.bf16.gmra.mxu0 %v1037
      %v1147 = vpop.f32.mrf.mxu0
      %v1148 = vadd.f32 0.0, %v1147
      %v1149 = vpop.f32.mrf.mxu0
      %v1150 = vpop.f32.mrf.mxu0
      %v1151 = vadd.f32 0.0, %v1150
      %v1152 = vpop.f32.mrf.mxu0
      %1153 = vmatprep.mubr.bf16.mxu0 0
      %1154 = vmatmul.mubr.bf16.gmra.mxu0 %v1038
      %v1155 = vpop.f32.mrf.mxu0
      %v1156 = vadd.f32 0.0, %v1155
      %v1157 = vpop.f32.mrf.mxu0
      %v1158 = vpop.f32.mrf.mxu0
      %v1159 = vadd.f32 0.0, %v1158
      %v1160 = vpop.f32.mrf.mxu0
      %1161 = vmatprep.mubr.bf16.mxu0 0
      %1162 = vmatmul.mubr.bf16.gmra.mxu0 %v1039
      %v1163 = vpop.f32.mrf.mxu0
      %v1164 = vadd.f32 0.0, %v1163
      %v1165 = vpop.f32.mrf.mxu0
      %v1166 = vpop.f32.mrf.mxu0
      %v1167 = vadd.f32 0.0, %v1166
      %v1168 = vpop.f32.mrf.mxu0
      %1169 = vdwg.mxu0
      %v1170 = vadd.f32 %v1020, %v1140
      %v1171 = vadd.f32 %v1021, %v1143
      %v1172 = vadd.f32 %v1022, %v1148
      %v1173 = vadd.f32 %v1023, %v1151
      %v1174 = vadd.f32 %v1024, %v1156
      %v1175 = vadd.f32 %v1025, %v1159
      %v1176 = vadd.f32 %v1026, %v1164
      %v1177 = vadd.f32 %v1027, %v1167
      %v1178 = vld [vmem:[%s877 + $0x2] sm:$0xff]
      %v1179 = vld [vmem:[%s877 + $0x12] sm:$0xff]
      %v1180 = vld [vmem:[%s877 + $0x22] sm:$0xff]
      %v1181 = vld [vmem:[%s877 + $0x32] sm:$0xff]
      %v1182 = vld [vmem:[%s877 + $0x42] sm:$0xff]
      %v1183 = vld [vmem:[%s877 + $0x52] sm:$0xff]
      %v1184 = vld [vmem:[%s877 + $0x62] sm:$0xff]
      %v1185 = vld [vmem:[%s877 + $0x72] sm:$0xff]
      %v1186 = vpack.c.bf16 %v1179, %v1178
      %v1187 = vpack.c.bf16 %v1181, %v1180
      %v1188 = vpack.c.bf16 %v1183, %v1182
      %v1189 = vpack.c.bf16 %v1185, %v1184
      %s1190 = scalar_lea.vmem %s1, 320
      %v1191 = vld [vmem:[%s1190] sm:$0xf]
      %v1192 = vld [vmem:[%s1190 + $0x4] sm:$0xf]
      %v1193 = vld [vmem:[%s1190 + $0x8] sm:$0xf]
      %v1194 = vld [vmem:[%s1190 + $0xc] sm:$0xf]
      %v1195 = vld [vmem:[%s1190 + $0x10] sm:$0xf]
      %v1196 = vld [vmem:[%s1190 + $0x14] sm:$0xf]
      %v1197 = vld [vmem:[%s1190 + $0x18] sm:$0xf]
      %v1198 = vld [vmem:[%s1190 + $0x1c] sm:$0xf]
      %v1199 = vld [vmem:[%s1190 + $0x20] sm:$0xf]
      %v1200 = vld [vmem:[%s1190 + $0x24] sm:$0xf]
      %v1201 = vld [vmem:[%s1190 + $0x28] sm:$0xf]
      %v1202 = vld [vmem:[%s1190 + $0x2c] sm:$0xf]
      %v1203 = vld [vmem:[%s1190 + $0x30] sm:$0xf]
      %v1204 = vld [vmem:[%s1190 + $0x34] sm:$0xf]
      %v1205 = vld [vmem:[%s1190 + $0x38] sm:$0xf]
      %v1206 = vld [vmem:[%s1190 + $0x3c] sm:$0xf]
      %v1223 = vunpack.c.l.b16 %v1191
      %v1224 = vunpack.c.l.b16 %v1192
      %v1225 = vunpack.c.l.b16 %v1193
      %v1226 = vunpack.c.l.b16 %v1194
      %v1227 = vunpack.c.l.b16 %v1195
      %v1228 = vunpack.c.l.b16 %v1196
      %v1229 = vunpack.c.l.b16 %v1197
      %v1230 = vunpack.c.l.b16 %v1198
      %v1231 = vunpack.c.l.b16 %v1199
      %v1232 = vunpack.c.l.b16 %v1200
      %v1233 = vunpack.c.l.b16 %v1201
      %v1234 = vunpack.c.l.b16 %v1202
      %v1235 = vunpack.c.l.b16 %v1203
      %v1236 = vunpack.c.l.b16 %v1204
      %v1237 = vunpack.c.l.b16 %v1205
      %v1238 = vunpack.c.l.b16 %v1206
      %v1239 = vpack.c.b16 %v1224, %v1223
      %v1240 = vpack.c.b16 %v1226, %v1225
      %v1241 = vpack.c.b16 %v1228, %v1227
      %v1242 = vpack.c.b16 %v1230, %v1229
      %v1243 = vpack.c.b16 %v1232, %v1231
      %v1244 = vpack.c.b16 %v1234, %v1233
      %v1245 = vpack.c.b16 %v1236, %v1235
      %v1246 = vpack.c.b16 %v1238, %v1237
      %1255 = vmatprep.subr.bf16.mxu0 0
      %1256 = vmatpush1.bf16.msra.mxu0 %v1246
      %1257 = vmatprep.subr.bf16.mxu0 0
      %1258 = vmatpush1.bf16.msra.mxu0 %v1245
      %1259 = vmatprep.subr.bf16.mxu0 0
      %1260 = vmatpush1.bf16.msra.mxu0 %v1244
      %1261 = vmatprep.subr.bf16.mxu0 0
      %1262 = vmatpush1.bf16.msra.mxu0 %v1243
      %1263 = vmatprep.subr.bf16.mxu0 0
      %1264 = vmatpush1.bf16.msra.mxu0 %v1242
      %1265 = vmatprep.subr.bf16.mxu0 0
      %1266 = vmatpush1.bf16.msra.mxu0 %v1241
      %1267 = vmatprep.subr.bf16.mxu0 0
      %1268 = vmatpush1.bf16.msra.mxu0 %v1240
      %1269 = vmatprep.subr.bf16.mxu0 0
      %1270 = vmatpush1.bf16.msra.mxu0 %v1239
      %1271 = vmatprep.subr.bf16.mxu0 0
      %1272 = vmatpush2.bf16.msra.mxu0 0
      %1273 = vmatprep.subr.bf16.mxu0 0
      %1274 = vmatpush2.bf16.msra.mxu0 0
      %1275 = vmatprep.subr.bf16.mxu0 0
      %1276 = vmatpush2.bf16.msra.mxu0 0
      %1277 = vmatprep.subr.bf16.mxu0 0
      %1278 = vmatpush2.bf16.msra.mxu0 0
      %1279 = vmatprep.subr.bf16.mxu0 0
      %1280 = vmatpush2.bf16.msra.mxu0 0
      %1281 = vmatprep.subr.bf16.mxu0 0
      %1282 = vmatpush2.bf16.msra.mxu0 0
      %1283 = vmatprep.subr.bf16.mxu0 0
      %1284 = vmatpush2.bf16.msra.mxu0 0
      %1285 = vmatprep.subr.bf16.mxu0 0
      %1286 = vmatpush2.bf16.msra.mxu0 0
      %1287 = vmatprep.mubr.bf16.mxu0 0
      %1288 = vmatmul.mubr.bf16.gmra.mxu0 %v1186
      %v1289 = vpop.f32.mrf.mxu0
      %v1290 = vadd.f32 0.0, %v1289
      %v1291 = vpop.f32.mrf.mxu0
      %v1292 = vpop.f32.mrf.mxu0
      %v1293 = vadd.f32 0.0, %v1292
      %v1294 = vpop.f32.mrf.mxu0
      %1295 = vmatprep.mubr.bf16.mxu0 0
      %1296 = vmatmul.mubr.bf16.gmra.mxu0 %v1187
      %v1297 = vpop.f32.mrf.mxu0
      %v1298 = vadd.f32 0.0, %v1297
      %v1299 = vpop.f32.mrf.mxu0
      %v1300 = vpop.f32.mrf.mxu0
      %v1301 = vadd.f32 0.0, %v1300
      %v1302 = vpop.f32.mrf.mxu0
      %1303 = vmatprep.mubr.bf16.mxu0 0
      %1304 = vmatmul.mubr.bf16.gmra.mxu0 %v1188
      %v1305 = vpop.f32.mrf.mxu0
      %v1306 = vadd.f32 0.0, %v1305
      %v1307 = vpop.f32.mrf.mxu0
      %v1308 = vpop.f32.mrf.mxu0
      %v1309 = vadd.f32 0.0, %v1308
      %v1310 = vpop.f32.mrf.mxu0
      %1311 = vmatprep.mubr.bf16.mxu0 0
      %1312 = vmatmul.mubr.bf16.gmra.mxu0 %v1189
      %v1313 = vpop.f32.mrf.mxu0
      %v1314 = vadd.f32 0.0, %v1313
      %v1315 = vpop.f32.mrf.mxu0
      %v1316 = vpop.f32.mrf.mxu0
      %v1317 = vadd.f32 0.0, %v1316
      %v1318 = vpop.f32.mrf.mxu0
      %1319 = vdwg.mxu0
      %v1320 = vadd.f32 %v1170, %v1290
      %v1321 = vadd.f32 %v1171, %v1293
      %v1322 = vadd.f32 %v1172, %v1298
      %v1323 = vadd.f32 %v1173, %v1301
      %v1324 = vadd.f32 %v1174, %v1306
      %v1325 = vadd.f32 %v1175, %v1309
      %v1326 = vadd.f32 %v1176, %v1314
      %v1327 = vadd.f32 %v1177, %v1317
      %s1328 = scalar_lea.vmem [#allocation2], 32
      %v1329 = vld [vmem:[%s1328] sm:$0xff]
      %v1330 = vld [vmem:[%s1328 + $0x10] sm:$0xff]
      %v1331 = vld [vmem:[%s1328 + $0x20] sm:$0xff]
      %v1332 = vld [vmem:[%s1328 + $0x30] sm:$0xff]
      %v1333 = vld [vmem:[%s1328 + $0x40] sm:$0xff]
      %v1334 = vld [vmem:[%s1328 + $0x50] sm:$0xff]
      %v1335 = vld [vmem:[%s1328 + $0x60] sm:$0xff]
      %v1336 = vld [vmem:[%s1328 + $0x70] sm:$0xff]
      %v1337 = vpack.c.bf16 %v1330, %v1329
      %v1338 = vpack.c.bf16 %v1332, %v1331
      %v1339 = vpack.c.bf16 %v1334, %v1333
      %v1340 = vpack.c.bf16 %v1336, %v1335
      %s1341 = scalar_lea.vmem %s1, 384
      %v1342 = vld [vmem:[%s1341] sm:$0xf]
      %v1343 = vld [vmem:[%s1341 + $0x4] sm:$0xf]
      %v1344 = vld [vmem:[%s1341 + $0x8] sm:$0xf]
      %v1345 = vld [vmem:[%s1341 + $0xc] sm:$0xf]
      %v1346 = vld [vmem:[%s1341 + $0x10] sm:$0xf]
      %v1347 = vld [vmem:[%s1341 + $0x14] sm:$0xf]
      %v1348 = vld [vmem:[%s1341 + $0x18] sm:$0xf]
      %v1349 = vld [vmem:[%s1341 + $0x1c] sm:$0xf]
      %v1350 = vld [vmem:[%s1341 + $0x20] sm:$0xf]
      %v1351 = vld [vmem:[%s1341 + $0x24] sm:$0xf]
      %v1352 = vld [vmem:[%s1341 + $0x28] sm:$0xf]
      %v1353 = vld [vmem:[%s1341 + $0x2c] sm:$0xf]
      %v1354 = vld [vmem:[%s1341 + $0x30] sm:$0xf]
      %v1355 = vld [vmem:[%s1341 + $0x34] sm:$0xf]
      %v1356 = vld [vmem:[%s1341 + $0x38] sm:$0xf]
      %v1357 = vld [vmem:[%s1341 + $0x3c] sm:$0xf]
      %v1374 = vunpack.c.l.b16 %v1342
      %v1375 = vunpack.c.l.b16 %v1343
      %v1376 = vunpack.c.l.b16 %v1344
      %v1377 = vunpack.c.l.b16 %v1345
      %v1378 = vunpack.c.l.b16 %v1346
      %v1379 = vunpack.c.l.b16 %v1347
      %v1380 = vunpack.c.l.b16 %v1348
      %v1381 = vunpack.c.l.b16 %v1349
      %v1382 = vunpack.c.l.b16 %v1350
      %v1383 = vunpack.c.l.b16 %v1351
      %v1384 = vunpack.c.l.b16 %v1352
      %v1385 = vunpack.c.l.b16 %v1353
      %v1386 = vunpack.c.l.b16 %v1354
      %v1387 = vunpack.c.l.b16 %v1355
      %v1388 = vunpack.c.l.b16 %v1356
      %v1389 = vunpack.c.l.b16 %v1357
      %v1390 = vpack.c.b16 %v1375, %v1374
      %v1391 = vpack.c.b16 %v1377, %v1376
      %v1392 = vpack.c.b16 %v1379, %v1378
      %v1393 = vpack.c.b16 %v1381, %v1380
      %v1394 = vpack.c.b16 %v1383, %v1382
      %v1395 = vpack.c.b16 %v1385, %v1384
      %v1396 = vpack.c.b16 %v1387, %v1386
      %v1397 = vpack.c.b16 %v1389, %v1388
      %1406 = vmatprep.subr.bf16.mxu0 0
      %1407 = vmatpush1.bf16.msra.mxu0 %v1397
      %1408 = vmatprep.subr.bf16.mxu0 0
      %1409 = vmatpush1.bf16.msra.mxu0 %v1396
      %1410 = vmatprep.subr.bf16.mxu0 0
      %1411 = vmatpush1.bf16.msra.mxu0 %v1395
      %1412 = vmatprep.subr.bf16.mxu0 0
      %1413 = vmatpush1.bf16.msra.mxu0 %v1394
      %1414 = vmatprep.subr.bf16.mxu0 0
      %1415 = vmatpush1.bf16.msra.mxu0 %v1393
      %1416 = vmatprep.subr.bf16.mxu0 0
      %1417 = vmatpush1.bf16.msra.mxu0 %v1392
      %1418 = vmatprep.subr.bf16.mxu0 0
      %1419 = vmatpush1.bf16.msra.mxu0 %v1391
      %1420 = vmatprep.subr.bf16.mxu0 0
      %1421 = vmatpush1.bf16.msra.mxu0 %v1390
      %1422 = vmatprep.subr.bf16.mxu0 0
      %1423 = vmatpush2.bf16.msra.mxu0 0
      %1424 = vmatprep.subr.bf16.mxu0 0
      %1425 = vmatpush2.bf16.msra.mxu0 0
      %1426 = vmatprep.subr.bf16.mxu0 0
      %1427 = vmatpush2.bf16.msra.mxu0 0
      %1428 = vmatprep.subr.bf16.mxu0 0
      %1429 = vmatpush2.bf16.msra.mxu0 0
      %1430 = vmatprep.subr.bf16.mxu0 0
      %1431 = vmatpush2.bf16.msra.mxu0 0
      %1432 = vmatprep.subr.bf16.mxu0 0
      %1433 = vmatpush2.bf16.msra.mxu0 0
      %1434 = vmatprep.subr.bf16.mxu0 0
      %1435 = vmatpush2.bf16.msra.mxu0 0
      %1436 = vmatprep.subr.bf16.mxu0 0
      %1437 = vmatpush2.bf16.msra.mxu0 0
      %1438 = vmatprep.mubr.bf16.mxu0 0
      %1439 = vmatmul.mubr.bf16.gmra.mxu0 %v1337
      %v1440 = vpop.f32.mrf.mxu0
      %v1441 = vadd.f32 0.0, %v1440
      %v1442 = vpop.f32.mrf.mxu0
      %v1443 = vpop.f32.mrf.mxu0
      %v1444 = vadd.f32 0.0, %v1443
      %v1445 = vpop.f32.mrf.mxu0
      %1446 = vmatprep.mubr.bf16.mxu0 0
      %1447 = vmatmul.mubr.bf16.gmra.mxu0 %v1338
      %v1448 = vpop.f32.mrf.mxu0
      %v1449 = vadd.f32 0.0, %v1448
      %v1450 = vpop.f32.mrf.mxu0
      %v1451 = vpop.f32.mrf.mxu0
      %v1452 = vadd.f32 0.0, %v1451
      %v1453 = vpop.f32.mrf.mxu0
      %1454 = vmatprep.mubr.bf16.mxu0 0
      %1455 = vmatmul.mubr.bf16.gmra.mxu0 %v1339
      %v1456 = vpop.f32.mrf.mxu0
      %v1457 = vadd.f32 0.0, %v1456
      %v1458 = vpop.f32.mrf.mxu0
      %v1459 = vpop.f32.mrf.mxu0
      %v1460 = vadd.f32 0.0, %v1459
      %v1461 = vpop.f32.mrf.mxu0
      %1462 = vmatprep.mubr.bf16.mxu0 0
      %1463 = vmatmul.mubr.bf16.gmra.mxu0 %v1340
      %v1464 = vpop.f32.mrf.mxu0
      %v1465 = vadd.f32 0.0, %v1464
      %v1466 = vpop.f32.mrf.mxu0
      %v1467 = vpop.f32.mrf.mxu0
      %v1468 = vadd.f32 0.0, %v1467
      %v1469 = vpop.f32.mrf.mxu0
      %1470 = vdwg.mxu0
      %v1471 = vadd.f32 %v1320, %v1441
      %v1472 = vadd.f32 %v1321, %v1444
      %v1473 = vadd.f32 %v1322, %v1449
      %v1474 = vadd.f32 %v1323, %v1452
      %v1475 = vadd.f32 %v1324, %v1457
      %v1476 = vadd.f32 %v1325, %v1460
      %v1477 = vadd.f32 %v1326, %v1465
      %v1478 = vadd.f32 %v1327, %v1468
      %v1479 = vld [vmem:[%s1328 + $0x1] sm:$0xff]
      %v1480 = vld [vmem:[%s1328 + $0x11] sm:$0xff]
      %v1481 = vld [vmem:[%s1328 + $0x21] sm:$0xff]
      %v1482 = vld [vmem:[%s1328 + $0x31] sm:$0xff]
      %v1483 = vld [vmem:[%s1328 + $0x41] sm:$0xff]
      %v1484 = vld [vmem:[%s1328 + $0x51] sm:$0xff]
      %v1485 = vld [vmem:[%s1328 + $0x61] sm:$0xff]
      %v1486 = vld [vmem:[%s1328 + $0x71] sm:$0xff]
      %v1487 = vpack.c.bf16 %v1480, %v1479
      %v1488 = vpack.c.bf16 %v1482, %v1481
      %v1489 = vpack.c.bf16 %v1484, %v1483
      %v1490 = vpack.c.bf16 %v1486, %v1485
      %s1491 = scalar_lea.vmem %s1, 448
      %v1492 = vld [vmem:[%s1491] sm:$0xf]
      %v1493 = vld [vmem:[%s1491 + $0x4] sm:$0xf]
      %v1494 = vld [vmem:[%s1491 + $0x8] sm:$0xf]
      %v1495 = vld [vmem:[%s1491 + $0xc] sm:$0xf]
      %v1496 = vld [vmem:[%s1491 + $0x10] sm:$0xf]
      %v1497 = vld [vmem:[%s1491 + $0x14] sm:$0xf]
      %v1498 = vld [vmem:[%s1491 + $0x18] sm:$0xf]
      %v1499 = vld [vmem:[%s1491 + $0x1c] sm:$0xf]
      %v1500 = vld [vmem:[%s1491 + $0x20] sm:$0xf]
      %v1501 = vld [vmem:[%s1491 + $0x24] sm:$0xf]
      %v1502 = vld [vmem:[%s1491 + $0x28] sm:$0xf]
      %v1503 = vld [vmem:[%s1491 + $0x2c] sm:$0xf]
      %v1504 = vld [vmem:[%s1491 + $0x30] sm:$0xf]
      %v1505 = vld [vmem:[%s1491 + $0x34] sm:$0xf]
      %v1506 = vld [vmem:[%s1491 + $0x38] sm:$0xf]
      %v1507 = vld [vmem:[%s1491 + $0x3c] sm:$0xf]
      %v1524 = vunpack.c.l.b16 %v1492
      %v1525 = vunpack.c.l.b16 %v1493
      %v1526 = vunpack.c.l.b16 %v1494
      %v1527 = vunpack.c.l.b16 %v1495
      %v1528 = vunpack.c.l.b16 %v1496
      %v1529 = vunpack.c.l.b16 %v1497
      %v1530 = vunpack.c.l.b16 %v1498
      %v1531 = vunpack.c.l.b16 %v1499
      %v1532 = vunpack.c.l.b16 %v1500
      %v1533 = vunpack.c.l.b16 %v1501
      %v1534 = vunpack.c.l.b16 %v1502
      %v1535 = vunpack.c.l.b16 %v1503
      %v1536 = vunpack.c.l.b16 %v1504
      %v1537 = vunpack.c.l.b16 %v1505
      %v1538 = vunpack.c.l.b16 %v1506
      %v1539 = vunpack.c.l.b16 %v1507
      %v1540 = vpack.c.b16 %v1525, %v1524
      %v1541 = vpack.c.b16 %v1527, %v1526
      %v1542 = vpack.c.b16 %v1529, %v1528
      %v1543 = vpack.c.b16 %v1531, %v1530
      %v1544 = vpack.c.b16 %v1533, %v1532
      %v1545 = vpack.c.b16 %v1535, %v1534
      %v1546 = vpack.c.b16 %v1537, %v1536
      %v1547 = vpack.c.b16 %v1539, %v1538
      %1556 = vmatprep.subr.bf16.mxu0 0
      %1557 = vmatpush1.bf16.msra.mxu0 %v1547
      %1558 = vmatprep.subr.bf16.mxu0 0
      %1559 = vmatpush1.bf16.msra.mxu0 %v1546
      %1560 = vmatprep.subr.bf16.mxu0 0
      %1561 = vmatpush1.bf16.msra.mxu0 %v1545
      %1562 = vmatprep.subr.bf16.mxu0 0
      %1563 = vmatpush1.bf16.msra.mxu0 %v1544
      %1564 = vmatprep.subr.bf16.mxu0 0
      %1565 = vmatpush1.bf16.msra.mxu0 %v1543
      %1566 = vmatprep.subr.bf16.mxu0 0
      %1567 = vmatpush1.bf16.msra.mxu0 %v1542
      %1568 = vmatprep.subr.bf16.mxu0 0
      %1569 = vmatpush1.bf16.msra.mxu0 %v1541
      %1570 = vmatprep.subr.bf16.mxu0 0
      %1571 = vmatpush1.bf16.msra.mxu0 %v1540
      %1572 = vmatprep.subr.bf16.mxu0 0
      %1573 = vmatpush2.bf16.msra.mxu0 0
      %1574 = vmatprep.subr.bf16.mxu0 0
      %1575 = vmatpush2.bf16.msra.mxu0 0
      %1576 = vmatprep.subr.bf16.mxu0 0
      %1577 = vmatpush2.bf16.msra.mxu0 0
      %1578 = vmatprep.subr.bf16.mxu0 0
      %1579 = vmatpush2.bf16.msra.mxu0 0
      %1580 = vmatprep.subr.bf16.mxu0 0
      %1581 = vmatpush2.bf16.msra.mxu0 0
      %1582 = vmatprep.subr.bf16.mxu0 0
      %1583 = vmatpush2.bf16.msra.mxu0 0
      %1584 = vmatprep.subr.bf16.mxu0 0
      %1585 = vmatpush2.bf16.msra.mxu0 0
      %1586 = vmatprep.subr.bf16.mxu0 0
      %1587 = vmatpush2.bf16.msra.mxu0 0
      %1588 = vmatprep.mubr.bf16.mxu0 0
      %1589 = vmatmul.mubr.bf16.gmra.mxu0 %v1487
      %v1590 = vpop.f32.mrf.mxu0
      %v1591 = vadd.f32 0.0, %v1590
      %v1592 = vpop.f32.mrf.mxu0
      %v1593 = vpop.f32.mrf.mxu0
      %v1594 = vadd.f32 0.0, %v1593
      %v1595 = vpop.f32.mrf.mxu0
      %1596 = vmatprep.mubr.bf16.mxu0 0
      %1597 = vmatmul.mubr.bf16.gmra.mxu0 %v1488
      %v1598 = vpop.f32.mrf.mxu0
      %v1599 = vadd.f32 0.0, %v1598
      %v1600 = vpop.f32.mrf.mxu0
      %v1601 = vpop.f32.mrf.mxu0
      %v1602 = vadd.f32 0.0, %v1601
      %v1603 = vpop.f32.mrf.mxu0
      %1604 = vmatprep.mubr.bf16.mxu0 0
      %1605 = vmatmul.mubr.bf16.gmra.mxu0 %v1489
      %v1606 = vpop.f32.mrf.mxu0
      %v1607 = vadd.f32 0.0, %v1606
      %v1608 = vpop.f32.mrf.mxu0
      %v1609 = vpop.f32.mrf.mxu0
      %v1610 = vadd.f32 0.0, %v1609
      %v1611 = vpop.f32.mrf.mxu0
      %1612 = vmatprep.mubr.bf16.mxu0 0
      %1613 = vmatmul.mubr.bf16.gmra.mxu0 %v1490
      %v1614 = vpop.f32.mrf.mxu0
      %v1615 = vadd.f32 0.0, %v1614
      %v1616 = vpop.f32.mrf.mxu0
      %v1617 = vpop.f32.mrf.mxu0
      %v1618 = vadd.f32 0.0, %v1617
      %v1619 = vpop.f32.mrf.mxu0
      %1620 = vdwg.mxu0
      %v1621 = vadd.f32 %v1471, %v1591
      %v1622 = vadd.f32 %v1472, %v1594
      %v1623 = vadd.f32 %v1473, %v1599
      %v1624 = vadd.f32 %v1474, %v1602
      %v1625 = vadd.f32 %v1475, %v1607
      %v1626 = vadd.f32 %v1476, %v1610
      %v1627 = vadd.f32 %v1477, %v1615
      %v1628 = vadd.f32 %v1478, %v1618
      %v1629 = vld [vmem:[%s1328 + $0x2] sm:$0xff]
      %v1630 = vld [vmem:[%s1328 + $0x12] sm:$0xff]
      %v1631 = vld [vmem:[%s1328 + $0x22] sm:$0xff]
      %v1632 = vld [vmem:[%s1328 + $0x32] sm:$0xff]
      %v1633 = vld [vmem:[%s1328 + $0x42] sm:$0xff]
      %v1634 = vld [vmem:[%s1328 + $0x52] sm:$0xff]
      %v1635 = vld [vmem:[%s1328 + $0x62] sm:$0xff]
      %v1636 = vld [vmem:[%s1328 + $0x72] sm:$0xff]
      %v1637 = vpack.c.bf16 %v1630, %v1629
      %v1638 = vpack.c.bf16 %v1632, %v1631
      %v1639 = vpack.c.bf16 %v1634, %v1633
      %v1640 = vpack.c.bf16 %v1636, %v1635
      %s1641 = scalar_lea.vmem %s1, 512
      %v1642 = vld [vmem:[%s1641] sm:$0xf]
      %v1643 = vld [vmem:[%s1641 + $0x4] sm:$0xf]
      %v1644 = vld [vmem:[%s1641 + $0x8] sm:$0xf]
      %v1645 = vld [vmem:[%s1641 + $0xc] sm:$0xf]
      %v1646 = vld [vmem:[%s1641 + $0x10] sm:$0xf]
      %v1647 = vld [vmem:[%s1641 + $0x14] sm:$0xf]
      %v1648 = vld [vmem:[%s1641 + $0x18] sm:$0xf]
      %v1649 = vld [vmem:[%s1641 + $0x1c] sm:$0xf]
      %v1650 = vld [vmem:[%s1641 + $0x20] sm:$0xf]
      %v1651 = vld [vmem:[%s1641 + $0x24] sm:$0xf]
      %v1652 = vld [vmem:[%s1641 + $0x28] sm:$0xf]
      %v1653 = vld [vmem:[%s1641 + $0x2c] sm:$0xf]
      %v1654 = vld [vmem:[%s1641 + $0x30] sm:$0xf]
      %v1655 = vld [vmem:[%s1641 + $0x34] sm:$0xf]
      %v1656 = vld [vmem:[%s1641 + $0x38] sm:$0xf]
      %v1657 = vld [vmem:[%s1641 + $0x3c] sm:$0xf]
      %v1674 = vunpack.c.l.b16 %v1642
      %v1675 = vunpack.c.l.b16 %v1643
      %v1676 = vunpack.c.l.b16 %v1644
      %v1677 = vunpack.c.l.b16 %v1645
      %v1678 = vunpack.c.l.b16 %v1646
      %v1679 = vunpack.c.l.b16 %v1647
      %v1680 = vunpack.c.l.b16 %v1648
      %v1681 = vunpack.c.l.b16 %v1649
      %v1682 = vunpack.c.l.b16 %v1650
      %v1683 = vunpack.c.l.b16 %v1651
      %v1684 = vunpack.c.l.b16 %v1652
      %v1685 = vunpack.c.l.b16 %v1653
      %v1686 = vunpack.c.l.b16 %v1654
      %v1687 = vunpack.c.l.b16 %v1655
      %v1688 = vunpack.c.l.b16 %v1656
      %v1689 = vunpack.c.l.b16 %v1657
      %v1690 = vpack.c.b16 %v1675, %v1674
      %v1691 = vpack.c.b16 %v1677, %v1676
      %v1692 = vpack.c.b16 %v1679, %v1678
      %v1693 = vpack.c.b16 %v1681, %v1680
      %v1694 = vpack.c.b16 %v1683, %v1682
      %v1695 = vpack.c.b16 %v1685, %v1684
      %v1696 = vpack.c.b16 %v1687, %v1686
      %v1697 = vpack.c.b16 %v1689, %v1688
      %1706 = vmatprep.subr.bf16.mxu0 0
      %1707 = vmatpush1.bf16.msra.mxu0 %v1697
      %1708 = vmatprep.subr.bf16.mxu0 0
      %1709 = vmatpush1.bf16.msra.mxu0 %v1696
      %1710 = vmatprep.subr.bf16.mxu0 0
      %1711 = vmatpush1.bf16.msra.mxu0 %v1695
      %1712 = vmatprep.subr.bf16.mxu0 0
      %1713 = vmatpush1.bf16.msra.mxu0 %v1694
      %1714 = vmatprep.subr.bf16.mxu0 0
      %1715 = vmatpush1.bf16.msra.mxu0 %v1693
      %1716 = vmatprep.subr.bf16.mxu0 0
      %1717 = vmatpush1.bf16.msra.mxu0 %v1692
      %1718 = vmatprep.subr.bf16.mxu0 0
      %1719 = vmatpush1.bf16.msra.mxu0 %v1691
      %1720 = vmatprep.subr.bf16.mxu0 0
      %1721 = vmatpush1.bf16.msra.mxu0 %v1690
      %1722 = vmatprep.subr.bf16.mxu0 0
      %1723 = vmatpush2.bf16.msra.mxu0 0
      %1724 = vmatprep.subr.bf16.mxu0 0
      %1725 = vmatpush2.bf16.msra.mxu0 0
      %1726 = vmatprep.subr.bf16.mxu0 0
      %1727 = vmatpush2.bf16.msra.mxu0 0
      %1728 = vmatprep.subr.bf16.mxu0 0
      %1729 = vmatpush2.bf16.msra.mxu0 0
      %1730 = vmatprep.subr.bf16.mxu0 0
      %1731 = vmatpush2.bf16.msra.mxu0 0
      %1732 = vmatprep.subr.bf16.mxu0 0
      %1733 = vmatpush2.bf16.msra.mxu0 0
      %1734 = vmatprep.subr.bf16.mxu0 0
      %1735 = vmatpush2.bf16.msra.mxu0 0
      %1736 = vmatprep.subr.bf16.mxu0 0
      %1737 = vmatpush2.bf16.msra.mxu0 0
      %1738 = vmatprep.mubr.bf16.mxu0 0
      %1739 = vmatmul.mubr.bf16.gmra.mxu0 %v1637
      %v1740 = vpop.f32.mrf.mxu0
      %v1741 = vadd.f32 0.0, %v1740
      %v1742 = vpop.f32.mrf.mxu0
      %v1743 = vpop.f32.mrf.mxu0
      %v1744 = vadd.f32 0.0, %v1743
      %v1745 = vpop.f32.mrf.mxu0
      %1746 = vmatprep.mubr.bf16.mxu0 0
      %1747 = vmatmul.mubr.bf16.gmra.mxu0 %v1638
      %v1748 = vpop.f32.mrf.mxu0
      %v1749 = vadd.f32 0.0, %v1748
      %v1750 = vpop.f32.mrf.mxu0
      %v1751 = vpop.f32.mrf.mxu0
      %v1752 = vadd.f32 0.0, %v1751
      %v1753 = vpop.f32.mrf.mxu0
      %1754 = vmatprep.mubr.bf16.mxu0 0
      %1755 = vmatmul.mubr.bf16.gmra.mxu0 %v1639
      %v1756 = vpop.f32.mrf.mxu0
      %v1757 = vadd.f32 0.0, %v1756
      %v1758 = vpop.f32.mrf.mxu0
      %v1759 = vpop.f32.mrf.mxu0
      %v1760 = vadd.f32 0.0, %v1759
      %v1761 = vpop.f32.mrf.mxu0
      %1762 = vmatprep.mubr.bf16.mxu0 0
      %1763 = vmatmul.mubr.bf16.gmra.mxu0 %v1640
      %v1764 = vpop.f32.mrf.mxu0
      %v1765 = vadd.f32 0.0, %v1764
      %v1766 = vpop.f32.mrf.mxu0
      %v1767 = vpop.f32.mrf.mxu0
      %v1768 = vadd.f32 0.0, %v1767
      %v1769 = vpop.f32.mrf.mxu0
      %1770 = vdwg.mxu0
      %v1771 = vadd.f32 %v1621, %v1741
      %v1772 = vadd.f32 %v1622, %v1744
      %v1773 = vadd.f32 %v1623, %v1749
      %v1774 = vadd.f32 %v1624, %v1752
      %v1775 = vadd.f32 %v1625, %v1757
      %v1776 = vadd.f32 %v1626, %v1760
      %v1777 = vadd.f32 %v1627, %v1765
      %v1778 = vadd.f32 %v1628, %v1768
      %1779 = vst [vmem:[%s177] sm:$0xff] %v1771
      %1780 = vst [vmem:[%s177 + $0x8] sm:$0xff] %v1772
      %1781 = vst [vmem:[%s177 + $0x10] sm:$0xff] %v1773
      %1782 = vst [vmem:[%s177 + $0x18] sm:$0xff] %v1774
      %1783 = vst [vmem:[%s177 + $0x20] sm:$0xff] %v1775
      %1784 = vst [vmem:[%s177 + $0x28] sm:$0xff] %v1776
      %1785 = vst [vmem:[%s177 + $0x30] sm:$0xff] %v1777
      %1786 = vst [vmem:[%s177 + $0x38] sm:$0xff] %v1778
      %v1787 = vadd.f32 %v1771, %v1772
      %v1788 = vadd.f32 %v1787, %v1773
      %v1789 = vadd.f32 %v1788, %v1774
      %v1790 = vadd.f32 %v1789, %v1775
      %v1791 = vadd.f32 %v1790, %v1776
      %v1792 = vadd.f32 %v1791, %v1777
      %v1793 = vadd.f32 %v1792, %v1778
      %v1794 = vrot.slane %v1793, 4
      %v1795 = vadd.f32 %v1793, %v1794
      %v1796 = vrot.slane %v1795, 2
      %v1797 = vadd.f32 %v1795, %v1796
      %v1798 = vrot.slane %v1797, 1
      %v1799 = vadd.f32 %v1797, %v1798
      %1800 = vst [vmem:[%s183] sm:$0x1] %v1799
      %v1801 = vmul.f32 %v1771, %v1771
      %v1802 = vmul.f32 %v1772, %v1772
      %v1803 = vmul.f32 %v1773, %v1773
      %v1804 = vmul.f32 %v1774, %v1774
      %v1805 = vmul.f32 %v1775, %v1775
      %v1806 = vmul.f32 %v1776, %v1776
      %v1807 = vmul.f32 %v1777, %v1777
      %v1808 = vmul.f32 %v1778, %v1778
      %v1809 = vadd.f32 %v1801, %v1802
      %v1810 = vadd.f32 %v1809, %v1803
      %v1811 = vadd.f32 %v1810, %v1804
      %v1812 = vadd.f32 %v1811, %v1805
      %v1813 = vadd.f32 %v1812, %v1806
      %v1814 = vadd.f32 %v1813, %v1807
      %v1815 = vadd.f32 %v1814, %v1808
      %v1816 = vrot.slane %v1815, 4
      %v1817 = vadd.f32 %v1815, %v1816
      %v1818 = vrot.slane %v1817, 2
      %v1819 = vadd.f32 %v1817, %v1818
      %v1820 = vrot.slane %v1819, 1
      %v1821 = vadd.f32 %v1819, %v1820
      %1822 = vst [vmem:[%s183 + $0x1] sm:$0x1] %v1821
      %s1823 = sadd.s32 %s20, %s21
      %p1824 = scmp.lt.s32.totalorder %s1823, 1
      %s1825 = scalar_select %p1824, %s1823, 1
      %s1826 = smul.addr %s1825, 8
      %s1827 = smul.addr %s1826, 8
      %s1828 = scalar_lea.vmem %s3, %s1827
      %s1829 = sadd.s32 %s20, %s21
      %p1830 = scmp.lt.s32.totalorder %s1829, 1
      %s1831 = scalar_select %p1830, %s1829, 1
      %s1832 = smul.addr %s1831, 2
      %s1833 = scalar_lea.vmem %s4, %s1832
      // Predicated region
      $region71: #{bottleneck_forward.5} parent=27 // pred_check
        %p1834 = pneg %p90
      $region72: #{bottleneck_forward.5} parent=27 // pred_check_branch
        %1836 = sbr.rel (%p1834) target = $region74
      $region73: #{bottleneck_forward.5} parent=27 // pred_region
        %s1837 = sadd.s32 %s20, %s21
      $region74: #{bottleneck_forward.5} parent=27 // pred_fallthru
        _
      // Predicated region
      $region75: #{bottleneck_forward.5} parent=27 // pred_check
        %p1838 = pneg %p118
      $region76: #{bottleneck_forward.5} parent=27 // pred_check_branch
        %1840 = sbr.rel (%p1838) target = $region78
      $region77: #{bottleneck_forward.5} parent=27 // pred_region
        %s1841 = sadd.s32 %s20, %s21
      $region78: #{bottleneck_forward.5} parent=27 // pred_fallthru
        _
    $region28: #{bottleneck_forward.5} parent=5 // pred_fallthru
      _
    %p1842 = scmp.le.s32.totalorder 2, %s11
    // Predicated region
    $region79: #{bottleneck_forward.5} parent=5 // pred_check
      %p1843 = pneg %p1842
    $region80: #{bottleneck_forward.5} parent=5 // pred_check_branch
      %1845 = sbr.rel (%p1843) target = $region82
    $region81: #{bottleneck_forward.5} parent=5 // pred_region
      %s1846 = ssub.s32 %s11, 2
      // Predicated region
      $region83: #{bottleneck_forward.5} parent=81 // pred_check
        %p1847 = pneg %p96
      $region84: #{bottleneck_forward.5} parent=81 // pred_check_branch
        %1849 = sbr.rel (%p1847) target = $region86
      $region85: #{bottleneck_forward.5} parent=81 // pred_region
        %s1850 = sadd.s32 %s22, %s23
        %p1851 = scmp.lt.s32.totalorder %s1850, 1
        %s1852 = scalar_select %p1851, %s1850, 1
        %s1853 = smul.addr %s1852, 8
        %s1854 = smul.addr %s1853, 8
        %s1855 = scalar_lea.vmem %s3, %s1854
      $region86: #{bottleneck_forward.5} parent=81 // pred_fallthru
        _
      // Predicated region
      $region87: #{bottleneck_forward.5} parent=81 // pred_check
        %p1856 = pneg %p124
      $region88: #{bottleneck_forward.5} parent=81 // pred_check_branch
        %1858 = sbr.rel (%p1856) target = $region90
      $region89: #{bottleneck_forward.5} parent=81 // pred_region
        %s1859 = sadd.s32 %s22, %s23
        %p1860 = scmp.lt.s32.totalorder %s1859, 1
        %s1861 = scalar_select %p1860, %s1859, 1
        %s1862 = smul.addr %s1861, 2
        %s1863 = scalar_lea.vmem %s4, %s1862
      $region90: #{bottleneck_forward.5} parent=81 // pred_fallthru
        _
    $region82: #{bottleneck_forward.5} parent=5 // pred_fallthru
      _
  $region6: #{bottleneck_forward.5} parent=0 // loop_footer
    %s15 = sadd.s32 1, %s11
  $region7: #{bottleneck_forward.5} parent=0 // loop_footer_branch
    %10 = sbr.rel target = $region3
  $region8: #{bottleneck_forward.5} parent=0 // loop_exit
    _

</llo_original>
